<compile_context>
chip_gen: v7x
topology: tpu7x:2x2x1
jax: 0.10.0
libtpu: 0.0.40
codegen_flags: <defaults>
</compile_context>

<pallas_src>
import functools

import jax
import jax.numpy as jnp
import numpy as np
from jax import lax
from jax.experimental import pallas as pl
from jax.experimental.pallas import tpu as pltpu

LANE = 128
_TILE_ND = 128      # dst-node tile (parallel grid axis)
_TILE_NS = 256      # src-node tile (online-softmax reduction axis)
_NEG_BIG = -1e30


def _round_up(n, m):
    return ((n + m - 1) // m) * m


def _pad_to(x, shape):
    pads = [(0, t - s) for s, t in zip(x.shape, shape)]
    if all(p == (0, 0) for p in pads):
        return x
    return jnp.pad(x, pads)


# ----------------------------------------------------------------------------
# Fused multi-relation GATConv kernel: one grid step = one (dst, rel, src) tile.
# ----------------------------------------------------------------------------
def _fused_gat_kernel(num_heads, out_feats, num_rel,
                      smap_ref, cnt_ref,                          # scalar prefetch
                      fs_ref, er_ref, el_ref, adj_ref, b_ref,     # inputs
                      o_ref,                                      # output
                      m_scr, l_scr, acc_scr):                     # scratch
    d = pl.program_id(0)
    r = pl.program_id(1)
    s = pl.program_id(2)
    num_s = pl.num_programs(2)
    H, F = num_heads, out_feats
    tile_nd, hf_p = acc_scr.shape

    # --- output accumulator init (sum over relations lives in the out block) ---
    @pl.when(jnp.logical_and(r == 0, s == 0))
    def _init_out():
        o_ref[...] = jnp.zeros_like(o_ref)

    # --- per-(dst_tile, relation) init of online-softmax state --------------
    @pl.when(s == 0)
    def _init_rel():
        m_scr[...] = jnp.full_like(m_scr, _NEG_BIG)
        l_scr[...] = jnp.zeros_like(l_scr)
        acc_scr[...] = jnp.zeros_like(acc_scr)

    # number of occupied src tiles for this (dst_tile, relation)
    n_live = cnt_ref[d * num_rel + r]

    # --- block-sparse step: only occupied src tiles do work ------------------
    @pl.when(s < n_live)
    def _attend():
        adj = adj_ref[0].astype(jnp.float32)            # (Tnd, Tns) in {0,1}
        fs = fs_ref[0]                                  # (Tns, hf_p) bf16
        el = el_ref[0]                                  # (H,  Tns)  f32
        er = er_ref[0]                                  # (Tnd, H)   f32
        m_prev = m_scr[...]                             # (Tnd, H)
        l_prev = l_scr[...]                             # (Tnd, H)

        col = lax.broadcasted_iota(jnp.int32, (1, hf_p), 1)

        # static unroll over heads (H is small; use lax.fori_loop(unroll=True)
        # if H grows enough to pressure vregs).
        p_blocks, fs_blocks, m_cols, l_cols, corr_cols = [], [], [], [], []
        for h in range(H):
            e = er[:, h:h + 1] + el[h:h + 1, :]         # (Tnd, Tns)
            e = jnp.maximum(e, 0.2 * e)                 # LeakyReLU(0.2)
            e = jnp.where(adj > 0.0, e, _NEG_BIG)       # mask non-edges
            m_h = jnp.maximum(m_prev[:, h:h + 1],
                              jnp.max(e, axis=1, keepdims=True))
            corr_h = jnp.exp(m_prev[:, h:h + 1] - m_h)  # rescale old state
            p_h = jnp.exp(e - m_h) * adj                # 0 on non-edges
            m_cols.append(m_h)
            l_cols.append(corr_h * l_prev[:, h:h + 1]
                          + jnp.sum(p_h, axis=1, keepdims=True))
            corr_cols.append(jnp.broadcast_to(corr_h, (tile_nd, F)))
            p_blocks.append(p_h.astype(jnp.bfloat16))
            head_mask = jnp.logical_and(col >= h * F, col < (h + 1) * F)
            fs_blocks.append(fs * head_mask.astype(jnp.bfloat16))

        # single full-block scratch stores per tile (no masked column writes)
        m_scr[...] = jnp.concatenate(m_cols, axis=1)
        l_scr[...] = jnp.concatenate(l_cols, axis=1)

        pad = hf_p - H * F
        if pad:
            corr_cols.append(jnp.ones((tile_nd, pad), jnp.float32))
        corr_full = jnp.concatenate(corr_cols, axis=1)  # (Tnd, hf_p)

        # one lane-dense MXU call: heads stacked on the contraction axis
        p_cat = jnp.concatenate(p_blocks, axis=1)       # (Tnd, H*Tns) bf16
        fs_blk = jnp.concatenate(fs_blocks, axis=0)     # (H*Tns, hf_p) bf16
        acc_scr[...] = corr_full * acc_scr[...] + jnp.dot(
            p_cat, fs_blk, preferred_element_type=jnp.float32)

    # --- finalize this relation: normalize, add bias, accumulate over rels ---
    @pl.when(s == num_s - 1)
    def _finalize():
        # Every real dst node has >=1 in-edge (harness guarantees it) so l>=1;
        # the guard only protects padded / edge-less rows from NaN. approx
        # reciprocal (EUP) keeps ~1e-3 rel error, well inside test tolerance.
        inv = pl.reciprocal(jnp.maximum(l_scr[...], 1e-20), approx=True)  # (Tnd,H)
        inv_cols = [jnp.broadcast_to(inv[:, h:h + 1], (tile_nd, F))
                    for h in range(H)]
        pad = hf_p - H * F
        if pad:
            inv_cols.append(jnp.zeros((tile_nd, pad), jnp.float32))
        inv_full = jnp.concatenate(inv_cols, axis=1)
        o_ref[...] += acc_scr[...] * inv_full + b_ref[0]


# ----------------------------------------------------------------------------
# Per-(src_type, dst_type) group preparation: int8 adjacency + block-sparsity
# schedule (compacted occupied-src-tile list). Built once per forward, reused
# by both layers (depends only on graph structure).
# ----------------------------------------------------------------------------
def _prepare_group(adj_stack, tile_nd=_TILE_ND, tile_ns=_TILE_NS):
    R, Nd, Ns = adj_stack.shape
    nd_p, ns_p = _round_up(Nd, tile_nd), _round_up(Ns, tile_ns)
    n_d, n_s = nd_p // tile_nd, ns_p // tile_ns

    adj_i8 = _pad_to((adj_stack != 0).astype(jnp.int8), (R, nd_p, ns_p))
    occ = (adj_i8.reshape(R, n_d, tile_nd, n_s, tile_ns) != 0).any(axis=(2, 4))
    occ = jnp.transpose(occ, (1, 0, 2))                  # (n_d, R, n_s)
    cnt = occ.sum(-1).astype(jnp.int32)                  # (n_d, R)
    # occupied tiles first (stable), trailing steps repeat the last occupied
    # index so the pipeline re-uses the buffer instead of issuing a new DMA.
    order = jnp.argsort(jnp.logical_not(occ).astype(jnp.int32), axis=-1)
    j = jnp.minimum(jnp.arange(n_s)[None, None, :],
                    jnp.maximum(cnt - 1, 0)[..., None])
    smap = jnp.take_along_axis(order, j, axis=-1).astype(jnp.int32)

    return dict(adj=adj_i8, smap=smap.reshape(-1), cnt=cnt.reshape(-1),
                Nd=Nd, Ns=Ns, tile_nd=tile_nd, tile_ns=tile_ns)


# ----------------------------------------------------------------------------
# All relations sharing (src_type, dst_type): output = sum_r GATConv_r.
# ----------------------------------------------------------------------------
def gat_conv_fused(x_src, x_dst, prep, W, attn_l, attn_r, bias, *,
                   num_heads, out_feats):
    R = W.shape[0]
    Nd, Ns = prep['Nd'], prep['Ns']
    tile_nd, tile_ns = prep['tile_nd'], prep['tile_ns']
    adj = prep['adj']                                    # (R, nd_p, ns_p) int8
    nd_p, ns_p = adj.shape[1], adj.shape[2]
    n_d, n_s = nd_p // tile_nd, ns_p // tile_ns
    H, F = num_heads, out_feats
    HF = H * F
    hf_p = _round_up(HF, LANE)

    # Hoisted projections (plain XLA matmuls, one per relation):
    fs = jnp.einsum('nd,rdk->rnk', x_src.astype(jnp.float32), W)     # (R,Ns,HF)
    fd = jnp.einsum('nd,rdk->rnk', x_dst.astype(jnp.float32), W)     # (R,Nd,HF)
    el = jnp.einsum('rnhf,rhf->rhn', fs.reshape(R, Ns, H, F), attn_l)  # (R,H,Ns)
    er = jnp.einsum('rnhf,rhf->rnh', fd.reshape(R, Nd, H, F), attn_r)  # (R,Nd,H)

    fs = _pad_to(fs, (R, ns_p, hf_p)).astype(jnp.bfloat16)
    el = _pad_to(el.astype(jnp.float32), (R, H, ns_p))
    er = _pad_to(er.astype(jnp.float32), (R, nd_p, H))
    b = _pad_to(bias.reshape(R, 1, HF).astype(jnp.float32), (R, 1, hf_p))

    smap, cnt = prep['smap'], prep['cnt']
    kernel = functools.partial(_fused_gat_kernel, H, F, R)

    steps = n_d * R * n_s
    cost = pl.CostEstimate(
        flops=int(2 * steps * tile_nd * (H * tile_ns) * hf_p),
        transcendentals=int(steps * H * tile_nd * tile_ns),
        bytes_accessed=int(adj.size + 2 * n_d * R * ns_p * hf_p
                           + 4 * nd_p * hf_p + 4 * R * nd_p * H
                           + 4 * n_d * R * H * ns_p))

    out = pl.pallas_call(
        kernel,
        out_shape=jax.ShapeDtypeStruct((nd_p, hf_p), jnp.float32),
        grid_spec=pltpu.PrefetchScalarGridSpec(
            num_scalar_prefetch=2,
            grid=(n_d, R, n_s),
            in_specs=[
                # feat_src tile, indexed through the compacted src-tile list
                pl.BlockSpec((1, tile_ns, hf_p),
                             lambda d, r, s, sm, ct:
                             (r, sm[(d * R + r) * n_s + s], 0)),
                # dst attention logits (per relation, per dst tile)
                pl.BlockSpec((1, tile_nd, H),
                             lambda d, r, s, sm, ct: (r, d, 0)),
                # src attention logits (per relation, per src tile)
                pl.BlockSpec((1, H, tile_ns),
                             lambda d, r, s, sm, ct:
                             (r, 0, sm[(d * R + r) * n_s + s])),
                # int8 adjacency tile
                pl.BlockSpec((1, tile_nd, tile_ns),
                             lambda d, r, s, sm, ct:
                             (r, d, sm[(d * R + r) * n_s + s])),
                # bias
                pl.BlockSpec((1, 1, hf_p),
                             lambda d, r, s, sm, ct: (r, 0, 0)),
            ],
            out_specs=pl.BlockSpec((tile_nd, hf_p),
                                   lambda d, r, s, sm, ct: (d, 0)),
            scratch_shapes=[
                pltpu.VMEM((tile_nd, H), jnp.float32),      # running max
                pltpu.VMEM((tile_nd, H), jnp.float32),      # running denom
                pltpu.VMEM((tile_nd, hf_p), jnp.float32),   # unnormalized acc
            ],
        ),
        compiler_params=pltpu.CompilerParams(
            dimension_semantics=("parallel", "arbitrary", "arbitrary")),
        cost_estimate=cost,
    )(smap, cnt, fs, er, el, adj, b)
    return out[:Nd, :HF]


# ----------------------------------------------------------------------------
# Pure-JAX reference of one GATConv (self-check only).
# ----------------------------------------------------------------------------
def gat_conv_ref(x_src, x_dst, adj, W, attn_l, attn_r, bias, *, num_heads, out_feats):
    Ns, Nd = x_src.shape[0], x_dst.shape[0]
    fs = (x_src @ W).reshape(Ns, num_heads, out_feats)
    fd = (x_dst @ W).reshape(Nd, num_heads, out_feats)
    el = (fs * attn_l[None]).sum(-1)                     # (Ns, H)
    er = (fd * attn_r[None]).sum(-1)                     # (Nd, H)
    e = er[:, None, :] + el[None, :, :]                  # (Nd, Ns, H)
    e = jnp.where(e > 0, e, 0.2 * e)
    mask = adj[:, :, None] > 0
    e = jnp.where(mask, e, -jnp.inf)
    a = jax.nn.softmax(e, axis=1)
    a = jnp.where(mask, a, 0.0)
    out = jnp.einsum('dsh,shf->dhf', a, fs) + bias[None]
    return out.reshape(Nd, num_heads * out_feats)


# ----------------------------------------------------------------------------
# HeteroGraphConv layers + RGAT forward.
# `graph` maps relation name -> (src_type, dst_type, adjacency mask (Nd, Ns)).
# ----------------------------------------------------------------------------
def _group_relations(graph):
    groups = {}
    for rel, (st, dt, adj) in graph.items():
        groups.setdefault((st, dt), []).append((rel, adj))
    return groups


def _hetero_layer_pallas(graph, feats, layer_params, num_heads, out_feats, *, prep):
    out = {}
    for (st, dt), rels in _group_relations(graph).items():
        if st not in feats or dt not in feats:
            continue
        W = jnp.stack([layer_params[r]['W'] for r, _ in rels])
        al = jnp.stack([layer_params[r]['attn_l'] for r, _ in rels])
        ar = jnp.stack([layer_params[r]['attn_r'] for r, _ in rels])
        b = jnp.stack([layer_params[r]['bias'] for r, _ in rels])
        o = gat_conv_fused(feats[st], feats[dt], prep[(st, dt)], W, al, ar, b,
                           num_heads=num_heads, out_feats=out_feats)
        out[dt] = o if dt not in out else out[dt] + o    # aggregate='sum'
    return out


def _hetero_layer_ref(graph, feats, layer_params, num_heads, out_feats):
    out = {}
    for rel, (st, dt, adj) in graph.items():
        if st not in feats or dt not in feats:
            continue
        p = layer_params[rel]
        o = gat_conv_ref(feats[st], feats[dt], adj, p['W'], p['attn_l'],
                         p['attn_r'], p['bias'], num_heads=num_heads,
                         out_feats=out_feats)
        out[dt] = o if dt not in out else out[dt] + o
    return out


def rgat_forward(graph, inputs, params, *, hid_feats, out_feats, heads,
                 use_pallas=True):
    if use_pallas:
        # structure-only schedule: built once, shared by both layers
        prep = {key: _prepare_group(jnp.stack([a for _, a in rels]))
                for key, rels in _group_relations(graph).items()}
        layer = functools.partial(_hetero_layer_pallas, prep=prep)
    else:
        layer = _hetero_layer_ref
    h = layer(graph, inputs, params['conv1'], heads[0], hid_feats)
    h = {k: jax.nn.relu(v) for k, v in h.items()}        # F.relu(v).flatten(1)
    h = layer(graph, h, params['conv2'], heads[1], out_feats)
    return {k: v.reshape(v.shape[0], heads[1], out_feats).mean(axis=1)
            for k, v in h.items()}                       # v.mean(1) over heads


def init_params(key, in_feats, hid_feats, out_feats, rel_names, heads):
    params = {'conv1': {}, 'conv2': {}}
    for rel in rel_names:
        key, *ks = jax.random.split(key, 5)
        params['conv1'][rel] = {
            'W': 0.2 * jax.random.normal(ks[0], (in_feats, heads[0] * hid_feats), jnp.float32),
            'attn_l': 0.2 * jax.random.normal(ks[1], (heads[0], hid_feats), jnp.float32),
            'attn_r': 0.2 * jax.random.normal(ks[2], (heads[0], hid_feats), jnp.float32),
            'bias': 0.1 * jax.random.normal(ks[3], (heads[0], hid_feats), jnp.float32),
        }
        key, *ks = jax.random.split(key, 5)
        params['conv2'][rel] = {
            'W': 0.2 * jax.random.normal(ks[0], (heads[0] * hid_feats, heads[1] * out_feats), jnp.float32),
            'attn_l': 0.2 * jax.random.normal(ks[1], (heads[1], out_feats), jnp.float32),
            'attn_r': 0.2 * jax.random.normal(ks[2], (heads[1], out_feats), jnp.float32),
            'bias': 0.1 * jax.random.normal(ks[3], (heads[1], out_feats), jnp.float32),
        }
    return params


if __name__ == "__main__":
    IN_FEATS, HID_FEATS, OUT_FEATS = 8, 8, 8
    HEADS = [2, 2]
    N = 300   # dst pads to 384 (3 x 128-node tiles), src pads to 512 (2 x 256)
    rel_names = ['rel0', 'rel1']

    key = jax.random.PRNGKey(0)
    k_x, k_a0, k_a1, k_p = jax.random.split(key, 4)
    x = jax.random.normal(k_x, (N, IN_FEATS), jnp.float32)

    def make_adj(k, max_src=None):
        a = (jax.random.uniform(k, (N, N)) < 0.1).astype(jnp.float32)
        if max_src is not None:
            # block-structured sparsity: no edges from src >= max_src, so whole
            # (dst_tile, src_tile) blocks are empty -> exercises the DMA skip.
            a = a * (jnp.arange(N)[None, :] < max_src).astype(jnp.float32)
        # every dst node keeps >=1 in-edge (DGL GATConv zero-in-degree rule)
        return a.at[:, 0].set(1.0)

    # synthetic heterogeneous graph: single node type, two relations
    graph = {
        'rel0': ('node', 'node', make_adj(k_a0)),
        'rel1': ('node', 'node', make_adj(k_a1, max_src=64)),
    }
    inputs = {'node': x}
    params = init_params(k_p, IN_FEATS, HID_FEATS, OUT_FEATS, rel_names, HEADS)

    out = rgat_forward(graph, inputs, params, hid_feats=HID_FEATS,
                       out_feats=OUT_FEATS, heads=HEADS, use_pallas=True)
    out = jax.tree_util.tree_map(jax.block_until_ready, out)

    ref = rgat_forward(graph, inputs, params, hid_feats=HID_FEATS,
                       out_feats=OUT_FEATS, heads=HEADS, use_pallas=False)
    for k_ in out:
        np.testing.assert_allclose(np.asarray(out[k_]), np.asarray(ref[k_]),
                                   rtol=5e-2, atol=5e-2)

    print("KERNEL_OK")
</pallas_src>

<mosaic_0001>
module attributes {stable_mosaic.version = 11 : i64} {
  func.func @_fused_gat_kernel(%arg0: i32, %arg1: i32, %arg2: i32, %arg3: memref<12xi32, #tpu.memory_space<smem>>, %arg4: memref<6xi32, #tpu.memory_space<smem>>, %arg5: memref<1x256x128xbf16, #tpu.memory_space<vmem>>, %arg6: memref<1x128x2xf32, #tpu.memory_space<vmem>>, %arg7: memref<1x2x256xf32, #tpu.memory_space<vmem>>, %arg8: memref<1x128x256xi8, #tpu.memory_space<vmem>>, %arg9: memref<1x1x128xf32, #tpu.memory_space<vmem>>, %arg10: memref<128x128xf32, #tpu.memory_space<vmem>>, %arg11: memref<128x2xf32, #tpu.memory_space<vmem>>, %arg12: memref<128x2xf32, #tpu.memory_space<vmem>>, %arg13: memref<128x128xf32, #tpu.memory_space<vmem>>) attributes {dimension_semantics = [#tpu.dimension_semantics<parallel>, #tpu.dimension_semantics<arbitrary>, #tpu.dimension_semantics<arbitrary>], iteration_bounds = array<i64: 3, 2, 2>, scalar_prefetch = 2 : i64, scratch_operands = 3 : i64, tpu.core_type = #tpu.core_type<tc>, window_params = [{transform_indices = @transform_0, window_bounds = array<i64: 1, 256, 128>}, {transform_indices = @transform_1, window_bounds = array<i64: 1, 128, 2>}, {transform_indices = @transform_2, window_bounds = array<i64: 1, 2, 256>}, {transform_indices = @transform_3, window_bounds = array<i64: 1, 128, 256>}, {transform_indices = @transform_4, window_bounds = array<i64: 1, 1, 128>}, {transform_indices = @transform_5, window_bounds = array<i64: 128, 128>}]} {
    %c0_i32 = arith.constant 0 : i32
    %0 = arith.cmpi eq, %arg1, %c0_i32 : i32
    %c0_i32_0 = arith.constant 0 : i32
    %1 = arith.cmpi eq, %arg2, %c0_i32_0 : i32
    %2 = arith.andi %0, %1 : i1
    %3 = arith.extui %2 : i1 to i32
    %c0_i32_1 = arith.constant 0 : i32
    %4 = arith.cmpi ne, %3, %c0_i32_1 : i32
    scf.if %4 {
      %cst = arith.constant 0.000000e+00 : f32
      %18 = vector.broadcast %cst : f32 to vector<128x128xf32>
      %c0 = arith.constant 0 : index
      %c0_6 = arith.constant 0 : index
      %19 = vector.load %arg10[%c0, %c0_6] : memref<128x128xf32, #tpu.memory_space<vmem>>, vector<128x128xf32>
      tpu.vector_store %arg10[%c0, %c0_6], %18 {strides = array<i32>} : memref<128x128xf32, #tpu.memory_space<vmem>>, vector<128x128xf32>,
    } else {
    }
    %c0_i32_2 = arith.constant 0 : i32
    %5 = arith.cmpi eq, %arg2, %c0_i32_2 : i32
    %6 = arith.extui %5 : i1 to i32
    %c0_i32_3 = arith.constant 0 : i32
    %7 = arith.cmpi ne, %6, %c0_i32_3 : i32
    scf.if %7 {
      %cst = arith.constant -1.000000e+30 : f32
      %18 = vector.broadcast %cst : f32 to vector<128x2xf32>
      %c0 = arith.constant 0 : index
      %c0_6 = arith.constant 0 : index
      %19 = vector.load %arg11[%c0, %c0_6] : memref<128x2xf32, #tpu.memory_space<vmem>>, vector<128x2xf32>
      tpu.vector_store %arg11[%c0, %c0_6], %18 {strides = array<i32>} : memref<128x2xf32, #tpu.memory_space<vmem>>, vector<128x2xf32>,
      %cst_7 = arith.constant 0.000000e+00 : f32
      %20 = vector.broadcast %cst_7 : f32 to vector<128x2xf32>
      %c0_8 = arith.constant 0 : index
      %c0_9 = arith.constant 0 : index
      %21 = vector.load %arg12[%c0_8, %c0_9] : memref<128x2xf32, #tpu.memory_space<vmem>>, vector<128x2xf32>
      tpu.vector_store %arg12[%c0_8, %c0_9], %20 {strides = array<i32>} : memref<128x2xf32, #tpu.memory_space<vmem>>, vector<128x2xf32>,
      %cst_10 = arith.constant 0.000000e+00 : f32
      %22 = vector.broadcast %cst_10 : f32 to vector<128x128xf32>
      %c0_11 = arith.constant 0 : index
      %c0_12 = arith.constant 0 : index
      %23 = vector.load %arg13[%c0_11, %c0_12] : memref<128x128xf32, #tpu.memory_space<vmem>>, vector<128x128xf32>
      tpu.vector_store %arg13[%c0_11, %c0_12], %22 {strides = array<i32>} : memref<128x128xf32, #tpu.memory_space<vmem>>, vector<128x128xf32>,
    } else {
    }
    %c2_i32 = arith.constant 2 : i32
    %8 = arith.muli %arg0, %c2_i32 : i32
    %9 = arith.addi %8, %arg1 : i32
    %10 = arith.index_cast %9 : i32 to index
    %11 = memref.load %arg4[%10] : memref<6xi32, #tpu.memory_space<smem>>
    %12 = arith.cmpi slt, %arg2, %11 : i32
    %13 = arith.extui %12 : i1 to i32
    %c0_i32_4 = arith.constant 0 : i32
    %14 = arith.cmpi ne, %13, %c0_i32_4 : i32
    scf.if %14 {
      %c0 = arith.constant 0 : index
      %c0_6 = arith.constant 0 : index
      %c0_7 = arith.constant 0 : index
      %18 = vector.load %arg8[%c0, %c0_6, %c0_7] : memref<1x128x256xi8, #tpu.memory_space<vmem>>, vector<1x128x256xi8>
      %19 = vector.shape_cast %18 : vector<1x128x256xi8> to vector<128x256xi8>
      %20 = arith.sitofp %19 : vector<128x256xi8> to vector<128x256xf32>
      %c0_8 = arith.constant 0 : index
      %c0_9 = arith.constant 0 : index
      %c0_10 = arith.constant 0 : index
      %21 = vector.load %arg5[%c0_8, %c0_9, %c0_10] : memref<1x256x128xbf16, #tpu.memory_space<vmem>>, vector<1x256x128xbf16>
      %22 = vector.shape_cast %21 : vector<1x256x128xbf16> to vector<256x128xbf16>
      %c0_11 = arith.constant 0 : index
      %c0_12 = arith.constant 0 : index
      %c0_13 = arith.constant 0 : index
      %23 = vector.load %arg7[%c0_11, %c0_12, %c0_13] : memref<1x2x256xf32, #tpu.memory_space<vmem>>, vector<1x2x256xf32>
      %24 = vector.shape_cast %23 : vector<1x2x256xf32> to vector<2x256xf32>
      %c0_14 = arith.constant 0 : index
      %c0_15 = arith.constant 0 : index
      %c0_16 = arith.constant 0 : index
      %25 = vector.load %arg6[%c0_14, %c0_15, %c0_16] : memref<1x128x2xf32, #tpu.memory_space<vmem>>, vector<1x128x2xf32>
      %26 = vector.shape_cast %25 : vector<1x128x2xf32> to vector<128x2xf32>
      %c0_17 = arith.constant 0 : index
      %c0_18 = arith.constant 0 : index
      %27 = vector.load %arg11[%c0_17, %c0_18] : memref<128x2xf32, #tpu.memory_space<vmem>>, vector<128x2xf32>
      %c0_19 = arith.constant 0 : index
      %c0_20 = arith.constant 0 : index
      %28 = vector.load %arg12[%c0_19, %c0_20] : memref<128x2xf32, #tpu.memory_space<vmem>>, vector<128x2xf32>
      %29 = tpu.iota {dimensions = array<i32: 1>} : vector<1x128xi32>
      %30 = vector.extract_strided_slice %26 {offsets = [0, 0], sizes = [128, 1], strides = [1, 1]} : vector<128x2xf32> to vector<128x1xf32>
      %31 = vector.extract_strided_slice %24 {offsets = [0, 0], sizes = [1, 256], strides = [1, 1]} : vector<2x256xf32> to vector<1x256xf32>
      %32 = vector.broadcast %30 : vector<128x1xf32> to vector<128x256xf32>
      %33 = vector.broadcast %31 : vector<1x256xf32> to vector<128x256xf32>
      %34 = arith.addf %32, %33 : vector<128x256xf32>
      %cst = arith.constant 2.000000e-01 : f32
      %35 = vector.broadcast %cst : f32 to vector<128x256xf32>
      %36 = arith.mulf %35, %34 : vector<128x256xf32>
      %37 = arith.maximumf %34, %36 : vector<128x256xf32>
      %cst_21 = arith.constant 0.000000e+00 : f32
      %38 = vector.broadcast %cst_21 : f32 to vector<128x256xf32>
      %39 = arith.cmpf ogt, %20, %38 : vector<128x256xf32>
      %cst_22 = arith.constant -1.000000e+30 : f32
      %40 = vector.broadcast %cst_22 : f32 to vector<128x256xf32>
      %41 = arith.select %39, %37, %40 : vector<128x256xi1>, vector<128x256xf32>
      %42 = vector.extract_strided_slice %27 {offsets = [0, 0], sizes = [128, 1], strides = [1, 1]} : vector<128x2xf32> to vector<128x1xf32>
      %cst_23 = arith.constant dense<0xFF800000> : vector<128xf32>
      %43 = vector.multi_reduction <maximumf>, %41, %cst_23 [1] : vector<128x256xf32> to vector<128xf32>
      %44 = vector.shape_cast %43 : vector<128xf32> to vector<128x1xf32>
      %45 = arith.maximumf %42, %44 : vector<128x1xf32>
      %46 = vector.extract_strided_slice %27 {offsets = [0, 0], sizes = [128, 1], strides = [1, 1]} : vector<128x2xf32> to vector<128x1xf32>
      %47 = arith.subf %46, %45 : vector<128x1xf32>
      %48 = math.exp %47 : vector<128x1xf32>
      %49 = vector.broadcast %45 : vector<128x1xf32> to vector<128x256xf32>
      %50 = arith.subf %41, %49 : vector<128x256xf32>
      %51 = math.exp %50 : vector<128x256xf32>
      %52 = arith.mulf %51, %20 : vector<128x256xf32>
      %53 = vector.extract_strided_slice %28 {offsets = [0, 0], sizes = [128, 1], strides = [1, 1]} : vector<128x2xf32> to vector<128x1xf32>
      %54 = arith.mulf %48, %53 : vector<128x1xf32>
      %cst_24 = arith.constant dense<0.000000e+00> : vector<128xf32>
      %55 = vector.multi_reduction <add>, %52, %cst_24 [1] : vector<128x256xf32> to vector<128xf32>
      %56 = vector.shape_cast %55 : vector<128xf32> to vector<128x1xf32>
      %57 = arith.addf %54, %56 : vector<128x1xf32>
      %58 = vector.shape_cast %48 : vector<128x1xf32> to vector<128x1xf32>
      %59 = vector.broadcast %58 : vector<128x1xf32> to vector<128x8xf32>
      %60 = arith.truncf %52 : vector<128x256xf32> to vector<128x256xbf16>
      %c0_i32_25 = arith.constant 0 : i32
      %61 = vector.broadcast %c0_i32_25 : i32 to vector<1x128xi32>
      %62 = arith.cmpi sge, %29, %61 : vector<1x128xi32>
      %c8_i32 = arith.constant 8 : i32
      %63 = vector.broadcast %c8_i32 : i32 to vector<1x128xi32>
      %64 = arith.cmpi slt, %29, %63 : vector<1x128xi32>
      %65 = arith.andi %62, %64 : vector<1x128xi1>
      %66 = arith.extui %65 : vector<1x128xi1> to vector<1x128xi32>
      %67 = arith.sitofp %66 : vector<1x128xi32> to vector<1x128xf32>
      %68 = arith.truncf %67 : vector<1x128xf32> to vector<1x128xbf16>
      %69 = vector.broadcast %68 : vector<1x128xbf16> to vector<256x128xbf16>
      %70 = arith.mulf %22, %69 : vector<256x128xbf16>
      %71 = vector.extract_strided_slice %26 {offsets = [0, 1], sizes = [128, 1], strides = [1, 1]} : vector<128x2xf32> to vector<128x1xf32>
      %72 = vector.extract_strided_slice %24 {offsets = [1, 0], sizes = [1, 256], strides = [1, 1]} : vector<2x256xf32> to vector<1x256xf32>
      %73 = vector.broadcast %71 : vector<128x1xf32> to vector<128x256xf32>
      %74 = vector.broadcast %72 : vector<1x256xf32> to vector<128x256xf32>
      %75 = arith.addf %73, %74 : vector<128x256xf32>
      %cst_26 = arith.constant 2.000000e-01 : f32
      %76 = vector.broadcast %cst_26 : f32 to vector<128x256xf32>
      %77 = arith.mulf %76, %75 : vector<128x256xf32>
      %78 = arith.maximumf %75, %77 : vector<128x256xf32>
      %cst_27 = arith.constant 0.000000e+00 : f32
      %79 = vector.broadcast %cst_27 : f32 to vector<128x256xf32>
      %80 = arith.cmpf ogt, %20, %79 : vector<128x256xf32>
      %cst_28 = arith.constant -1.000000e+30 : f32
      %81 = vector.broadcast %cst_28 : f32 to vector<128x256xf32>
      %82 = arith.select %80, %78, %81 : vector<128x256xi1>, vector<128x256xf32>
      %83 = vector.extract_strided_slice %27 {offsets = [0, 1], sizes = [128, 1], strides = [1, 1]} : vector<128x2xf32> to vector<128x1xf32>
      %cst_29 = arith.constant dense<0xFF800000> : vector<128xf32>
      %84 = vector.multi_reduction <maximumf>, %82, %cst_29 [1] : vector<128x256xf32> to vector<128xf32>
      %85 = vector.shape_cast %84 : vector<128xf32> to vector<128x1xf32>
      %86 = arith.maximumf %83, %85 : vector<128x1xf32>
      %87 = vector.extract_strided_slice %27 {offsets = [0, 1], sizes = [128, 1], strides = [1, 1]} : vector<128x2xf32> to vector<128x1xf32>
      %88 = arith.subf %87, %86 : vector<128x1xf32>
      %89 = math.exp %88 : vector<128x1xf32>
      %90 = vector.broadcast %86 : vector<128x1xf32> to vector<128x256xf32>
      %91 = arith.subf %82, %90 : vector<128x256xf32>
      %92 = math.exp %91 : vector<128x256xf32>
      %93 = arith.mulf %92, %20 : vector<128x256xf32>
      %94 = vector.extract_strided_slice %28 {offsets = [0, 1], sizes = [128, 1], strides = [1, 1]} : vector<128x2xf32> to vector<128x1xf32>
      %95 = arith.mulf %89, %94 : vector<128x1xf32>
      %cst_30 = arith.constant dense<0.000000e+00> : vector<128xf32>
      %96 = vector.multi_reduction <add>, %93, %cst_30 [1] : vector<128x256xf32> to vector<128xf32>
      %97 = vector.shape_cast %96 : vector<128xf32> to vector<128x1xf32>
      %98 = arith.addf %95, %97 : vector<128x1xf32>
      %99 = vector.shape_cast %89 : vector<128x1xf32> to vector<128x1xf32>
      %100 = vector.broadcast %99 : vector<128x1xf32> to vector<128x8xf32>
      %101 = arith.truncf %93 : vector<128x256xf32> to vector<128x256xbf16>
      %c8_i32_31 = arith.constant 8 : i32
      %102 = vector.broadcast %c8_i32_31 : i32 to vector<1x128xi32>
      %103 = arith.cmpi sge, %29, %102 : vector<1x128xi32>
      %c16_i32 = arith.constant 16 : i32
      %104 = vector.broadcast %c16_i32 : i32 to vector<1x128xi32>
      %105 = arith.cmpi slt, %29, %104 : vector<1x128xi32>
      %106 = arith.andi %103, %105 : vector<1x128xi1>
      %107 = arith.extui %106 : vector<1x128xi1> to vector<1x128xi32>
      %108 = arith.sitofp %107 : vector<1x128xi32> to vector<1x128xf32>
      %109 = arith.truncf %108 : vector<1x128xf32> to vector<1x128xbf16>
      %110 = vector.broadcast %109 : vector<1x128xbf16> to vector<256x128xbf16>
      %111 = arith.mulf %22, %110 : vector<256x128xbf16>
      %112 = tpu.concatenate %45, %86 in 1 : vector<128x1xf32>, vector<128x1xf32> -> vector<128x2xf32>
      %c0_32 = arith.constant 0 : index
      %c0_33 = arith.constant 0 : index
      %113 = vector.load %arg11[%c0_32, %c0_33] : memref<128x2xf32, #tpu.memory_space<vmem>>, vector<128x2xf32>
      tpu.vector_store %arg11[%c0_32, %c0_33], %112 {strides = array<i32>} : memref<128x2xf32, #tpu.memory_space<vmem>>, vector<128x2xf32>,
      %114 = tpu.concatenate %57, %98 in 1 : vector<128x1xf32>, vector<128x1xf32> -> vector<128x2xf32>
      %c0_34 = arith.constant 0 : index
      %c0_35 = arith.constant 0 : index
      %115 = vector.load %arg12[%c0_34, %c0_35] : memref<128x2xf32, #tpu.memory_space<vmem>>, vector<128x2xf32>
      tpu.vector_store %arg12[%c0_34, %c0_35], %114 {strides = array<i32>} : memref<128x2xf32, #tpu.memory_space<vmem>>, vector<128x2xf32>,
      %cst_36 = arith.constant 1.000000e+00 : f32
      %116 = vector.broadcast %cst_36 : f32 to vector<128x112xf32>
      %117 = tpu.concatenate %59, %100, %116 in 1 : vector<128x8xf32>, vector<128x8xf32>, vector<128x112xf32> -> vector<128x128xf32>
      %118 = tpu.concatenate %60, %101 in 1 : vector<128x256xbf16>, vector<128x256xbf16> -> vector<128x512xbf16>
      %119 = tpu.concatenate %70, %111 in 0 : vector<256x128xbf16>, vector<256x128xbf16> -> vector<512x128xbf16>
      %c0_37 = arith.constant 0 : index
      %c0_38 = arith.constant 0 : index
      %120 = vector.load %arg13[%c0_37, %c0_38] : memref<128x128xf32, #tpu.memory_space<vmem>>, vector<128x128xf32>
      %121 = arith.mulf %117, %120 : vector<128x128xf32>
      %cst_39 = arith.constant dense<0.000000e+00> : vector<128x128xf32>
      %122 = tpu.matmul %118, %119, %cst_39 {dimension_numbers = #tpu.dot_dimension_numbers<[1], [0], [0], [1], [0, 0, 1, 1], [], []>} : vector<128x512xbf16>, vector<512x128xbf16>, vector<128x128xf32> -> vector<128x128xf32>
      %123 = arith.addf %121, %122 : vector<128x128xf32>
      %c0_40 = arith.constant 0 : index
      %c0_41 = arith.constant 0 : index
      %124 = vector.load %arg13[%c0_40, %c0_41] : memref<128x128xf32, #tpu.memory_space<vmem>>, vector<128x128xf32>
      tpu.vector_store %arg13[%c0_40, %c0_41], %123 {strides = array<i32>} : memref<128x128xf32, #tpu.memory_space<vmem>>, vector<128x128xf32>,
    } else {
    }
    %c1_i32 = arith.constant 1 : i32
    %15 = arith.cmpi eq, %arg2, %c1_i32 : i32
    %16 = arith.extui %15 : i1 to i32
    %c0_i32_5 = arith.constant 0 : i32
    %17 = arith.cmpi ne, %16, %c0_i32_5 : i32
    scf.if %17 {
      %c0 = arith.constant 0 : index
      %c0_6 = arith.constant 0 : index
      %18 = vector.load %arg12[%c0, %c0_6] : memref<128x2xf32, #tpu.memory_space<vmem>>, vector<128x2xf32>
      %cst = arith.constant 9.99999968E-21 : f32
      %19 = vector.broadcast %cst : f32 to vector<128x2xf32>
      %20 = arith.maximumf %18, %19 : vector<128x2xf32>
      %21 = tpu.reciprocal %20 {approx = true} : vector<128x2xf32> -> vector<128x2xf32>
      %22 = vector.extract_strided_slice %21 {offsets = [0, 0], sizes = [128, 1], strides = [1, 1]} : vector<128x2xf32> to vector<128x1xf32>
      %23 = vector.shape_cast %22 : vector<128x1xf32> to vector<128x1xf32>
      %24 = vector.broadcast %23 : vector<128x1xf32> to vector<128x8xf32>
      %25 = vector.extract_strided_slice %21 {offsets = [0, 1], sizes = [128, 1], strides = [1, 1]} : vector<128x2xf32> to vector<128x1xf32>
      %26 = vector.shape_cast %25 : vector<128x1xf32> to vector<128x1xf32>
      %27 = vector.broadcast %26 : vector<128x1xf32> to vector<128x8xf32>
      %cst_7 = arith.constant 0.000000e+00 : f32
      %28 = vector.broadcast %cst_7 : f32 to vector<128x112xf32>
      %29 = tpu.concatenate %24, %27, %28 in 1 : vector<128x8xf32>, vector<128x8xf32>, vector<128x112xf32> -> vector<128x128xf32>
      %c0_8 = arith.constant 0 : index
      %c0_9 = arith.constant 0 : index
      %30 = vector.load %arg10[%c0_8, %c0_9] : memref<128x128xf32, #tpu.memory_space<vmem>>, vector<128x128xf32>
      %c0_10 = arith.constant 0 : index
      %c0_11 = arith.constant 0 : index
      %31 = vector.load %arg13[%c0_10, %c0_11] : memref<128x128xf32, #tpu.memory_space<vmem>>, vector<128x128xf32>
      %32 = arith.mulf %31, %29 : vector<128x128xf32>
      %c0_12 = arith.constant 0 : index
      %c0_13 = arith.constant 0 : index
      %c0_14 = arith.constant 0 : index
      %33 = vector.load %arg9[%c0_12, %c0_13, %c0_14] : memref<1x1x128xf32, #tpu.memory_space<vmem>>, vector<1x1x128xf32>
      %34 = vector.shape_cast %33 : vector<1x1x128xf32> to vector<1x128xf32>
      %35 = vector.broadcast %34 : vector<1x128xf32> to vector<128x128xf32>
      %36 = arith.addf %32, %35 : vector<128x128xf32>
      %37 = arith.addf %30, %36 : vector<128x128xf32>
      %c0_15 = arith.constant 0 : index
      %c0_16 = arith.constant 0 : index
      %38 = vector.load %arg10[%c0_15, %c0_16] : memref<128x128xf32, #tpu.memory_space<vmem>>, vector<128x128xf32>
      tpu.vector_store %arg10[%c0_15, %c0_16], %37 {strides = array<i32>} : memref<128x128xf32, #tpu.memory_space<vmem>>, vector<128x128xf32>,
    } else {
    }
    return
  }
  func.func @transform_0(%arg0: i32, %arg1: i32, %arg2: i32, %arg3: memref<12xi32, #tpu.memory_space<smem>>, %arg4: memref<6xi32, #tpu.memory_space<smem>>) -> (i32, i32, i32) {
    %c2_i32 = arith.constant 2 : i32
    %0 = arith.muli %arg0, %c2_i32 : i32
    %1 = arith.addi %0, %arg1 : i32
    %c2_i32_0 = arith.constant 2 : i32
    %2 = arith.muli %1, %c2_i32_0 : i32
    %3 = arith.addi %2, %arg2 : i32
    %4 = arith.index_cast %3 : i32 to index
    %5 = memref.load %arg3[%4] : memref<12xi32, #tpu.memory_space<smem>>
    %c0_i32 = arith.constant 0 : i32
    %c0_i32_1 = arith.constant 0 : i32
    return %arg1, %5, %c0_i32 : i32, i32, i32
  }
  func.func @transform_1(%arg0: i32, %arg1: i32, %arg2: i32, %arg3: memref<12xi32, #tpu.memory_space<smem>>, %arg4: memref<6xi32, #tpu.memory_space<smem>>) -> (i32, i32, i32) {
    %c0_i32 = arith.constant 0 : i32
    %c0_i32_0 = arith.constant 0 : i32
    return %arg1, %arg0, %c0_i32 : i32, i32, i32
  }
  func.func @transform_2(%arg0: i32, %arg1: i32, %arg2: i32, %arg3: memref<12xi32, #tpu.memory_space<smem>>, %arg4: memref<6xi32, #tpu.memory_space<smem>>) -> (i32, i32, i32) {
    %c2_i32 = arith.constant 2 : i32
    %0 = arith.muli %arg0, %c2_i32 : i32
    %1 = arith.addi %0, %arg1 : i32
    %c2_i32_0 = arith.constant 2 : i32
    %2 = arith.muli %1, %c2_i32_0 : i32
    %3 = arith.addi %2, %arg2 : i32
    %4 = arith.index_cast %3 : i32 to index
    %5 = memref.load %arg3[%4] : memref<12xi32, #tpu.memory_space<smem>>
    %c0_i32 = arith.constant 0 : i32
    %c0_i32_1 = arith.constant 0 : i32
    return %arg1, %c0_i32, %5 : i32, i32, i32
  }
  func.func @transform_3(%arg0: i32, %arg1: i32, %arg2: i32, %arg3: memref<12xi32, #tpu.memory_space<smem>>, %arg4: memref<6xi32, #tpu.memory_space<smem>>) -> (i32, i32, i32) {
    %c2_i32 = arith.constant 2 : i32
    %0 = arith.muli %arg0, %c2_i32 : i32
    %1 = arith.addi %0, %arg1 : i32
    %c2_i32_0 = arith.constant 2 : i32
    %2 = arith.muli %1, %c2_i32_0 : i32
    %3 = arith.addi %2, %arg2 : i32
    %4 = arith.index_cast %3 : i32 to index
    %5 = memref.load %arg3[%4] : memref<12xi32, #tpu.memory_space<smem>>
    %c0_i32 = arith.constant 0 : i32
    return %arg1, %arg0, %5 : i32, i32, i32
  }
  func.func @transform_4(%arg0: i32, %arg1: i32, %arg2: i32, %arg3: memref<12xi32, #tpu.memory_space<smem>>, %arg4: memref<6xi32, #tpu.memory_space<smem>>) -> (i32, i32, i32) {
    %c0_i32 = arith.constant 0 : i32
    %c0_i32_0 = arith.constant 0 : i32
    %c0_i32_1 = arith.constant 0 : i32
    return %arg1, %c0_i32, %c0_i32_0 : i32, i32, i32
  }
  func.func @transform_5(%arg0: i32, %arg1: i32, %arg2: i32, %arg3: memref<12xi32, #tpu.memory_space<smem>>, %arg4: memref<6xi32, #tpu.memory_space<smem>>) -> (i32, i32) {
    %c0_i32 = arith.constant 0 : i32
    %c0_i32_0 = arith.constant 0 : i32
    return %arg0, %c0_i32 : i32, i32
  }
}

</mosaic_0001>

<llo_original>
// kernel: tpu_custom_call.1
$region0: #{tpu_custom_call.1}
  #allocation0 [shape = 'u32[]', space=smem, size = 0x4, offset = 0x4, fixed_abs, tag = 'smem constant byte address 0x4 - core index']
  #allocation1 [shape = 'u32[144,128]{1,0:T(1,128)}', space=vmem, size = 0x12000, scoped, tag = 'internal scratch']
  #allocation2 [shape = 'f32[128,2]{1,0:T(8,128)}', space=vmem, size = 0x10000, scoped, tag = 'scratch operand']
  #allocation3 [shape = 'f32[128,2]{1,0:T(8,128)}', space=vmem, size = 0x10000, scoped, tag = 'scratch operand']
  #allocation4 [shape = 'f32[128,128]{1,0:T(8,128)}', space=vmem, size = 0x10000, scoped, tag = 'scratch operand']
  #allocation5 [shape = 's32[1]{0}', space=sflag, size = 0x4, scoped, tag = 'scoped memory for tpu_custom_call.1']
  #allocation6 [shape = 'u8[512]{0}', space=smem, size = 0x200, scoped, tag = 'prefetched SMEM operand 0']
  #allocation7 [shape = 'u8[512]{0}', space=smem, size = 0x200, scoped, tag = 'prefetched SMEM operand 1']
  %s0 = inlined_call_operand.vmem [shape: s32[12], index: 0, kind: input, shape index: {}]
  %s1 = inlined_call_operand.vmem [shape: s32[6], index: 1, kind: input, shape index: {}]
  %s2 = inlined_call_operand.hbm [shape: bf16[2,512,128], index: 2, kind: input, shape index: {}]
  %s3 = inlined_call_operand.vmem [shape: f32[2,384,2], index: 3, kind: input, shape index: {}]
  %s4 = inlined_call_operand.vmem [shape: f32[2,2,512], index: 4, kind: input, shape index: {}]
  %s5 = inlined_call_operand.vmem [shape: s8[2,384,512], index: 5, kind: input, shape index: {}]
  %s6 = inlined_call_operand.vmem [shape: f32[2,1,128], index: 6, kind: input, shape index: {}]
  %s7 = inlined_call_operand.hbm [shape: f32[384,128], index: 7, kind: output, shape index: {}]
  %s8 = sld [smem:[#allocation0]]
  $region96: #{tpu_custom_call.1} parent=0
    _
  %s10 = ssub.s32 1, %s8
  %s11 = scalar_select 0, %s10, %s8
  %s12 = sshll.u32 %s0, 4
  %s13 = int_to_ptr.vmem [resolvable:$true] %s12
  %15 = dma.vmem_to_smem %s13, 16, [#allocation6], [#allocation5]
  %s16 = sshll.u32 %s1, 4
  %s17 = int_to_ptr.vmem [resolvable:$true] %s16
  %19 = dma.vmem_to_smem %s17, 16, [#allocation7], [#allocation5]
  %20 = dma.done [#allocation5], 32
  %21 = sfence
  $region1: #{tpu_custom_call.1} parent=0
    #allocation8 [shape = 'u8[131072]{0}', space=vmem, size = 0x20000, scoped, tag = 'input window, operand 2']
    #allocation9 [shape = 's32[2]{0}', space=sflag, size = 0x8, scoped, tag = 'scoped memory for tpu_custom_call.1']
    #allocation10 [shape = 's32[2]{0}', space=sflag, size = 0x8, scoped, tag = 'scoped memory for tpu_custom_call.1']
    #allocation11 [shape = 'u8[65536]{0}', space=vmem, size = 0x10000, scoped, tag = 'input window, operand 5']
    #allocation12 [shape = 'u8[131072]{0}', space=vmem, size = 0x20000, scoped, tag = 'output window, operand 0']
    %22 = vsyncpa [#allocation9], 0
    %s23 = scalar_lea.sflag [#allocation9], 1
    %24 = vsyncpa %s23, 0
    %25 = vsyncpa [#allocation10], 0
    %s26 = scalar_lea.sflag [#allocation10], 1
    %27 = vsyncpa %s26, 0
    loop: start=0, step=1, limit=14
    $region2: #{tpu_custom_call.1} parent=1 // loop_pre_header
      _
    $region3: #{tpu_custom_call.1} parent=1 // loop_header
      %s29 = sphi 0, %s33
      %p30 = scmp.ge.s32.totalorder %s29, 14
      %s36 = sphi 0, %s55
      %s37 = sphi 0, %s51
      %s38 = sphi 0, %s47
      %s39 = sphi 0, %s36
      %s40 = sphi 0, %s37
      %s41 = sphi 0, %s38
      %s42 = sphi 0, %s39
      %s43 = sphi 0, %s40
      %s44 = sphi 0, %s41
      %s70 = sphi 0, %s72
      %s73 = sphi 0, %s70
      %s74 = sphi 0, %s73
      %s90 = sphi 0, %s74
      %s98 = sphi 0, %s100
      %s101 = sphi 0, %s98
      %s102 = sphi 0, %s101
      %s118 = sphi 0, %s102
      %s136 = sphi 0, %s138
      %s139 = sphi 0, %s136
      %s140 = sphi 0, %s139
      %s156 = sphi 0, %s140
      %s176 = sphi 0, %s178
      %s179 = sphi 0, %s176
      %s180 = sphi 0, %s179
      %s196 = sphi 0, %s180
      %s202 = sphi 0, %s204
      %s205 = sphi 0, %s202
      %s206 = sphi 0, %s205
      %s222 = sphi 0, %s206
      %s228 = sphi 0, %s230
      %s231 = sphi 0, %s228
      %s232 = sphi 0, %s231
      %s248 = sphi 0, %s232
    $region4: #{tpu_custom_call.1} parent=1 // loop_header_branch
      %32 = sbr.rel (%p30) target = $region8
    $region5: #{tpu_custom_call.1} parent=1 // loop_body
      %s34 = ssub.s32 %s29, 1
      %s35 = ssub.s32 %s29, 2
      %s45 = sadd.s32 1, %s38
      %p46 = scmp.ge.s32.totalorder %s45, 2
      %s47 = scalar_select %p46, 0, %s45
      %s48 = sadd.s32 1, %s37
      %s49 = scalar_select %p46, %s48, %s37
      %p50 = scmp.ge.s32.totalorder %s49, 2
      %s51 = scalar_select %p50, 0, %s49
      %s52 = sadd.s32 1, %s36
      %s53 = scalar_select %p50, %s52, %s36
      %p54 = scmp.ge.s32.totalorder %s53, 3
      %s55 = scalar_select %p54, 0, %s53
      %s56 = smul.u32 %s36, 2
      %s57 = sadd.s32 %s56, %s37
      %s58 = smul.u32 %s57, 2
      %s59 = sadd.s32 %s58, %s38
      %s60 = sld [smem:[#allocation6 + %s59]]
      %s61 = smul.u32 %s55, 2
      %s62 = sadd.s32 %s61, %s51
      %s63 = smul.u32 %s62, 2
      %s64 = sadd.s32 %s63, %s47
      %s65 = sld [smem:[#allocation6 + %s64]]
      %s66 = ssub.s32 %s37, %s51
      %s67 = ssub.s32 %s60, %s65
      %s68 = sor.u32 %s66, %s67
      %p69 = scmp.eq.s32.totalorder %s68, 0
      %s71 = sadd.s32 %s70, 1
      %s72 = scalar_select %p69, %s70, %s71
      %p75 = pneg %p69
      %p76 = scmp.eq.s32.totalorder %s29, 11
      %p77 = por %p75, %p76
      %p78 = scmp.ne.s32.totalorder %s70, %s73
      %p79 = scmp.eq.s32.totalorder %s29, 0
      %p80 = por %p78, %p79
      %p81 = scmp.ne.s32.totalorder %s70, %s73
      %p82 = scmp.eq.s32.totalorder %s34, 11
      %p83 = por %p81, %p82
      %p84 = scmp.ne.s32.totalorder %s73, %s74
      %p85 = scmp.eq.s32.totalorder %s34, 0
      %p86 = por %p84, %p85
      %p87 = scmp.ne.s32.totalorder %s73, %s74
      %p88 = scmp.eq.s32.totalorder %s35, 11
      %p89 = por %p87, %p88
      %p91 = scmp.ne.s32.totalorder %s74, %s90
      %p92 = scmp.eq.s32.totalorder %s35, 0
      %p93 = por %p91, %p92
      %s94 = ssub.s32 %s37, %s51
      %s95 = ssub.s32 %s36, %s55
      %s96 = sor.u32 %s94, %s95
      %p97 = scmp.eq.s32.totalorder %s96, 0
      %s99 = sadd.s32 %s98, 1
      %s100 = scalar_select %p97, %s98, %s99
      %p103 = pneg %p97
      %p104 = scmp.eq.s32.totalorder %s29, 11
      %p105 = por %p103, %p104
      %p106 = scmp.ne.s32.totalorder %s98, %s101
      %p107 = scmp.eq.s32.totalorder %s29, 0
      %p108 = por %p106, %p107
      %p109 = scmp.ne.s32.totalorder %s98, %s101
      %p110 = scmp.eq.s32.totalorder %s34, 11
      %p111 = por %p109, %p110
      %p112 = scmp.ne.s32.totalorder %s101, %s102
      %p113 = scmp.eq.s32.totalorder %s34, 0
      %p114 = por %p112, %p113
      %p115 = scmp.ne.s32.totalorder %s101, %s102
      %p116 = scmp.eq.s32.totalorder %s35, 11
      %p117 = por %p115, %p116
      %p119 = scmp.ne.s32.totalorder %s102, %s118
      %p120 = scmp.eq.s32.totalorder %s35, 0
      %p121 = por %p119, %p120
      %s122 = smul.u32 %s36, 2
      %s123 = sadd.s32 %s122, %s37
      %s124 = smul.u32 %s123, 2
      %s125 = sadd.s32 %s124, %s38
      %s126 = sld [smem:[#allocation6 + %s125]]
      %s127 = smul.u32 %s55, 2
      %s128 = sadd.s32 %s127, %s51
      %s129 = smul.u32 %s128, 2
      %s130 = sadd.s32 %s129, %s47
      %s131 = sld [smem:[#allocation6 + %s130]]
      %s132 = ssub.s32 %s37, %s51
      %s133 = ssub.s32 %s126, %s131
      %s134 = sor.u32 %s132, %s133
      %p135 = scmp.eq.s32.totalorder %s134, 0
      %s137 = sadd.s32 %s136, 1
      %s138 = scalar_select %p135, %s136, %s137
      %p141 = pneg %p135
      %p142 = scmp.eq.s32.totalorder %s29, 11
      %p143 = por %p141, %p142
      %p144 = scmp.ne.s32.totalorder %s136, %s139
      %p145 = scmp.eq.s32.totalorder %s29, 0
      %p146 = por %p144, %p145
      %p147 = scmp.ne.s32.totalorder %s136, %s139
      %p148 = scmp.eq.s32.totalorder %s34, 11
      %p149 = por %p147, %p148
      %p150 = scmp.ne.s32.totalorder %s139, %s140
      %p151 = scmp.eq.s32.totalorder %s34, 0
      %p152 = por %p150, %p151
      %p153 = scmp.ne.s32.totalorder %s139, %s140
      %p154 = scmp.eq.s32.totalorder %s35, 11
      %p155 = por %p153, %p154
      %p157 = scmp.ne.s32.totalorder %s140, %s156
      %p158 = scmp.eq.s32.totalorder %s35, 0
      %p159 = por %p157, %p158
      %s160 = smul.u32 %s36, 2
      %s161 = sadd.s32 %s160, %s37
      %s162 = smul.u32 %s161, 2
      %s163 = sadd.s32 %s162, %s38
      %s164 = sld [smem:[#allocation6 + %s163]]
      %s165 = smul.u32 %s55, 2
      %s166 = sadd.s32 %s165, %s51
      %s167 = smul.u32 %s166, 2
      %s168 = sadd.s32 %s167, %s47
      %s169 = sld [smem:[#allocation6 + %s168]]
      %s170 = ssub.s32 %s37, %s51
      %s171 = ssub.s32 %s36, %s55
      %s172 = sor.u32 %s170, %s171
      %s173 = ssub.s32 %s164, %s169
      %s174 = sor.u32 %s172, %s173
      %p175 = scmp.eq.s32.totalorder %s174, 0
      %s177 = sadd.s32 %s176, 1
      %s178 = scalar_select %p175, %s176, %s177
      %p181 = pneg %p175
      %p182 = scmp.eq.s32.totalorder %s29, 11
      %p183 = por %p181, %p182
      %p184 = scmp.ne.s32.totalorder %s176, %s179
      %p185 = scmp.eq.s32.totalorder %s29, 0
      %p186 = por %p184, %p185
      %p187 = scmp.ne.s32.totalorder %s176, %s179
      %p188 = scmp.eq.s32.totalorder %s34, 11
      %p189 = por %p187, %p188
      %p190 = scmp.ne.s32.totalorder %s179, %s180
      %p191 = scmp.eq.s32.totalorder %s34, 0
      %p192 = por %p190, %p191
      %p193 = scmp.ne.s32.totalorder %s179, %s180
      %p194 = scmp.eq.s32.totalorder %s35, 11
      %p195 = por %p193, %p194
      %p197 = scmp.ne.s32.totalorder %s180, %s196
      %p198 = scmp.eq.s32.totalorder %s35, 0
      %p199 = por %p197, %p198
      %s200 = ssub.s32 %s37, %s51
      %p201 = scmp.eq.s32.totalorder %s200, 0
      %s203 = sadd.s32 %s202, 1
      %s204 = scalar_select %p201, %s202, %s203
      %p207 = pneg %p201
      %p208 = scmp.eq.s32.totalorder %s29, 11
      %p209 = por %p207, %p208
      %p210 = scmp.ne.s32.totalorder %s202, %s205
      %p211 = scmp.eq.s32.totalorder %s29, 0
      %p212 = por %p210, %p211
      %p213 = scmp.ne.s32.totalorder %s202, %s205
      %p214 = scmp.eq.s32.totalorder %s34, 11
      %p215 = por %p213, %p214
      %p216 = scmp.ne.s32.totalorder %s205, %s206
      %p217 = scmp.eq.s32.totalorder %s34, 0
      %p218 = por %p216, %p217
      %p219 = scmp.ne.s32.totalorder %s205, %s206
      %p220 = scmp.eq.s32.totalorder %s35, 11
      %p221 = por %p219, %p220
      %p223 = scmp.ne.s32.totalorder %s206, %s222
      %p224 = scmp.eq.s32.totalorder %s35, 0
      %p225 = por %p223, %p224
      %s226 = ssub.s32 %s36, %s55
      %p227 = scmp.eq.s32.totalorder %s226, 0
      %s229 = sadd.s32 %s228, 1
      %s230 = scalar_select %p227, %s228, %s229
      %p233 = pneg %p227
      %p234 = scmp.eq.s32.totalorder %s29, 11
      %p235 = por %p233, %p234
      %p236 = scmp.ne.s32.totalorder %s228, %s231
      %p237 = scmp.eq.s32.totalorder %s29, 0
      %p238 = por %p236, %p237
      %p239 = scmp.ne.s32.totalorder %s228, %s231
      %p240 = scmp.eq.s32.totalorder %s34, 11
      %p241 = por %p239, %p240
      %p242 = scmp.ne.s32.totalorder %s231, %s232
      %p243 = scmp.eq.s32.totalorder %s34, 0
      %p244 = por %p242, %p243
      %p245 = scmp.ne.s32.totalorder %s231, %s232
      %p246 = scmp.eq.s32.totalorder %s35, 11
      %p247 = por %p245, %p246
      %p249 = scmp.ne.s32.totalorder %s232, %s248
      %p250 = scmp.eq.s32.totalorder %s35, 0
      %p251 = por %p249, %p250
      %p252 = scmp.le.s32.totalorder 1, %s29
      %p253 = scmp.lt.s32.totalorder %s29, 13
      %p254 = pnand %p252, %p253
      %p255 = pneg %p254
      // Predicated region
      $region9: #{tpu_custom_call.1} parent=5 // pred_check
        _
      $region10: #{tpu_custom_call.1} parent=5 // pred_check_branch
        %257 = sbr.rel (%p254) target = $region12
      $region11: #{tpu_custom_call.1} parent=5 // pred_region
        %s258 = ssub.s32 %s29, 1
      $region12: #{tpu_custom_call.1} parent=5 // pred_fallthru
        _
      %p259 = scmp.lt.s32.totalorder %s29, 12
      // Predicated region
      $region13: #{tpu_custom_call.1} parent=5 // pred_check
        %p260 = pneg %p259
      $region14: #{tpu_custom_call.1} parent=5 // pred_check_branch
        %262 = sbr.rel (%p260) target = $region16
      $region15: #{tpu_custom_call.1} parent=5 // pred_region
        // Predicated region
        $region17: #{tpu_custom_call.1} parent=15 // pred_check
          %p263 = pneg %p80
        $region18: #{tpu_custom_call.1} parent=15 // pred_check_branch
          %265 = sbr.rel (%p263) target = $region20
        $region19: #{tpu_custom_call.1} parent=15 // pred_region
          %s266 = sand.u32 %s70, 1
          %s267 = scalar_lea.sflag [#allocation9], %s266
          %s268 = sand.u32 %s70, 1
          %s269 = smul.addr %s268, 128
          %s270 = scalar_lea.vmem [#allocation8], %s269
          %s271 = smul.u32 %s36, 2
          %s272 = sadd.s32 %s271, %s37
          %s273 = smul.u32 %s272, 2
          %s274 = sadd.s32 %s273, %s38
          %s275 = sld [smem:[#allocation6 + %s274]]
          %s276 = smul.u32 32, %s275
          %s278 = ssub.s32 2048, 2048
          %279 = vsyncadd %s267, %s278
          %s280 = smul.addr %s37, 64
          %s281 = sadd.s32 %s276, %s280
          %s282 = smul.addr %s281, 64
          %s283 = scalar_lea.hbm %s2, %s282
          %s284 = sshll.u32 %s270, 4
          %s285 = int_to_ptr.vmem [resolvable:$true] %s284
          %290 = dma.hbm_to_vmem [thread:$0]  %s283, 2048, %s285, %s267, 64, 64, 4
        $region20: #{tpu_custom_call.1} parent=15 // pred_fallthru
          _
        // Predicated region
        $region21: #{tpu_custom_call.1} parent=15 // pred_check
          %p291 = pneg %p108
        $region22: #{tpu_custom_call.1} parent=15 // pred_check_branch
          %293 = sbr.rel (%p291) target = $region24
        $region23: #{tpu_custom_call.1} parent=15 // pred_region
          %s294 = smul.u32 16, %s36
          %p295 = scmp.lt.s32.totalorder %s37, 1
          %s296 = scalar_select %p295, %s37, 1
          %p297 = scmp.lt.s32.totalorder %s294, 47
          %s298 = scalar_select %p297, %s294, 47
          %s299 = smul.addr %s296, 48
          %s300 = sadd.s32 %s298, %s299
          %s301 = smul.addr %s300, 8
          %s302 = scalar_lea.vmem %s3, %s301
          %s303 = smul.u32 16, %s36
        $region24: #{tpu_custom_call.1} parent=15 // pred_fallthru
          _
        // Predicated region
        $region25: #{tpu_custom_call.1} parent=15 // pred_check
          %p304 = pneg %p146
        $region26: #{tpu_custom_call.1} parent=15 // pred_check_branch
          %306 = sbr.rel (%p304) target = $region28
        $region27: #{tpu_custom_call.1} parent=15 // pred_region
          %s307 = smul.u32 %s36, 2
          %s308 = sadd.s32 %s307, %s37
          %s309 = smul.u32 %s308, 2
          %s310 = sadd.s32 %s309, %s38
          %s311 = sld [smem:[#allocation6 + %s310]]
          %s312 = smul.u32 2, %s311
          %p313 = scmp.lt.s32.totalorder %s37, 1
          %s314 = scalar_select %p313, %s37, 1
          %p315 = scmp.lt.s32.totalorder %s312, 3
          %s316 = scalar_select %p315, %s312, 3
          %s317 = smul.addr %s314, 4
          %s318 = sadd.s32 %s316, %s317
          %s319 = smul.addr %s318, 2
          %s320 = scalar_lea.vmem %s4, %s319
          %s321 = smul.u32 %s36, 2
          %s322 = sadd.s32 %s321, %s37
          %s323 = smul.u32 %s322, 2
          %s324 = sadd.s32 %s323, %s38
          %s325 = sld [smem:[#allocation6 + %s324]]
          %s326 = smul.u32 2, %s325
        $region28: #{tpu_custom_call.1} parent=15 // pred_fallthru
          _
        // Predicated region
        $region29: #{tpu_custom_call.1} parent=15 // pred_check
          %p327 = pneg %p186
        $region30: #{tpu_custom_call.1} parent=15 // pred_check_branch
          %329 = sbr.rel (%p327) target = $region32
        $region31: #{tpu_custom_call.1} parent=15 // pred_region
          %s330 = sand.u32 %s176, 1
          %s331 = sand.u32 %s176, 1
          %s332 = smul.addr %s331, 64
          %s333 = scalar_lea.vmem [#allocation11], %s332
          %s334 = smul.u32 %s36, 2
          %s335 = sadd.s32 %s334, %s37
          %s336 = smul.u32 %s335, 2
          %s337 = sadd.s32 %s336, %s38
          %s338 = sld [smem:[#allocation6 + %s337]]
          %s339 = smul.u32 4, %s36
          %s340 = smul.u32 2, %s338
          %s341 = smul.addr %s339, 4
          %s342 = sadd.s32 %s340, %s341
          %s343 = smul.addr %s37, 48
          %s344 = sadd.s32 %s342, %s343
          %s345 = smul.addr %s344, 8
          %s346 = scalar_lea.vmem %s5, %s345
          // Predicated region
          $region33: #{tpu_custom_call.1} parent=31 // pred_check
            _
          $region34: #{tpu_custom_call.1} parent=31 // pred_check_branch
            %348 = sbr.rel (0) target = $region36
          $region35: #{tpu_custom_call.1} parent=31 // pred_region
            // Predicated region
            $region37: #{tpu_custom_call.1} parent=35 // pred_check
              _
            $region38: #{tpu_custom_call.1} parent=35 // pred_check_branch
              %350 = sbr.rel (0) target = $region40
            $region39: #{tpu_custom_call.1} parent=35 // pred_region
              loop: start=0, step=1, limit=1
              $region41: #{tpu_custom_call.1} parent=39 // loop_pre_header
                _
              $region42: #{tpu_custom_call.1} parent=39 // loop_header
                %s352 = sphi 0, %s356
                %p353 = scmp.ge.s32.totalorder %s352, 1
                %s357 = sphi %s346, %s346
                %s358 = sphi %s333, %s333
              $region43: #{tpu_custom_call.1} parent=39 // loop_header_branch
                %355 = sbr.rel (%p353) target = $region47
              $region44: #{tpu_custom_call.1} parent=39 // loop_body
                %v359 = vld [vmem:[%s357] sm:$0xff]
                %360 = vst [vmem:[%s358] sm:$0xff] %v359
                %v361 = vld [vmem:[%s357 + $0x8] sm:$0xff]
                %362 = vst [vmem:[%s358 + $0x8] sm:$0xff] %v361
                %v363 = vld [vmem:[%s357 + $0x20] sm:$0xff]
                %364 = vst [vmem:[%s358 + $0x10] sm:$0xff] %v363
                %v365 = vld [vmem:[%s357 + $0x28] sm:$0xff]
                %366 = vst [vmem:[%s358 + $0x18] sm:$0xff] %v365
                %v367 = vld [vmem:[%s357 + $0x40] sm:$0xff]
                %368 = vst [vmem:[%s358 + $0x20] sm:$0xff] %v367
                %v369 = vld [vmem:[%s357 + $0x48] sm:$0xff]
                %370 = vst [vmem:[%s358 + $0x28] sm:$0xff] %v369
                %v371 = vld [vmem:[%s357 + $0x60] sm:$0xff]
                %372 = vst [vmem:[%s358 + $0x30] sm:$0xff] %v371
                %v373 = vld [vmem:[%s357 + $0x68] sm:$0xff]
                %374 = vst [vmem:[%s358 + $0x38] sm:$0xff] %v373
              $region45: #{tpu_custom_call.1} parent=39 // loop_footer
                %s356 = sadd.s32 1, %s352
              $region46: #{tpu_custom_call.1} parent=39 // loop_footer_branch
                %351 = sbr.rel target = $region42
              $region47: #{tpu_custom_call.1} parent=39 // loop_exit
                _
            $region40: #{tpu_custom_call.1} parent=35 // pred_fallthru
              _
            // Predicated region
            $region48: #{tpu_custom_call.1} parent=35 // pred_check
              _
            $region49: #{tpu_custom_call.1} parent=35 // pred_check_branch
              %376 = sbr.rel target = $region51
            $region50: #{tpu_custom_call.1} parent=35 // pred_region
              _
            $region51: #{tpu_custom_call.1} parent=35 // pred_fallthru
              _
          $region36: #{tpu_custom_call.1} parent=31 // pred_fallthru
            _
          %377 = vnop
        $region32: #{tpu_custom_call.1} parent=15 // pred_fallthru
          _
        // Predicated region
        $region52: #{tpu_custom_call.1} parent=15 // pred_check
          %p378 = pneg %p212
        $region53: #{tpu_custom_call.1} parent=15 // pred_check_branch
          %380 = sbr.rel (%p378) target = $region55
        $region54: #{tpu_custom_call.1} parent=15 // pred_region
          %p381 = scmp.lt.s32.totalorder %s37, 1
          %s382 = scalar_select %p381, %s37, 1
          %s383 = scalar_lea.vmem %s6, %s382
        $region55: #{tpu_custom_call.1} parent=15 // pred_fallthru
          _
      $region16: #{tpu_custom_call.1} parent=5 // pred_fallthru
        _
      %p384 = scmp.le.s32.totalorder 1, %s29
      %p385 = scmp.lt.s32.totalorder %s29, 13
      %p386 = pnand %p384, %p385
      %p387 = pneg %p386
      // Predicated region
      $region56: #{tpu_custom_call.1} parent=5 // pred_check
        _
      $region57: #{tpu_custom_call.1} parent=5 // pred_check_branch
        %389 = sbr.rel (%p386) target = $region59
      $region58: #{tpu_custom_call.1} parent=5 // pred_region
        %s390 = ssub.s32 %s29, 1
        %s391 = sand.u32 %s73, 1
        %s392 = scalar_lea.sflag [#allocation9], %s391
        %s393 = sand.u32 %s73, 1
        %s394 = smul.addr %s393, 128
        %s395 = scalar_lea.vmem [#allocation8], %s394
        // Predicated region
        $region60: #{tpu_custom_call.1} parent=58 // pred_check
          %p396 = pneg %p86
        $region61: #{tpu_custom_call.1} parent=58 // pred_check_branch
          %398 = sbr.rel (%p396) target = $region63
        $region62: #{tpu_custom_call.1} parent=58 // pred_region
          %399 = dma.done %s392, 2048
        $region63: #{tpu_custom_call.1} parent=58 // pred_fallthru
          _
        %s400 = sand.u32 %s179, 1
        %s401 = sand.u32 %s179, 1
        %s402 = smul.addr %s401, 64
        %s403 = scalar_lea.vmem [#allocation11], %s402
        // Predicated region
        $region64: #{tpu_custom_call.1} parent=58 // pred_check
          %p404 = pneg %p192
        $region65: #{tpu_custom_call.1} parent=58 // pred_check_branch
          %406 = sbr.rel (%p404) target = $region67
        $region66: #{tpu_custom_call.1} parent=58 // pred_region
          _
        $region67: #{tpu_custom_call.1} parent=58 // pred_fallthru
          _
        %s407 = sand.u32 %s73, 1
        %s408 = scalar_lea.sflag [#allocation9], %s407
        %s409 = sand.u32 %s73, 1
        %s410 = smul.addr %s409, 128
        %s411 = scalar_lea.vmem [#allocation8], %s410
        %p412 = pneg %p86
        %p413 = pneg %p83
        %s414 = smul.u32 16, %s39
        %p415 = scmp.lt.s32.totalorder %s40, 1
        %s416 = scalar_select %p415, %s40, 1
        %p417 = scmp.lt.s32.totalorder %s414, 47
        %s418 = scalar_select %p417, %s414, 47
        %s419 = smul.addr %s416, 48
        %s420 = sadd.s32 %s418, %s419
        %s421 = smul.addr %s420, 8
        %s422 = scalar_lea.vmem %s3, %s421
        %p423 = pneg %p114
        %p424 = pneg %p111
        %s425 = smul.u32 %s39, 2
        %s426 = sadd.s32 %s425, %s40
        %s427 = smul.u32 %s426, 2
        %s428 = sadd.s32 %s427, %s41
        %s429 = sld [smem:[#allocation6 + %s428]]
        %s430 = smul.u32 2, %s429
        %p431 = scmp.lt.s32.totalorder %s40, 1
        %s432 = scalar_select %p431, %s40, 1
        %p433 = scmp.lt.s32.totalorder %s430, 3
        %s434 = scalar_select %p433, %s430, 3
        %s435 = smul.addr %s432, 4
        %s436 = sadd.s32 %s434, %s435
        %s437 = smul.addr %s436, 2
        %s438 = scalar_lea.vmem %s4, %s437
        %p439 = pneg %p152
        %p440 = pneg %p149
        %s441 = sand.u32 %s179, 1
        %s442 = sand.u32 %s179, 1
        %s443 = smul.addr %s442, 64
        %s444 = scalar_lea.vmem [#allocation11], %s443
        %p445 = pneg %p192
        %p446 = pneg %p189
        %p447 = scmp.lt.s32.totalorder %s40, 1
        %s448 = scalar_select %p447, %s40, 1
        %s449 = scalar_lea.vmem %s6, %s448
        %p450 = pneg %p218
        %p451 = pneg %p215
        %p452 = pneg %p244
        %p453 = pneg %p241
        %s454 = sand.u32 %s231, 1
        %s455 = scalar_lea.sflag [#allocation10], %s454
        %s456 = sand.u32 %s231, 1
        %s457 = smul.addr %s456, 128
        %s458 = scalar_lea.vmem [#allocation12], %s457
        %s459 = smul.u32 %s39, 2
        %s460 = sadd.s32 %s459, %s40
        %s461 = smul.u32 %s460, 2
        %s462 = sadd.s32 %s461, %s41
        %s463 = sld [smem:[#allocation6 + %s462]]
        %s464 = smul.u32 32, %s463
        %s465 = smul.u32 16, %s39
        %p466 = scmp.lt.s32.totalorder %s40, 1
        %s467 = scalar_select %p466, %s40, 1
        %p468 = scmp.lt.s32.totalorder %s465, 47
        %s469 = scalar_select %p468, %s465, 47
        %s470 = smul.addr %s467, 48
        %s471 = sadd.s32 %s469, %s470
        %s472 = smul.addr %s471, 8
        %s473 = scalar_lea.vmem %s3, %s472
        %s474 = smul.u32 16, %s39
        %s475 = smul.u32 %s39, 2
        %s476 = sadd.s32 %s475, %s40
        %s477 = smul.u32 %s476, 2
        %s478 = sadd.s32 %s477, %s41
        %s479 = sld [smem:[#allocation6 + %s478]]
        %s480 = smul.u32 2, %s479
        %p481 = scmp.lt.s32.totalorder %s40, 1
        %s482 = scalar_select %p481, %s40, 1
        %p483 = scmp.lt.s32.totalorder %s480, 3
        %s484 = scalar_select %p483, %s480, 3
        %s485 = smul.addr %s482, 4
        %s486 = sadd.s32 %s484, %s485
        %s487 = smul.addr %s486, 2
        %s488 = scalar_lea.vmem %s4, %s487
        %s489 = smul.u32 %s39, 2
        %s490 = sadd.s32 %s489, %s40
        %s491 = smul.u32 %s490, 2
        %s492 = sadd.s32 %s491, %s41
        %s493 = sld [smem:[#allocation6 + %s492]]
        %s494 = smul.u32 2, %s493
        %s495 = smul.u32 %s39, 2
        %s496 = sadd.s32 %s495, %s40
        %s497 = smul.u32 %s496, 2
        %s498 = sadd.s32 %s497, %s41
        %s499 = sld [smem:[#allocation6 + %s498]]
        %s500 = smul.u32 4, %s39
        %s501 = smul.u32 2, %s499
        %p502 = scmp.lt.s32.totalorder %s40, 1
        %s503 = scalar_select %p502, %s40, 1
        %s504 = scalar_lea.vmem %s6, %s503
        %s505 = smul.u32 16, %s39
        %p507 = scmp.eq.s32.totalorder %s40, 0
        %p508 = scmp.eq.s32.totalorder %s41, 0
        %p509 = pnand %p507, %p508
        %p510 = pneg %p509
        // Predicated region
        $region68: #{tpu_custom_call.1} parent=58 // pred_check
          _
        $region69: #{tpu_custom_call.1} parent=58 // pred_check_branch
          %512 = sbr.rel (%p509) target = $region71
        $region70: #{tpu_custom_call.1} parent=58 // pred_region
          %513 = vst [vmem:[%s458] sm:$0xff] 0.0
          %514 = vst [vmem:[%s458 + $0x8] sm:$0xff] 0.0
          %515 = vst [vmem:[%s458 + $0x10] sm:$0xff] 0.0
          %516 = vst [vmem:[%s458 + $0x18] sm:$0xff] 0.0
          %517 = vst [vmem:[%s458 + $0x20] sm:$0xff] 0.0
          %518 = vst [vmem:[%s458 + $0x28] sm:$0xff] 0.0
          %519 = vst [vmem:[%s458 + $0x30] sm:$0xff] 0.0
          %520 = vst [vmem:[%s458 + $0x38] sm:$0xff] 0.0
          %521 = vst [vmem:[%s458 + $0x40] sm:$0xff] 0.0
          %522 = vst [vmem:[%s458 + $0x48] sm:$0xff] 0.0
          %523 = vst [vmem:[%s458 + $0x50] sm:$0xff] 0.0
          %524 = vst [vmem:[%s458 + $0x58] sm:$0xff] 0.0
          %525 = vst [vmem:[%s458 + $0x60] sm:$0xff] 0.0
          %526 = vst [vmem:[%s458 + $0x68] sm:$0xff] 0.0
          %527 = vst [vmem:[%s458 + $0x70] sm:$0xff] 0.0
          %528 = vst [vmem:[%s458 + $0x78] sm:$0xff] 0.0
        $region71: #{tpu_custom_call.1} parent=58 // pred_fallthru
          _
        // Predicated region
        $region72: #{tpu_custom_call.1} parent=58 // pred_check
          %p529 = pneg %p508
        $region73: #{tpu_custom_call.1} parent=58 // pred_check_branch
          %531 = sbr.rel (%p529) target = $region75
        $region74: #{tpu_custom_call.1} parent=58 // pred_region
          %vm532 = vcmask 15360
          %533 = vst.msk [vmem:[#allocation2] sm:$0xff] %vm532, -1e+30
          %534 = vst.msk [vmem:[#allocation2 + $0x8] sm:$0xff] %vm532, -1e+30
          %535 = vst.msk [vmem:[#allocation2 + $0x10] sm:$0xff] %vm532, -1e+30
          %536 = vst.msk [vmem:[#allocation2 + $0x18] sm:$0xff] %vm532, -1e+30
          %537 = vst.msk [vmem:[#allocation2 + $0x20] sm:$0xff] %vm532, -1e+30
          %538 = vst.msk [vmem:[#allocation2 + $0x28] sm:$0xff] %vm532, -1e+30
          %539 = vst.msk [vmem:[#allocation2 + $0x30] sm:$0xff] %vm532, -1e+30
          %540 = vst.msk [vmem:[#allocation2 + $0x38] sm:$0xff] %vm532, -1e+30
          %541 = vst.msk [vmem:[#allocation2 + $0x40] sm:$0xff] %vm532, -1e+30
          %542 = vst.msk [vmem:[#allocation2 + $0x48] sm:$0xff] %vm532, -1e+30
          %543 = vst.msk [vmem:[#allocation2 + $0x50] sm:$0xff] %vm532, -1e+30
          %544 = vst.msk [vmem:[#allocation2 + $0x58] sm:$0xff] %vm532, -1e+30
          %545 = vst.msk [vmem:[#allocation2 + $0x60] sm:$0xff] %vm532, -1e+30
          %546 = vst.msk [vmem:[#allocation2 + $0x68] sm:$0xff] %vm532, -1e+30
          %547 = vst.msk [vmem:[#allocation2 + $0x70] sm:$0xff] %vm532, -1e+30
          %548 = vst.msk [vmem:[#allocation2 + $0x78] sm:$0xff] %vm532, -1e+30
          %549 = vst.msk [vmem:[#allocation3] sm:$0xff] %vm532, 0.0
          %550 = vst.msk [vmem:[#allocation3 + $0x8] sm:$0xff] %vm532, 0.0
          %551 = vst.msk [vmem:[#allocation3 + $0x10] sm:$0xff] %vm532, 0.0
          %552 = vst.msk [vmem:[#allocation3 + $0x18] sm:$0xff] %vm532, 0.0
          %553 = vst.msk [vmem:[#allocation3 + $0x20] sm:$0xff] %vm532, 0.0
          %554 = vst.msk [vmem:[#allocation3 + $0x28] sm:$0xff] %vm532, 0.0
          %555 = vst.msk [vmem:[#allocation3 + $0x30] sm:$0xff] %vm532, 0.0
          %556 = vst.msk [vmem:[#allocation3 + $0x38] sm:$0xff] %vm532, 0.0
          %557 = vst.msk [vmem:[#allocation3 + $0x40] sm:$0xff] %vm532, 0.0
          %558 = vst.msk [vmem:[#allocation3 + $0x48] sm:$0xff] %vm532, 0.0
          %559 = vst.msk [vmem:[#allocation3 + $0x50] sm:$0xff] %vm532, 0.0
          %560 = vst.msk [vmem:[#allocation3 + $0x58] sm:$0xff] %vm532, 0.0
          %561 = vst.msk [vmem:[#allocation3 + $0x60] sm:$0xff] %vm532, 0.0
          %562 = vst.msk [vmem:[#allocation3 + $0x68] sm:$0xff] %vm532, 0.0
          %563 = vst.msk [vmem:[#allocation3 + $0x70] sm:$0xff] %vm532, 0.0
          %564 = vst.msk [vmem:[#allocation3 + $0x78] sm:$0xff] %vm532, 0.0
          %565 = vst [vmem:[#allocation4] sm:$0xff] 0.0
          %566 = vst [vmem:[#allocation4 + $0x8] sm:$0xff] 0.0
          %567 = vst [vmem:[#allocation4 + $0x10] sm:$0xff] 0.0
          %568 = vst [vmem:[#allocation4 + $0x18] sm:$0xff] 0.0
          %569 = vst [vmem:[#allocation4 + $0x20] sm:$0xff] 0.0
          %570 = vst [vmem:[#allocation4 + $0x28] sm:$0xff] 0.0
          %571 = vst [vmem:[#allocation4 + $0x30] sm:$0xff] 0.0
          %572 = vst [vmem:[#allocation4 + $0x38] sm:$0xff] 0.0
          %573 = vst [vmem:[#allocation4 + $0x40] sm:$0xff] 0.0
          %574 = vst [vmem:[#allocation4 + $0x48] sm:$0xff] 0.0
          %575 = vst [vmem:[#allocation4 + $0x50] sm:$0xff] 0.0
          %576 = vst [vmem:[#allocation4 + $0x58] sm:$0xff] 0.0
          %577 = vst [vmem:[#allocation4 + $0x60] sm:$0xff] 0.0
          %578 = vst [vmem:[#allocation4 + $0x68] sm:$0xff] 0.0
          %579 = vst [vmem:[#allocation4 + $0x70] sm:$0xff] 0.0
          %580 = vst [vmem:[#allocation4 + $0x78] sm:$0xff] 0.0
        $region75: #{tpu_custom_call.1} parent=58 // pred_fallthru
          _
        %s581 = smul.u32 %s39, 2
        %s582 = sadd.s32 %s581, %s40
        %s583 = sld [smem:[#allocation7 + %s582]]
        %p584 = scmp.lt.s32.totalorder %s41, %s583
        // Predicated region
        $region76: #{tpu_custom_call.1} parent=58 // pred_check
          %p585 = pneg %p584
        $region77: #{tpu_custom_call.1} parent=58 // pred_check_branch
          %587 = sbr.rel (%p585) target = $region79
        $region78: #{tpu_custom_call.1} parent=58 // pred_region
          %v588 = vld [vmem:[%s403] sm:$0xff]
          %v589 = vld [vmem:[%s403 + $0x8] sm:$0xff]
          %v590 = vld [vmem:[%s403 + $0x10] sm:$0xff]
          %v591 = vld [vmem:[%s403 + $0x18] sm:$0xff]
          %v592 = vld [vmem:[%s403 + $0x20] sm:$0xff]
          %v593 = vld [vmem:[%s403 + $0x28] sm:$0xff]
          %v594 = vld [vmem:[%s403 + $0x30] sm:$0xff]
          %v595 = vld [vmem:[%s403 + $0x38] sm:$0xff]
          %v596 = vunpack.c.0.s8 %v588
          %v597 = vunpack.c.0.s8 %v589
          %v598 = vunpack.c.1.s8 %v588
          %v599 = vunpack.c.1.s8 %v589
          %v600 = vunpack.c.2.s8 %v588
          %v601 = vunpack.c.2.s8 %v589
          %v602 = vunpack.c.3.s8 %v588
          %v603 = vunpack.c.3.s8 %v589
          %v604 = vunpack.c.0.s8 %v590
          %v605 = vunpack.c.0.s8 %v591
          %v606 = vunpack.c.1.s8 %v590
          %v607 = vunpack.c.1.s8 %v591
          %v608 = vunpack.c.2.s8 %v590
          %v609 = vunpack.c.2.s8 %v591
          %v610 = vunpack.c.3.s8 %v590
          %v611 = vunpack.c.3.s8 %v591
          %v612 = vunpack.c.0.s8 %v592
          %v613 = vunpack.c.0.s8 %v593
          %v614 = vunpack.c.1.s8 %v592
          %v615 = vunpack.c.1.s8 %v593
          %v616 = vunpack.c.2.s8 %v592
          %v617 = vunpack.c.2.s8 %v593
          %v618 = vunpack.c.3.s8 %v592
          %v619 = vunpack.c.3.s8 %v593
          %v620 = vunpack.c.0.s8 %v594
          %v621 = vunpack.c.0.s8 %v595
          %v622 = vunpack.c.1.s8 %v594
          %v623 = vunpack.c.1.s8 %v595
          %v624 = vunpack.c.2.s8 %v594
          %v625 = vunpack.c.2.s8 %v595
          %v626 = vunpack.c.3.s8 %v594
          %v627 = vunpack.c.3.s8 %v595
          %v628 = vcvt.s32.f32 %v596
          %v629 = vcvt.s32.f32 %v597
          %v630 = vcvt.s32.f32 %v598
          %v631 = vcvt.s32.f32 %v599
          %v632 = vcvt.s32.f32 %v600
          %v633 = vcvt.s32.f32 %v601
          %v634 = vcvt.s32.f32 %v602
          %v635 = vcvt.s32.f32 %v603
          %v636 = vcvt.s32.f32 %v604
          %v637 = vcvt.s32.f32 %v605
          %v638 = vcvt.s32.f32 %v606
          %v639 = vcvt.s32.f32 %v607
          %v640 = vcvt.s32.f32 %v608
          %v641 = vcvt.s32.f32 %v609
          %v642 = vcvt.s32.f32 %v610
          %v643 = vcvt.s32.f32 %v611
          %v644 = vcvt.s32.f32 %v612
          %v645 = vcvt.s32.f32 %v613
          %v646 = vcvt.s32.f32 %v614
          %v647 = vcvt.s32.f32 %v615
          %v648 = vcvt.s32.f32 %v616
          %v649 = vcvt.s32.f32 %v617
          %v650 = vcvt.s32.f32 %v618
          %v651 = vcvt.s32.f32 %v619
          %v652 = vcvt.s32.f32 %v620
          %v653 = vcvt.s32.f32 %v621
          %v654 = vcvt.s32.f32 %v622
          %v655 = vcvt.s32.f32 %v623
          %v656 = vcvt.s32.f32 %v624
          %v657 = vcvt.s32.f32 %v625
          %v658 = vcvt.s32.f32 %v626
          %v659 = vcvt.s32.f32 %v627
          %v660 = vld [vmem:[%s395] sm:$0xf]
          %v661 = vld [vmem:[%s395 + $0x4] sm:$0xf]
          %v662 = vld [vmem:[%s395 + $0x8] sm:$0xf]
          %v663 = vld [vmem:[%s395 + $0xc] sm:$0xf]
          %v664 = vld [vmem:[%s395 + $0x10] sm:$0xf]
          %v665 = vld [vmem:[%s395 + $0x14] sm:$0xf]
          %v666 = vld [vmem:[%s395 + $0x18] sm:$0xf]
          %v667 = vld [vmem:[%s395 + $0x1c] sm:$0xf]
          %v668 = vld [vmem:[%s395 + $0x20] sm:$0xf]
          %v669 = vld [vmem:[%s395 + $0x24] sm:$0xf]
          %v670 = vld [vmem:[%s395 + $0x28] sm:$0xf]
          %v671 = vld [vmem:[%s395 + $0x2c] sm:$0xf]
          %v672 = vld [vmem:[%s395 + $0x30] sm:$0xf]
          %v673 = vld [vmem:[%s395 + $0x34] sm:$0xf]
          %v674 = vld [vmem:[%s395 + $0x38] sm:$0xf]
          %v675 = vld [vmem:[%s395 + $0x3c] sm:$0xf]
          %v676 = vld [vmem:[%s395 + $0x40] sm:$0xf]
          %v677 = vld [vmem:[%s395 + $0x44] sm:$0xf]
          %v678 = vld [vmem:[%s395 + $0x48] sm:$0xf]
          %v679 = vld [vmem:[%s395 + $0x4c] sm:$0xf]
          %v680 = vld [vmem:[%s395 + $0x50] sm:$0xf]
          %v681 = vld [vmem:[%s395 + $0x54] sm:$0xf]
          %v682 = vld [vmem:[%s395 + $0x58] sm:$0xf]
          %v683 = vld [vmem:[%s395 + $0x5c] sm:$0xf]
          %v684 = vld [vmem:[%s395 + $0x60] sm:$0xf]
          %v685 = vld [vmem:[%s395 + $0x64] sm:$0xf]
          %v686 = vld [vmem:[%s395 + $0x68] sm:$0xf]
          %v687 = vld [vmem:[%s395 + $0x6c] sm:$0xf]
          %v688 = vld [vmem:[%s395 + $0x70] sm:$0xf]
          %v689 = vld [vmem:[%s395 + $0x74] sm:$0xf]
          %v690 = vld [vmem:[%s395 + $0x78] sm:$0xf]
          %v691 = vld [vmem:[%s395 + $0x7c] sm:$0xf]
          %v692 = vld [vmem:[%s488] sm:$0xf]
          %v693 = vld [vmem:[%s473] sm:$0xff]
          %v694 = vld [vmem:[%s473 + $0x8] sm:$0xff]
          %v695 = vld [vmem:[%s473 + $0x10] sm:$0xff]
          %v696 = vld [vmem:[%s473 + $0x18] sm:$0xff]
          %v697 = vld [vmem:[%s473 + $0x20] sm:$0xff]
          %v698 = vld [vmem:[%s473 + $0x28] sm:$0xff]
          %v699 = vld [vmem:[%s473 + $0x30] sm:$0xff]
          %v700 = vld [vmem:[%s473 + $0x38] sm:$0xff]
          %v701 = vld [vmem:[%s473 + $0x40] sm:$0xff]
          %v702 = vld [vmem:[%s473 + $0x48] sm:$0xff]
          %v703 = vld [vmem:[%s473 + $0x50] sm:$0xff]
          %v704 = vld [vmem:[%s473 + $0x58] sm:$0xff]
          %v705 = vld [vmem:[%s473 + $0x60] sm:$0xff]
          %v706 = vld [vmem:[%s473 + $0x68] sm:$0xff]
          %v707 = vld [vmem:[%s473 + $0x70] sm:$0xff]
          %v708 = vld [vmem:[%s473 + $0x78] sm:$0xff]
          %v709 = vld [vmem:[#allocation2] sm:$0xff]
          %v710 = vld [vmem:[#allocation2 + $0x8] sm:$0xff]
          %v711 = vld [vmem:[#allocation2 + $0x10] sm:$0xff]
          %v712 = vld [vmem:[#allocation2 + $0x18] sm:$0xff]
          %v713 = vld [vmem:[#allocation2 + $0x20] sm:$0xff]
          %v714 = vld [vmem:[#allocation2 + $0x28] sm:$0xff]
          %v715 = vld [vmem:[#allocation2 + $0x30] sm:$0xff]
          %v716 = vld [vmem:[#allocation2 + $0x38] sm:$0xff]
          %v717 = vld [vmem:[#allocation2 + $0x40] sm:$0xff]
          %v718 = vld [vmem:[#allocation2 + $0x48] sm:$0xff]
          %v719 = vld [vmem:[#allocation2 + $0x50] sm:$0xff]
          %v720 = vld [vmem:[#allocation2 + $0x58] sm:$0xff]
          %v721 = vld [vmem:[#allocation2 + $0x60] sm:$0xff]
          %v722 = vld [vmem:[#allocation2 + $0x68] sm:$0xff]
          %v723 = vld [vmem:[#allocation2 + $0x70] sm:$0xff]
          %v724 = vld [vmem:[#allocation2 + $0x78] sm:$0xff]
          %v725 = vld [vmem:[#allocation3] sm:$0xff]
          %v726 = vld [vmem:[#allocation3 + $0x8] sm:$0xff]
          %v727 = vld [vmem:[#allocation3 + $0x10] sm:$0xff]
          %v728 = vld [vmem:[#allocation3 + $0x18] sm:$0xff]
          %v729 = vld [vmem:[#allocation3 + $0x20] sm:$0xff]
          %v730 = vld [vmem:[#allocation3 + $0x28] sm:$0xff]
          %v731 = vld [vmem:[#allocation3 + $0x30] sm:$0xff]
          %v732 = vld [vmem:[#allocation3 + $0x38] sm:$0xff]
          %v733 = vld [vmem:[#allocation3 + $0x40] sm:$0xff]
          %v734 = vld [vmem:[#allocation3 + $0x48] sm:$0xff]
          %v735 = vld [vmem:[#allocation3 + $0x50] sm:$0xff]
          %v736 = vld [vmem:[#allocation3 + $0x58] sm:$0xff]
          %v737 = vld [vmem:[#allocation3 + $0x60] sm:$0xff]
          %v738 = vld [vmem:[#allocation3 + $0x68] sm:$0xff]
          %v739 = vld [vmem:[#allocation3 + $0x70] sm:$0xff]
          %v740 = vld [vmem:[#allocation3 + $0x78] sm:$0xff]
          %v741 = vlaneseq
          %v742 = vand.u32 %v741, 127
          %744 = vset.pattern.permute.xlu0 0
          %745 = vperm.xlu0 %744, %v693
          %v746 = vpop.permute.xlu0 %745
          %749 = vset.pattern.permute.xlu0 0
          %750 = vperm.xlu0 %749, %v694
          %v751 = vpop.permute.xlu0 %750
          %754 = vset.pattern.permute.xlu0 0
          %755 = vperm.xlu0 %754, %v695
          %v756 = vpop.permute.xlu0 %755
          %759 = vset.pattern.permute.xlu0 0
          %760 = vperm.xlu0 %759, %v696
          %v761 = vpop.permute.xlu0 %760
          %764 = vset.pattern.permute.xlu0 0
          %765 = vperm.xlu0 %764, %v697
          %v766 = vpop.permute.xlu0 %765
          %769 = vset.pattern.permute.xlu0 0
          %770 = vperm.xlu0 %769, %v698
          %v771 = vpop.permute.xlu0 %770
          %774 = vset.pattern.permute.xlu0 0
          %775 = vperm.xlu0 %774, %v699
          %v776 = vpop.permute.xlu0 %775
          %779 = vset.pattern.permute.xlu0 0
          %780 = vperm.xlu0 %779, %v700
          %v781 = vpop.permute.xlu0 %780
          %784 = vset.pattern.permute.xlu0 0
          %785 = vperm.xlu0 %784, %v701
          %v786 = vpop.permute.xlu0 %785
          %789 = vset.pattern.permute.xlu0 0
          %790 = vperm.xlu0 %789, %v702
          %v791 = vpop.permute.xlu0 %790
          %794 = vset.pattern.permute.xlu0 0
          %795 = vperm.xlu0 %794, %v703
          %v796 = vpop.permute.xlu0 %795
          %799 = vset.pattern.permute.xlu0 0
          %800 = vperm.xlu0 %799, %v704
          %v801 = vpop.permute.xlu0 %800
          %804 = vset.pattern.permute.xlu0 0
          %805 = vperm.xlu0 %804, %v705
          %v806 = vpop.permute.xlu0 %805
          %809 = vset.pattern.permute.xlu0 0
          %810 = vperm.xlu0 %809, %v706
          %v811 = vpop.permute.xlu0 %810
          %814 = vset.pattern.permute.xlu0 0
          %815 = vperm.xlu0 %814, %v707
          %v816 = vpop.permute.xlu0 %815
          %819 = vset.pattern.permute.xlu0 0
          %820 = vperm.xlu0 %819, %v708
          %v821 = vpop.permute.xlu0 %820
          %v824 = vlaneseq
          %v825 = vshrl.u32 %v824, 7
          %v826 = vsub.s32 0, %v825
          %v827 = vrot.slane %v692, %v826
          %v828 = vlaneseq
          %v829 = vshrl.u32 %v828, 7
          %v830 = vsub.s32 2, %v829
          %v831 = vrot.slane %v692, %v830
          %v834 = vlaneseq
          %v835 = vshrl.u32 %v834, 7
          %v836 = vsub.s32 0, %v835
          %v837 = vrot.slane %v827, %v836
          %v838 = vlaneseq
          %v839 = vshrl.u32 %v838, 7
          %v840 = vsub.s32 0, %v839
          %v841 = vrot.slane %v831, %v840
          %v842 = vadd.f32 %v746, %v837
          %v843 = vadd.f32 %v746, %v841
          %v844 = vadd.f32 %v751, %v837
          %v845 = vadd.f32 %v751, %v841
          %v846 = vadd.f32 %v756, %v837
          %v847 = vadd.f32 %v756, %v841
          %v848 = vadd.f32 %v761, %v837
          %v849 = vadd.f32 %v761, %v841
          %v850 = vadd.f32 %v766, %v837
          %v851 = vadd.f32 %v766, %v841
          %v852 = vadd.f32 %v771, %v837
          %v853 = vadd.f32 %v771, %v841
          %v854 = vadd.f32 %v776, %v837
          %v855 = vadd.f32 %v776, %v841
          %v856 = vadd.f32 %v781, %v837
          %v857 = vadd.f32 %v781, %v841
          %v858 = vadd.f32 %v786, %v837
          %v859 = vadd.f32 %v786, %v841
          %v860 = vadd.f32 %v791, %v837
          %v861 = vadd.f32 %v791, %v841
          %v862 = vadd.f32 %v796, %v837
          %v863 = vadd.f32 %v796, %v841
          %v864 = vadd.f32 %v801, %v837
          %v865 = vadd.f32 %v801, %v841
          %v866 = vadd.f32 %v806, %v837
          %v867 = vadd.f32 %v806, %v841
          %v868 = vadd.f32 %v811, %v837
          %v869 = vadd.f32 %v811, %v841
          %v870 = vadd.f32 %v816, %v837
          %v871 = vadd.f32 %v816, %v841
          %v872 = vadd.f32 %v821, %v837
          %v873 = vadd.f32 %v821, %v841
          %v874 = vmul.f32 %v842, 0.2
          %v875 = vmul.f32 %v843, 0.2
          %v876 = vmul.f32 %v844, 0.2
          %v877 = vmul.f32 %v845, 0.2
          %v878 = vmul.f32 %v846, 0.2
          %v879 = vmul.f32 %v847, 0.2
          %v880 = vmul.f32 %v848, 0.2
          %v881 = vmul.f32 %v849, 0.2
          %v882 = vmul.f32 %v850, 0.2
          %v883 = vmul.f32 %v851, 0.2
          %v884 = vmul.f32 %v852, 0.2
          %v885 = vmul.f32 %v853, 0.2
          %v886 = vmul.f32 %v854, 0.2
          %v887 = vmul.f32 %v855, 0.2
          %v888 = vmul.f32 %v856, 0.2
          %v889 = vmul.f32 %v857, 0.2
          %v890 = vmul.f32 %v858, 0.2
          %v891 = vmul.f32 %v859, 0.2
          %v892 = vmul.f32 %v860, 0.2
          %v893 = vmul.f32 %v861, 0.2
          %v894 = vmul.f32 %v862, 0.2
          %v895 = vmul.f32 %v863, 0.2
          %v896 = vmul.f32 %v864, 0.2
          %v897 = vmul.f32 %v865, 0.2
          %v898 = vmul.f32 %v866, 0.2
          %v899 = vmul.f32 %v867, 0.2
          %v900 = vmul.f32 %v868, 0.2
          %v901 = vmul.f32 %v869, 0.2
          %v902 = vmul.f32 %v870, 0.2
          %v903 = vmul.f32 %v871, 0.2
          %v904 = vmul.f32 %v872, 0.2
          %v905 = vmul.f32 %v873, 0.2
          %v906 = vmax.f32 %v842, %v874
          %v907 = vmax.f32 %v843, %v875
          %v908 = vmax.f32 %v844, %v876
          %v909 = vmax.f32 %v845, %v877
          %v910 = vmax.f32 %v846, %v878
          %v911 = vmax.f32 %v847, %v879
          %v912 = vmax.f32 %v848, %v880
          %v913 = vmax.f32 %v849, %v881
          %v914 = vmax.f32 %v850, %v882
          %v915 = vmax.f32 %v851, %v883
          %v916 = vmax.f32 %v852, %v884
          %v917 = vmax.f32 %v853, %v885
          %v918 = vmax.f32 %v854, %v886
          %v919 = vmax.f32 %v855, %v887
          %v920 = vmax.f32 %v856, %v888
          %v921 = vmax.f32 %v857, %v889
          %v922 = vmax.f32 %v858, %v890
          %v923 = vmax.f32 %v859, %v891
          %v924 = vmax.f32 %v860, %v892
          %v925 = vmax.f32 %v861, %v893
          %v926 = vmax.f32 %v862, %v894
          %v927 = vmax.f32 %v863, %v895
          %v928 = vmax.f32 %v864, %v896
          %v929 = vmax.f32 %v865, %v897
          %v930 = vmax.f32 %v866, %v898
          %v931 = vmax.f32 %v867, %v899
          %v932 = vmax.f32 %v868, %v900
          %v933 = vmax.f32 %v869, %v901
          %v934 = vmax.f32 %v870, %v902
          %v935 = vmax.f32 %v871, %v903
          %v936 = vmax.f32 %v872, %v904
          %v937 = vmax.f32 %v873, %v905
          %vm938 = vcmp.gt.f32.partialorder %v628, 0.0
          %vm939 = vcmp.gt.f32.partialorder %v629, 0.0
          %vm940 = vcmp.gt.f32.partialorder %v630, 0.0
          %vm941 = vcmp.gt.f32.partialorder %v631, 0.0
          %vm942 = vcmp.gt.f32.partialorder %v632, 0.0
          %vm943 = vcmp.gt.f32.partialorder %v633, 0.0
          %vm944 = vcmp.gt.f32.partialorder %v634, 0.0
          %vm945 = vcmp.gt.f32.partialorder %v635, 0.0
          %vm946 = vcmp.gt.f32.partialorder %v636, 0.0
          %vm947 = vcmp.gt.f32.partialorder %v637, 0.0
          %vm948 = vcmp.gt.f32.partialorder %v638, 0.0
          %vm949 = vcmp.gt.f32.partialorder %v639, 0.0
          %vm950 = vcmp.gt.f32.partialorder %v640, 0.0
          %vm951 = vcmp.gt.f32.partialorder %v641, 0.0
          %vm952 = vcmp.gt.f32.partialorder %v642, 0.0
          %vm953 = vcmp.gt.f32.partialorder %v643, 0.0
          %vm954 = vcmp.gt.f32.partialorder %v644, 0.0
          %vm955 = vcmp.gt.f32.partialorder %v645, 0.0
          %vm956 = vcmp.gt.f32.partialorder %v646, 0.0
          %vm957 = vcmp.gt.f32.partialorder %v647, 0.0
          %vm958 = vcmp.gt.f32.partialorder %v648, 0.0
          %vm959 = vcmp.gt.f32.partialorder %v649, 0.0
          %vm960 = vcmp.gt.f32.partialorder %v650, 0.0
          %vm961 = vcmp.gt.f32.partialorder %v651, 0.0
          %vm962 = vcmp.gt.f32.partialorder %v652, 0.0
          %vm963 = vcmp.gt.f32.partialorder %v653, 0.0
          %vm964 = vcmp.gt.f32.partialorder %v654, 0.0
          %vm965 = vcmp.gt.f32.partialorder %v655, 0.0
          %vm966 = vcmp.gt.f32.partialorder %v656, 0.0
          %vm967 = vcmp.gt.f32.partialorder %v657, 0.0
          %vm968 = vcmp.gt.f32.partialorder %v658, 0.0
          %vm969 = vcmp.gt.f32.partialorder %v659, 0.0
          %v970 = vsel %vm938, %v906, -1e+30
          %v971 = vsel %vm939, %v907, -1e+30
          %v972 = vsel %vm940, %v908, -1e+30
          %v973 = vsel %vm941, %v909, -1e+30
          %v974 = vsel %vm942, %v910, -1e+30
          %v975 = vsel %vm943, %v911, -1e+30
          %v976 = vsel %vm944, %v912, -1e+30
          %v977 = vsel %vm945, %v913, -1e+30
          %v978 = vsel %vm946, %v914, -1e+30
          %v979 = vsel %vm947, %v915, -1e+30
          %v980 = vsel %vm948, %v916, -1e+30
          %v981 = vsel %vm949, %v917, -1e+30
          %v982 = vsel %vm950, %v918, -1e+30
          %v983 = vsel %vm951, %v919, -1e+30
          %v984 = vsel %vm952, %v920, -1e+30
          %v985 = vsel %vm953, %v921, -1e+30
          %v986 = vsel %vm954, %v922, -1e+30
          %v987 = vsel %vm955, %v923, -1e+30
          %v988 = vsel %vm956, %v924, -1e+30
          %v989 = vsel %vm957, %v925, -1e+30
          %v990 = vsel %vm958, %v926, -1e+30
          %v991 = vsel %vm959, %v927, -1e+30
          %v992 = vsel %vm960, %v928, -1e+30
          %v993 = vsel %vm961, %v929, -1e+30
          %v994 = vsel %vm962, %v930, -1e+30
          %v995 = vsel %vm963, %v931, -1e+30
          %v996 = vsel %vm964, %v932, -1e+30
          %v997 = vsel %vm965, %v933, -1e+30
          %v998 = vsel %vm966, %v934, -1e+30
          %v999 = vsel %vm967, %v935, -1e+30
          %v1000 = vsel %vm968, %v936, -1e+30
          %v1001 = vsel %vm969, %v937, -1e+30
          %v1002 = vmax.f32 %v970, %v971
          %1003 = vmax.xlane.f32.xlu0 %v1002
          %v1004 = vpop.xlane.xlu0 %1003
          %v1005 = vmax.f32 %v972, %v973
          %1006 = vmax.xlane.f32.xlu0 %v1005
          %v1007 = vpop.xlane.xlu0 %1006
          %v1008 = vmax.f32 %v974, %v975
          %1009 = vmax.xlane.f32.xlu0 %v1008
          %v1010 = vpop.xlane.xlu0 %1009
          %v1011 = vmax.f32 %v976, %v977
          %1012 = vmax.xlane.f32.xlu0 %v1011
          %v1013 = vpop.xlane.xlu0 %1012
          %v1014 = vmax.f32 %v978, %v979
          %1015 = vmax.xlane.f32.xlu0 %v1014
          %v1016 = vpop.xlane.xlu0 %1015
          %v1017 = vmax.f32 %v980, %v981
          %1018 = vmax.xlane.f32.xlu0 %v1017
          %v1019 = vpop.xlane.xlu0 %1018
          %v1020 = vmax.f32 %v982, %v983
          %1021 = vmax.xlane.f32.xlu0 %v1020
          %v1022 = vpop.xlane.xlu0 %1021
          %v1023 = vmax.f32 %v984, %v985
          %1024 = vmax.xlane.f32.xlu0 %v1023
          %v1025 = vpop.xlane.xlu0 %1024
          %v1026 = vmax.f32 %v986, %v987
          %1027 = vmax.xlane.f32.xlu0 %v1026
          %v1028 = vpop.xlane.xlu0 %1027
          %v1029 = vmax.f32 %v988, %v989
          %1030 = vmax.xlane.f32.xlu0 %v1029
          %v1031 = vpop.xlane.xlu0 %1030
          %v1032 = vmax.f32 %v990, %v991
          %1033 = vmax.xlane.f32.xlu0 %v1032
          %v1034 = vpop.xlane.xlu0 %1033
          %v1035 = vmax.f32 %v992, %v993
          %1036 = vmax.xlane.f32.xlu0 %v1035
          %v1037 = vpop.xlane.xlu0 %1036
          %v1038 = vmax.f32 %v994, %v995
          %1039 = vmax.xlane.f32.xlu0 %v1038
          %v1040 = vpop.xlane.xlu0 %1039
          %v1041 = vmax.f32 %v996, %v997
          %1042 = vmax.xlane.f32.xlu0 %v1041
          %v1043 = vpop.xlane.xlu0 %1042
          %v1044 = vmax.f32 %v998, %v999
          %1045 = vmax.xlane.f32.xlu0 %v1044
          %v1046 = vpop.xlane.xlu0 %1045
          %v1047 = vmax.f32 %v1000, %v1001
          %1048 = vmax.xlane.f32.xlu0 %v1047
          %v1049 = vpop.xlane.xlu0 %1048
          %v1050 = vmax.f32 %v709, %v1004
          %v1051 = vmax.f32 %v710, %v1007
          %v1052 = vmax.f32 %v711, %v1010
          %v1053 = vmax.f32 %v712, %v1013
          %v1054 = vmax.f32 %v713, %v1016
          %v1055 = vmax.f32 %v714, %v1019
          %v1056 = vmax.f32 %v715, %v1022
          %v1057 = vmax.f32 %v716, %v1025
          %v1058 = vmax.f32 %v717, %v1028
          %v1059 = vmax.f32 %v718, %v1031
          %v1060 = vmax.f32 %v719, %v1034
          %v1061 = vmax.f32 %v720, %v1037
          %v1062 = vmax.f32 %v721, %v1040
          %v1063 = vmax.f32 %v722, %v1043
          %v1064 = vmax.f32 %v723, %v1046
          %v1065 = vmax.f32 %v724, %v1049
          %v1066 = vsub.f32 %v709, %v1050
          %v1067 = vsub.f32 %v710, %v1051
          %v1068 = vsub.f32 %v711, %v1052
          %v1069 = vsub.f32 %v712, %v1053
          %v1070 = vsub.f32 %v713, %v1054
          %v1071 = vsub.f32 %v714, %v1055
          %v1072 = vsub.f32 %v715, %v1056
          %v1073 = vsub.f32 %v716, %v1057
          %v1074 = vsub.f32 %v717, %v1058
          %v1075 = vsub.f32 %v718, %v1059
          %v1076 = vsub.f32 %v719, %v1060
          %v1077 = vsub.f32 %v720, %v1061
          %v1078 = vsub.f32 %v721, %v1062
          %v1079 = vsub.f32 %v722, %v1063
          %v1080 = vsub.f32 %v723, %v1064
          %v1081 = vsub.f32 %v724, %v1065
          %v1082 = vmul.f32 %v1066, 1.442695
          %v1083 = vpow.pop %v1082
          %v1084 = vmul.f32 %v1067, 1.442695
          %v1085 = vpow.pop %v1084
          %v1086 = vmul.f32 %v1068, 1.442695
          %v1087 = vpow.pop %v1086
          %v1088 = vmul.f32 %v1069, 1.442695
          %v1089 = vpow.pop %v1088
          %v1090 = vmul.f32 %v1070, 1.442695
          %v1091 = vpow.pop %v1090
          %v1092 = vmul.f32 %v1071, 1.442695
          %v1093 = vpow.pop %v1092
          %v1094 = vmul.f32 %v1072, 1.442695
          %v1095 = vpow.pop %v1094
          %v1096 = vmul.f32 %v1073, 1.442695
          %v1097 = vpow.pop %v1096
          %v1098 = vmul.f32 %v1074, 1.442695
          %v1099 = vpow.pop %v1098
          %v1100 = vmul.f32 %v1075, 1.442695
          %v1101 = vpow.pop %v1100
          %v1102 = vmul.f32 %v1076, 1.442695
          %v1103 = vpow.pop %v1102
          %v1104 = vmul.f32 %v1077, 1.442695
          %v1105 = vpow.pop %v1104
          %v1106 = vmul.f32 %v1078, 1.442695
          %v1107 = vpow.pop %v1106
          %v1108 = vmul.f32 %v1079, 1.442695
          %v1109 = vpow.pop %v1108
          %v1110 = vmul.f32 %v1080, 1.442695
          %v1111 = vpow.pop %v1110
          %v1112 = vmul.f32 %v1081, 1.442695
          %v1113 = vpow.pop %v1112
          %1115 = vset.pattern.permute.xlu0 0
          %1116 = vperm.xlu0 %1115, %v1050
          %v1117 = vpop.permute.xlu0 %1116
          %1120 = vset.pattern.permute.xlu0 0
          %1121 = vperm.xlu0 %1120, %v1051
          %v1122 = vpop.permute.xlu0 %1121
          %1125 = vset.pattern.permute.xlu0 0
          %1126 = vperm.xlu0 %1125, %v1052
          %v1127 = vpop.permute.xlu0 %1126
          %1130 = vset.pattern.permute.xlu0 0
          %1131 = vperm.xlu0 %1130, %v1053
          %v1132 = vpop.permute.xlu0 %1131
          %1135 = vset.pattern.permute.xlu0 0
          %1136 = vperm.xlu0 %1135, %v1054
          %v1137 = vpop.permute.xlu0 %1136
          %1140 = vset.pattern.permute.xlu0 0
          %1141 = vperm.xlu0 %1140, %v1055
          %v1142 = vpop.permute.xlu0 %1141
          %1145 = vset.pattern.permute.xlu0 0
          %1146 = vperm.xlu0 %1145, %v1056
          %v1147 = vpop.permute.xlu0 %1146
          %1150 = vset.pattern.permute.xlu0 0
          %1151 = vperm.xlu0 %1150, %v1057
          %v1152 = vpop.permute.xlu0 %1151
          %1155 = vset.pattern.permute.xlu0 0
          %1156 = vperm.xlu0 %1155, %v1058
          %v1157 = vpop.permute.xlu0 %1156
          %1160 = vset.pattern.permute.xlu0 0
          %1161 = vperm.xlu0 %1160, %v1059
          %v1162 = vpop.permute.xlu0 %1161
          %1165 = vset.pattern.permute.xlu0 0
          %1166 = vperm.xlu0 %1165, %v1060
          %v1167 = vpop.permute.xlu0 %1166
          %1170 = vset.pattern.permute.xlu0 0
          %1171 = vperm.xlu0 %1170, %v1061
          %v1172 = vpop.permute.xlu0 %1171
          %1175 = vset.pattern.permute.xlu0 0
          %1176 = vperm.xlu0 %1175, %v1062
          %v1177 = vpop.permute.xlu0 %1176
          %1180 = vset.pattern.permute.xlu0 0
          %1181 = vperm.xlu0 %1180, %v1063
          %v1182 = vpop.permute.xlu0 %1181
          %1185 = vset.pattern.permute.xlu0 0
          %1186 = vperm.xlu0 %1185, %v1064
          %v1187 = vpop.permute.xlu0 %1186
          %1190 = vset.pattern.permute.xlu0 0
          %1191 = vperm.xlu0 %1190, %v1065
          %v1192 = vpop.permute.xlu0 %1191
          %v1194 = vsub.f32 %v970, %v1117
          %v1195 = vsub.f32 %v971, %v1117
          %v1196 = vsub.f32 %v972, %v1122
          %v1197 = vsub.f32 %v973, %v1122
          %v1198 = vsub.f32 %v974, %v1127
          %v1199 = vsub.f32 %v975, %v1127
          %v1200 = vsub.f32 %v976, %v1132
          %v1201 = vsub.f32 %v977, %v1132
          %v1202 = vsub.f32 %v978, %v1137
          %v1203 = vsub.f32 %v979, %v1137
          %v1204 = vsub.f32 %v980, %v1142
          %v1205 = vsub.f32 %v981, %v1142
          %v1206 = vsub.f32 %v982, %v1147
          %v1207 = vsub.f32 %v983, %v1147
          %v1208 = vsub.f32 %v984, %v1152
          %v1209 = vsub.f32 %v985, %v1152
          %v1210 = vsub.f32 %v986, %v1157
          %v1211 = vsub.f32 %v987, %v1157
          %v1212 = vsub.f32 %v988, %v1162
          %v1213 = vsub.f32 %v989, %v1162
          %v1214 = vsub.f32 %v990, %v1167
          %v1215 = vsub.f32 %v991, %v1167
          %v1216 = vsub.f32 %v992, %v1172
          %v1217 = vsub.f32 %v993, %v1172
          %v1218 = vsub.f32 %v994, %v1177
          %v1219 = vsub.f32 %v995, %v1177
          %v1220 = vsub.f32 %v996, %v1182
          %v1221 = vsub.f32 %v997, %v1182
          %v1222 = vsub.f32 %v998, %v1187
          %v1223 = vsub.f32 %v999, %v1187
          %v1224 = vsub.f32 %v1000, %v1192
          %v1225 = vsub.f32 %v1001, %v1192
          %v1226 = vmul.f32 %v1194, 1.442695
          %v1227 = vpow.pop %v1226
          %v1228 = vmul.f32 %v1195, 1.442695
          %v1229 = vpow.pop %v1228
          %v1230 = vmul.f32 %v1196, 1.442695
          %v1231 = vpow.pop %v1230
          %v1232 = vmul.f32 %v1197, 1.442695
          %v1233 = vpow.pop %v1232
          %v1234 = vmul.f32 %v1198, 1.442695
          %v1235 = vpow.pop %v1234
          %v1236 = vmul.f32 %v1199, 1.442695
          %v1237 = vpow.pop %v1236
          %v1238 = vmul.f32 %v1200, 1.442695
          %v1239 = vpow.pop %v1238
          %v1240 = vmul.f32 %v1201, 1.442695
          %v1241 = vpow.pop %v1240
          %v1242 = vmul.f32 %v1202, 1.442695
          %v1243 = vpow.pop %v1242
          %v1244 = vmul.f32 %v1203, 1.442695
          %v1245 = vpow.pop %v1244
          %v1246 = vmul.f32 %v1204, 1.442695
          %v1247 = vpow.pop %v1246
          %v1248 = vmul.f32 %v1205, 1.442695
          %v1249 = vpow.pop %v1248
          %v1250 = vmul.f32 %v1206, 1.442695
          %v1251 = vpow.pop %v1250
          %v1252 = vmul.f32 %v1207, 1.442695
          %v1253 = vpow.pop %v1252
          %v1254 = vmul.f32 %v1208, 1.442695
          %v1255 = vpow.pop %v1254
          %v1256 = vmul.f32 %v1209, 1.442695
          %v1257 = vpow.pop %v1256
          %v1258 = vmul.f32 %v1210, 1.442695
          %v1259 = vpow.pop %v1258
          %v1260 = vmul.f32 %v1211, 1.442695
          %v1261 = vpow.pop %v1260
          %v1262 = vmul.f32 %v1212, 1.442695
          %v1263 = vpow.pop %v1262
          %v1264 = vmul.f32 %v1213, 1.442695
          %v1265 = vpow.pop %v1264
          %v1266 = vmul.f32 %v1214, 1.442695
          %v1267 = vpow.pop %v1266
          %v1268 = vmul.f32 %v1215, 1.442695
          %v1269 = vpow.pop %v1268
          %v1270 = vmul.f32 %v1216, 1.442695
          %v1271 = vpow.pop %v1270
          %v1272 = vmul.f32 %v1217, 1.442695
          %v1273 = vpow.pop %v1272
          %v1274 = vmul.f32 %v1218, 1.442695
          %v1275 = vpow.pop %v1274
          %v1276 = vmul.f32 %v1219, 1.442695
          %v1277 = vpow.pop %v1276
          %v1278 = vmul.f32 %v1220, 1.442695
          %v1279 = vpow.pop %v1278
          %v1280 = vmul.f32 %v1221, 1.442695
          %v1281 = vpow.pop %v1280
          %v1282 = vmul.f32 %v1222, 1.442695
          %v1283 = vpow.pop %v1282
          %v1284 = vmul.f32 %v1223, 1.442695
          %v1285 = vpow.pop %v1284
          %v1286 = vmul.f32 %v1224, 1.442695
          %v1287 = vpow.pop %v1286
          %v1288 = vmul.f32 %v1225, 1.442695
          %v1289 = vpow.pop %v1288
          %v1290 = vmul.f32 %v1227, %v628
          %v1291 = vmul.f32 %v1229, %v629
          %v1292 = vmul.f32 %v1231, %v630
          %v1293 = vmul.f32 %v1233, %v631
          %v1294 = vmul.f32 %v1235, %v632
          %v1295 = vmul.f32 %v1237, %v633
          %v1296 = vmul.f32 %v1239, %v634
          %v1297 = vmul.f32 %v1241, %v635
          %v1298 = vmul.f32 %v1243, %v636
          %v1299 = vmul.f32 %v1245, %v637
          %v1300 = vmul.f32 %v1247, %v638
          %v1301 = vmul.f32 %v1249, %v639
          %v1302 = vmul.f32 %v1251, %v640
          %v1303 = vmul.f32 %v1253, %v641
          %v1304 = vmul.f32 %v1255, %v642
          %v1305 = vmul.f32 %v1257, %v643
          %v1306 = vmul.f32 %v1259, %v644
          %v1307 = vmul.f32 %v1261, %v645
          %v1308 = vmul.f32 %v1263, %v646
          %v1309 = vmul.f32 %v1265, %v647
          %v1310 = vmul.f32 %v1267, %v648
          %v1311 = vmul.f32 %v1269, %v649
          %v1312 = vmul.f32 %v1271, %v650
          %v1313 = vmul.f32 %v1273, %v651
          %v1314 = vmul.f32 %v1275, %v652
          %v1315 = vmul.f32 %v1277, %v653
          %v1316 = vmul.f32 %v1279, %v654
          %v1317 = vmul.f32 %v1281, %v655
          %v1318 = vmul.f32 %v1283, %v656
          %v1319 = vmul.f32 %v1285, %v657
          %v1320 = vmul.f32 %v1287, %v658
          %v1321 = vmul.f32 %v1289, %v659
          %v1322 = vmul.f32 %v1083, %v725
          %v1323 = vmul.f32 %v1085, %v726
          %v1324 = vmul.f32 %v1087, %v727
          %v1325 = vmul.f32 %v1089, %v728
          %v1326 = vmul.f32 %v1091, %v729
          %v1327 = vmul.f32 %v1093, %v730
          %v1328 = vmul.f32 %v1095, %v731
          %v1329 = vmul.f32 %v1097, %v732
          %v1330 = vmul.f32 %v1099, %v733
          %v1331 = vmul.f32 %v1101, %v734
          %v1332 = vmul.f32 %v1103, %v735
          %v1333 = vmul.f32 %v1105, %v736
          %v1334 = vmul.f32 %v1107, %v737
          %v1335 = vmul.f32 %v1109, %v738
          %v1336 = vmul.f32 %v1111, %v739
          %v1337 = vmul.f32 %v1113, %v740
          %v1338 = vadd.f32 %v1290, %v1291
          %1339 = vadd.xlane.f32.xlu0 %v1338
          %v1340 = vpop.xlane.xlu0 %1339
          %v1341 = vadd.f32 %v1292, %v1293
          %1342 = vadd.xlane.f32.xlu0 %v1341
          %v1343 = vpop.xlane.xlu0 %1342
          %v1344 = vadd.f32 %v1294, %v1295
          %1345 = vadd.xlane.f32.xlu0 %v1344
          %v1346 = vpop.xlane.xlu0 %1345
          %v1347 = vadd.f32 %v1296, %v1297
          %1348 = vadd.xlane.f32.xlu0 %v1347
          %v1349 = vpop.xlane.xlu0 %1348
          %v1350 = vadd.f32 %v1298, %v1299
          %1351 = vadd.xlane.f32.xlu0 %v1350
          %v1352 = vpop.xlane.xlu0 %1351
          %v1353 = vadd.f32 %v1300, %v1301
          %1354 = vadd.xlane.f32.xlu0 %v1353
          %v1355 = vpop.xlane.xlu0 %1354
          %v1356 = vadd.f32 %v1302, %v1303
          %1357 = vadd.xlane.f32.xlu0 %v1356
          %v1358 = vpop.xlane.xlu0 %1357
          %v1359 = vadd.f32 %v1304, %v1305
          %1360 = vadd.xlane.f32.xlu0 %v1359
          %v1361 = vpop.xlane.xlu0 %1360
          %v1362 = vadd.f32 %v1306, %v1307
          %1363 = vadd.xlane.f32.xlu0 %v1362
          %v1364 = vpop.xlane.xlu0 %1363
          %v1365 = vadd.f32 %v1308, %v1309
          %1366 = vadd.xlane.f32.xlu0 %v1365
          %v1367 = vpop.xlane.xlu0 %1366
          %v1368 = vadd.f32 %v1310, %v1311
          %1369 = vadd.xlane.f32.xlu0 %v1368
          %v1370 = vpop.xlane.xlu0 %1369
          %v1371 = vadd.f32 %v1312, %v1313
          %1372 = vadd.xlane.f32.xlu0 %v1371
          %v1373 = vpop.xlane.xlu0 %1372
          %v1374 = vadd.f32 %v1314, %v1315
          %1375 = vadd.xlane.f32.xlu0 %v1374
          %v1376 = vpop.xlane.xlu0 %1375
          %v1377 = vadd.f32 %v1316, %v1317
          %1378 = vadd.xlane.f32.xlu0 %v1377
          %v1379 = vpop.xlane.xlu0 %1378
          %v1380 = vadd.f32 %v1318, %v1319
          %1381 = vadd.xlane.f32.xlu0 %v1380
          %v1382 = vpop.xlane.xlu0 %1381
          %v1383 = vadd.f32 %v1320, %v1321
          %1384 = vadd.xlane.f32.xlu0 %v1383
          %v1385 = vpop.xlane.xlu0 %1384
          %v1386 = vadd.f32 %v1322, %v1340
          %v1387 = vadd.f32 %v1323, %v1343
          %v1388 = vadd.f32 %v1324, %v1346
          %v1389 = vadd.f32 %v1325, %v1349
          %v1390 = vadd.f32 %v1326, %v1352
          %v1391 = vadd.f32 %v1327, %v1355
          %v1392 = vadd.f32 %v1328, %v1358
          %v1393 = vadd.f32 %v1329, %v1361
          %v1394 = vadd.f32 %v1330, %v1364
          %v1395 = vadd.f32 %v1331, %v1367
          %v1396 = vadd.f32 %v1332, %v1370
          %v1397 = vadd.f32 %v1333, %v1373
          %v1398 = vadd.f32 %v1334, %v1376
          %v1399 = vadd.f32 %v1335, %v1379
          %v1400 = vadd.f32 %v1336, %v1382
          %v1401 = vadd.f32 %v1337, %v1385
          %1403 = vset.pattern.permute.xlu0 0
          %1404 = vperm.xlu0 %1403, %v1083
          %v1405 = vpop.permute.xlu0 %1404
          %1408 = vset.pattern.permute.xlu0 0
          %1409 = vperm.xlu0 %1408, %v1085
          %v1410 = vpop.permute.xlu0 %1409
          %1413 = vset.pattern.permute.xlu0 0
          %1414 = vperm.xlu0 %1413, %v1087
          %v1415 = vpop.permute.xlu0 %1414
          %1418 = vset.pattern.permute.xlu0 0
          %1419 = vperm.xlu0 %1418, %v1089
          %v1420 = vpop.permute.xlu0 %1419
          %1423 = vset.pattern.permute.xlu0 0
          %1424 = vperm.xlu0 %1423, %v1091
          %v1425 = vpop.permute.xlu0 %1424
          %1428 = vset.pattern.permute.xlu0 0
          %1429 = vperm.xlu0 %1428, %v1093
          %v1430 = vpop.permute.xlu0 %1429
          %1433 = vset.pattern.permute.xlu0 0
          %1434 = vperm.xlu0 %1433, %v1095
          %v1435 = vpop.permute.xlu0 %1434
          %1438 = vset.pattern.permute.xlu0 0
          %1439 = vperm.xlu0 %1438, %v1097
          %v1440 = vpop.permute.xlu0 %1439
          %1443 = vset.pattern.permute.xlu0 0
          %1444 = vperm.xlu0 %1443, %v1099
          %v1445 = vpop.permute.xlu0 %1444
          %1448 = vset.pattern.permute.xlu0 0
          %1449 = vperm.xlu0 %1448, %v1101
          %v1450 = vpop.permute.xlu0 %1449
          %1453 = vset.pattern.permute.xlu0 0
          %1454 = vperm.xlu0 %1453, %v1103
          %v1455 = vpop.permute.xlu0 %1454
          %1458 = vset.pattern.permute.xlu0 0
          %1459 = vperm.xlu0 %1458, %v1105
          %v1460 = vpop.permute.xlu0 %1459
          %1463 = vset.pattern.permute.xlu0 0
          %1464 = vperm.xlu0 %1463, %v1107
          %v1465 = vpop.permute.xlu0 %1464
          %1468 = vset.pattern.permute.xlu0 0
          %1469 = vperm.xlu0 %1468, %v1109
          %v1470 = vpop.permute.xlu0 %1469
          %1473 = vset.pattern.permute.xlu0 0
          %1474 = vperm.xlu0 %1473, %v1111
          %v1475 = vpop.permute.xlu0 %1474
          %1478 = vset.pattern.permute.xlu0 0
          %1479 = vperm.xlu0 %1478, %v1113
          %v1480 = vpop.permute.xlu0 %1479
          %v1482 = vpack.c.bf16 %v1292, %v1290
          %v1483 = vpack.c.bf16 %v1293, %v1291
          %v1484 = vpack.c.bf16 %v1296, %v1294
          %v1485 = vpack.c.bf16 %v1297, %v1295
          %v1486 = vpack.c.bf16 %v1300, %v1298
          %v1487 = vpack.c.bf16 %v1301, %v1299
          %v1488 = vpack.c.bf16 %v1304, %v1302
          %v1489 = vpack.c.bf16 %v1305, %v1303
          %v1490 = vpack.c.bf16 %v1308, %v1306
          %v1491 = vpack.c.bf16 %v1309, %v1307
          %v1492 = vpack.c.bf16 %v1312, %v1310
          %v1493 = vpack.c.bf16 %v1313, %v1311
          %v1494 = vpack.c.bf16 %v1316, %v1314
          %v1495 = vpack.c.bf16 %v1317, %v1315
          %v1496 = vpack.c.bf16 %v1320, %v1318
          %v1497 = vpack.c.bf16 %v1321, %v1319
          %vm1498 = vcmp.ge.s32.totalorder %v742, 0
          %vm1499 = vcmp.lt.s32.totalorder %v742, 8
          %vm1500 = vmand %vm1498, %vm1499
          %v1501 = vsel %vm1500, 1, 0
          %v1502 = vcvt.s32.f32 %v1501
          %v1503 = vpack.c.bf16 %v1502, %v1502
          %v1505 = vunpack.c.l.b16 %v1503
          %v1506 = vpack.c.b16 %v1505, %v1505
          %v1508 = vmul.bf16 %v660, %v1506
          %v1509 = vmul.bf16 %v661, %v1506
          %v1510 = vmul.bf16 %v662, %v1506
          %v1511 = vmul.bf16 %v663, %v1506
          %v1512 = vmul.bf16 %v664, %v1506
          %v1513 = vmul.bf16 %v665, %v1506
          %v1514 = vmul.bf16 %v666, %v1506
          %v1515 = vmul.bf16 %v667, %v1506
          %v1516 = vmul.bf16 %v668, %v1506
          %v1517 = vmul.bf16 %v669, %v1506
          %v1518 = vmul.bf16 %v670, %v1506
          %v1519 = vmul.bf16 %v671, %v1506
          %v1520 = vmul.bf16 %v672, %v1506
          %v1521 = vmul.bf16 %v673, %v1506
          %v1522 = vmul.bf16 %v674, %v1506
          %v1523 = vmul.bf16 %v675, %v1506
          %v1524 = vmul.bf16 %v676, %v1506
          %v1525 = vmul.bf16 %v677, %v1506
          %v1526 = vmul.bf16 %v678, %v1506
          %v1527 = vmul.bf16 %v679, %v1506
          %v1528 = vmul.bf16 %v680, %v1506
          %v1529 = vmul.bf16 %v681, %v1506
          %v1530 = vmul.bf16 %v682, %v1506
          %v1531 = vmul.bf16 %v683, %v1506
          %v1532 = vmul.bf16 %v684, %v1506
          %v1533 = vmul.bf16 %v685, %v1506
          %v1534 = vmul.bf16 %v686, %v1506
          %v1535 = vmul.bf16 %v687, %v1506
          %v1536 = vmul.bf16 %v688, %v1506
          %v1537 = vmul.bf16 %v689, %v1506
          %v1538 = vmul.bf16 %v690, %v1506
          %v1539 = vmul.bf16 %v691, %v1506
          %1540 = vset.pattern.permute.xlu0 1
          %1541 = vperm.xlu0 %1540, %v693
          %v1542 = vpop.permute.xlu0 %1541
          %1544 = vset.pattern.permute.xlu0 1
          %1545 = vperm.xlu0 %1544, %v694
          %v1546 = vpop.permute.xlu0 %1545
          %1548 = vset.pattern.permute.xlu0 1
          %1549 = vperm.xlu0 %1548, %v695
          %v1550 = vpop.permute.xlu0 %1549
          %1552 = vset.pattern.permute.xlu0 1
          %1553 = vperm.xlu0 %1552, %v696
          %v1554 = vpop.permute.xlu0 %1553
          %1556 = vset.pattern.permute.xlu0 1
          %1557 = vperm.xlu0 %1556, %v697
          %v1558 = vpop.permute.xlu0 %1557
          %1560 = vset.pattern.permute.xlu0 1
          %1561 = vperm.xlu0 %1560, %v698
          %v1562 = vpop.permute.xlu0 %1561
          %1564 = vset.pattern.permute.xlu0 1
          %1565 = vperm.xlu0 %1564, %v699
          %v1566 = vpop.permute.xlu0 %1565
          %1568 = vset.pattern.permute.xlu0 1
          %1569 = vperm.xlu0 %1568, %v700
          %v1570 = vpop.permute.xlu0 %1569
          %1572 = vset.pattern.permute.xlu0 1
          %1573 = vperm.xlu0 %1572, %v701
          %v1574 = vpop.permute.xlu0 %1573
          %1576 = vset.pattern.permute.xlu0 1
          %1577 = vperm.xlu0 %1576, %v702
          %v1578 = vpop.permute.xlu0 %1577
          %1580 = vset.pattern.permute.xlu0 1
          %1581 = vperm.xlu0 %1580, %v703
          %v1582 = vpop.permute.xlu0 %1581
          %1584 = vset.pattern.permute.xlu0 1
          %1585 = vperm.xlu0 %1584, %v704
          %v1586 = vpop.permute.xlu0 %1585
          %1588 = vset.pattern.permute.xlu0 1
          %1589 = vperm.xlu0 %1588, %v705
          %v1590 = vpop.permute.xlu0 %1589
          %1592 = vset.pattern.permute.xlu0 1
          %1593 = vperm.xlu0 %1592, %v706
          %v1594 = vpop.permute.xlu0 %1593
          %1596 = vset.pattern.permute.xlu0 1
          %1597 = vperm.xlu0 %1596, %v707
          %v1598 = vpop.permute.xlu0 %1597
          %1600 = vset.pattern.permute.xlu0 1
          %1601 = vperm.xlu0 %1600, %v708
          %v1602 = vpop.permute.xlu0 %1601
          %v1604 = vlaneseq
          %v1605 = vshrl.u32 %v1604, 7
          %v1606 = vsub.s32 1, %v1605
          %v1607 = vrot.slane %v692, %v1606
          %v1608 = vlaneseq
          %v1609 = vshrl.u32 %v1608, 7
          %v1610 = vsub.s32 3, %v1609
          %v1611 = vrot.slane %v692, %v1610
          %v1614 = vlaneseq
          %v1615 = vshrl.u32 %v1614, 7
          %v1616 = vsub.s32 1, %v1615
          %v1617 = vrot.slane %v1607, %v1616
          %v1618 = vlaneseq
          %v1619 = vshrl.u32 %v1618, 7
          %v1620 = vsub.s32 1, %v1619
          %v1621 = vrot.slane %v1611, %v1620
          %v1622 = vadd.f32 %v1542, %v1617
          %v1623 = vadd.f32 %v1542, %v1621
          %v1624 = vadd.f32 %v1546, %v1617
          %v1625 = vadd.f32 %v1546, %v1621
          %v1626 = vadd.f32 %v1550, %v1617
          %v1627 = vadd.f32 %v1550, %v1621
          %v1628 = vadd.f32 %v1554, %v1617
          %v1629 = vadd.f32 %v1554, %v1621
          %v1630 = vadd.f32 %v1558, %v1617
          %v1631 = vadd.f32 %v1558, %v1621
          %v1632 = vadd.f32 %v1562, %v1617
          %v1633 = vadd.f32 %v1562, %v1621
          %v1634 = vadd.f32 %v1566, %v1617
          %v1635 = vadd.f32 %v1566, %v1621
          %v1636 = vadd.f32 %v1570, %v1617
          %v1637 = vadd.f32 %v1570, %v1621
          %v1638 = vadd.f32 %v1574, %v1617
          %v1639 = vadd.f32 %v1574, %v1621
          %v1640 = vadd.f32 %v1578, %v1617
          %v1641 = vadd.f32 %v1578, %v1621
          %v1642 = vadd.f32 %v1582, %v1617
          %v1643 = vadd.f32 %v1582, %v1621
          %v1644 = vadd.f32 %v1586, %v1617
          %v1645 = vadd.f32 %v1586, %v1621
          %v1646 = vadd.f32 %v1590, %v1617
          %v1647 = vadd.f32 %v1590, %v1621
          %v1648 = vadd.f32 %v1594, %v1617
          %v1649 = vadd.f32 %v1594, %v1621
          %v1650 = vadd.f32 %v1598, %v1617
          %v1651 = vadd.f32 %v1598, %v1621
          %v1652 = vadd.f32 %v1602, %v1617
          %v1653 = vadd.f32 %v1602, %v1621
          %v1654 = vmul.f32 %v1622, 0.2
          %v1655 = vmul.f32 %v1623, 0.2
          %v1656 = vmul.f32 %v1624, 0.2
          %v1657 = vmul.f32 %v1625, 0.2
          %v1658 = vmul.f32 %v1626, 0.2
          %v1659 = vmul.f32 %v1627, 0.2
          %v1660 = vmul.f32 %v1628, 0.2
          %v1661 = vmul.f32 %v1629, 0.2
          %v1662 = vmul.f32 %v1630, 0.2
          %v1663 = vmul.f32 %v1631, 0.2
          %v1664 = vmul.f32 %v1632, 0.2
          %v1665 = vmul.f32 %v1633, 0.2
          %v1666 = vmul.f32 %v1634, 0.2
          %v1667 = vmul.f32 %v1635, 0.2
          %v1668 = vmul.f32 %v1636, 0.2
          %v1669 = vmul.f32 %v1637, 0.2
          %v1670 = vmul.f32 %v1638, 0.2
          %v1671 = vmul.f32 %v1639, 0.2
          %v1672 = vmul.f32 %v1640, 0.2
          %v1673 = vmul.f32 %v1641, 0.2
          %v1674 = vmul.f32 %v1642, 0.2
          %v1675 = vmul.f32 %v1643, 0.2
          %v1676 = vmul.f32 %v1644, 0.2
          %v1677 = vmul.f32 %v1645, 0.2
          %v1678 = vmul.f32 %v1646, 0.2
          %v1679 = vmul.f32 %v1647, 0.2
          %v1680 = vmul.f32 %v1648, 0.2
          %v1681 = vmul.f32 %v1649, 0.2
          %v1682 = vmul.f32 %v1650, 0.2
          %v1683 = vmul.f32 %v1651, 0.2
          %v1684 = vmul.f32 %v1652, 0.2
          %v1685 = vmul.f32 %v1653, 0.2
          %v1686 = vmax.f32 %v1622, %v1654
          %v1687 = vmax.f32 %v1623, %v1655
          %v1688 = vmax.f32 %v1624, %v1656
          %v1689 = vmax.f32 %v1625, %v1657
          %v1690 = vmax.f32 %v1626, %v1658
          %v1691 = vmax.f32 %v1627, %v1659
          %v1692 = vmax.f32 %v1628, %v1660
          %v1693 = vmax.f32 %v1629, %v1661
          %v1694 = vmax.f32 %v1630, %v1662
          %v1695 = vmax.f32 %v1631, %v1663
          %v1696 = vmax.f32 %v1632, %v1664
          %v1697 = vmax.f32 %v1633, %v1665
          %v1698 = vmax.f32 %v1634, %v1666
          %v1699 = vmax.f32 %v1635, %v1667
          %v1700 = vmax.f32 %v1636, %v1668
          %v1701 = vmax.f32 %v1637, %v1669
          %v1702 = vmax.f32 %v1638, %v1670
          %v1703 = vmax.f32 %v1639, %v1671
          %v1704 = vmax.f32 %v1640, %v1672
          %v1705 = vmax.f32 %v1641, %v1673
          %v1706 = vmax.f32 %v1642, %v1674
          %v1707 = vmax.f32 %v1643, %v1675
          %v1708 = vmax.f32 %v1644, %v1676
          %v1709 = vmax.f32 %v1645, %v1677
          %v1710 = vmax.f32 %v1646, %v1678
          %v1711 = vmax.f32 %v1647, %v1679
          %v1712 = vmax.f32 %v1648, %v1680
          %v1713 = vmax.f32 %v1649, %v1681
          %v1714 = vmax.f32 %v1650, %v1682
          %v1715 = vmax.f32 %v1651, %v1683
          %v1716 = vmax.f32 %v1652, %v1684
          %v1717 = vmax.f32 %v1653, %v1685
          %v1718 = vsel %vm938, %v1686, -1e+30
          %v1719 = vsel %vm939, %v1687, -1e+30
          %v1720 = vsel %vm940, %v1688, -1e+30
          %v1721 = vsel %vm941, %v1689, -1e+30
          %v1722 = vsel %vm942, %v1690, -1e+30
          %v1723 = vsel %vm943, %v1691, -1e+30
          %v1724 = vsel %vm944, %v1692, -1e+30
          %v1725 = vsel %vm945, %v1693, -1e+30
          %v1726 = vsel %vm946, %v1694, -1e+30
          %v1727 = vsel %vm947, %v1695, -1e+30
          %v1728 = vsel %vm948, %v1696, -1e+30
          %v1729 = vsel %vm949, %v1697, -1e+30
          %v1730 = vsel %vm950, %v1698, -1e+30
          %v1731 = vsel %vm951, %v1699, -1e+30
          %v1732 = vsel %vm952, %v1700, -1e+30
          %v1733 = vsel %vm953, %v1701, -1e+30
          %v1734 = vsel %vm954, %v1702, -1e+30
          %v1735 = vsel %vm955, %v1703, -1e+30
          %v1736 = vsel %vm956, %v1704, -1e+30
          %v1737 = vsel %vm957, %v1705, -1e+30
          %v1738 = vsel %vm958, %v1706, -1e+30
          %v1739 = vsel %vm959, %v1707, -1e+30
          %v1740 = vsel %vm960, %v1708, -1e+30
          %v1741 = vsel %vm961, %v1709, -1e+30
          %v1742 = vsel %vm962, %v1710, -1e+30
          %v1743 = vsel %vm963, %v1711, -1e+30
          %v1744 = vsel %vm964, %v1712, -1e+30
          %v1745 = vsel %vm965, %v1713, -1e+30
          %v1746 = vsel %vm966, %v1714, -1e+30
          %v1747 = vsel %vm967, %v1715, -1e+30
          %v1748 = vsel %vm968, %v1716, -1e+30
          %v1749 = vsel %vm969, %v1717, -1e+30
          %v1750 = vmax.f32 %v1718, %v1719
          %1751 = vmax.xlane.f32.xlu0 %v1750
          %v1752 = vpop.xlane.xlu0 %1751
          %v1753 = vmax.f32 %v1720, %v1721
          %1754 = vmax.xlane.f32.xlu0 %v1753
          %v1755 = vpop.xlane.xlu0 %1754
          %v1756 = vmax.f32 %v1722, %v1723
          %1757 = vmax.xlane.f32.xlu0 %v1756
          %v1758 = vpop.xlane.xlu0 %1757
          %v1759 = vmax.f32 %v1724, %v1725
          %1760 = vmax.xlane.f32.xlu0 %v1759
          %v1761 = vpop.xlane.xlu0 %1760
          %v1762 = vmax.f32 %v1726, %v1727
          %1763 = vmax.xlane.f32.xlu0 %v1762
          %v1764 = vpop.xlane.xlu0 %1763
          %v1765 = vmax.f32 %v1728, %v1729
          %1766 = vmax.xlane.f32.xlu0 %v1765
          %v1767 = vpop.xlane.xlu0 %1766
          %v1768 = vmax.f32 %v1730, %v1731
          %1769 = vmax.xlane.f32.xlu0 %v1768
          %v1770 = vpop.xlane.xlu0 %1769
          %v1771 = vmax.f32 %v1732, %v1733
          %1772 = vmax.xlane.f32.xlu0 %v1771
          %v1773 = vpop.xlane.xlu0 %1772
          %v1774 = vmax.f32 %v1734, %v1735
          %1775 = vmax.xlane.f32.xlu0 %v1774
          %v1776 = vpop.xlane.xlu0 %1775
          %v1777 = vmax.f32 %v1736, %v1737
          %1778 = vmax.xlane.f32.xlu0 %v1777
          %v1779 = vpop.xlane.xlu0 %1778
          %v1780 = vmax.f32 %v1738, %v1739
          %1781 = vmax.xlane.f32.xlu0 %v1780
          %v1782 = vpop.xlane.xlu0 %1781
          %v1783 = vmax.f32 %v1740, %v1741
          %1784 = vmax.xlane.f32.xlu0 %v1783
          %v1785 = vpop.xlane.xlu0 %1784
          %v1786 = vmax.f32 %v1742, %v1743
          %1787 = vmax.xlane.f32.xlu0 %v1786
          %v1788 = vpop.xlane.xlu0 %1787
          %v1789 = vmax.f32 %v1744, %v1745
          %1790 = vmax.xlane.f32.xlu0 %v1789
          %v1791 = vpop.xlane.xlu0 %1790
          %v1792 = vmax.f32 %v1746, %v1747
          %1793 = vmax.xlane.f32.xlu0 %v1792
          %v1794 = vpop.xlane.xlu0 %1793
          %v1795 = vmax.f32 %v1748, %v1749
          %1796 = vmax.xlane.f32.xlu0 %v1795
          %v1797 = vpop.xlane.xlu0 %1796
          %v1798 = vmax.f32 %v709, %v1752
          %v1799 = vmax.f32 %v710, %v1755
          %v1800 = vmax.f32 %v711, %v1758
          %v1801 = vmax.f32 %v712, %v1761
          %v1802 = vmax.f32 %v713, %v1764
          %v1803 = vmax.f32 %v714, %v1767
          %v1804 = vmax.f32 %v715, %v1770
          %v1805 = vmax.f32 %v716, %v1773
          %v1806 = vmax.f32 %v717, %v1776
          %v1807 = vmax.f32 %v718, %v1779
          %v1808 = vmax.f32 %v719, %v1782
          %v1809 = vmax.f32 %v720, %v1785
          %v1810 = vmax.f32 %v721, %v1788
          %v1811 = vmax.f32 %v722, %v1791
          %v1812 = vmax.f32 %v723, %v1794
          %v1813 = vmax.f32 %v724, %v1797
          %v1814 = vsub.f32 %v709, %v1798
          %v1815 = vsub.f32 %v710, %v1799
          %v1816 = vsub.f32 %v711, %v1800
          %v1817 = vsub.f32 %v712, %v1801
          %v1818 = vsub.f32 %v713, %v1802
          %v1819 = vsub.f32 %v714, %v1803
          %v1820 = vsub.f32 %v715, %v1804
          %v1821 = vsub.f32 %v716, %v1805
          %v1822 = vsub.f32 %v717, %v1806
          %v1823 = vsub.f32 %v718, %v1807
          %v1824 = vsub.f32 %v719, %v1808
          %v1825 = vsub.f32 %v720, %v1809
          %v1826 = vsub.f32 %v721, %v1810
          %v1827 = vsub.f32 %v722, %v1811
          %v1828 = vsub.f32 %v723, %v1812
          %v1829 = vsub.f32 %v724, %v1813
          %v1830 = vmul.f32 %v1814, 1.442695
          %v1831 = vpow.pop %v1830
          %v1832 = vmul.f32 %v1815, 1.442695
          %v1833 = vpow.pop %v1832
          %v1834 = vmul.f32 %v1816, 1.442695
          %v1835 = vpow.pop %v1834
          %v1836 = vmul.f32 %v1817, 1.442695
          %v1837 = vpow.pop %v1836
          %v1838 = vmul.f32 %v1818, 1.442695
          %v1839 = vpow.pop %v1838
          %v1840 = vmul.f32 %v1819, 1.442695
          %v1841 = vpow.pop %v1840
          %v1842 = vmul.f32 %v1820, 1.442695
          %v1843 = vpow.pop %v1842
          %v1844 = vmul.f32 %v1821, 1.442695
          %v1845 = vpow.pop %v1844
          %v1846 = vmul.f32 %v1822, 1.442695
          %v1847 = vpow.pop %v1846
          %v1848 = vmul.f32 %v1823, 1.442695
          %v1849 = vpow.pop %v1848
          %v1850 = vmul.f32 %v1824, 1.442695
          %v1851 = vpow.pop %v1850
          %v1852 = vmul.f32 %v1825, 1.442695
          %v1853 = vpow.pop %v1852
          %v1854 = vmul.f32 %v1826, 1.442695
          %v1855 = vpow.pop %v1854
          %v1856 = vmul.f32 %v1827, 1.442695
          %v1857 = vpow.pop %v1856
          %v1858 = vmul.f32 %v1828, 1.442695
          %v1859 = vpow.pop %v1858
          %v1860 = vmul.f32 %v1829, 1.442695
          %v1861 = vpow.pop %v1860
          %1863 = vset.pattern.permute.xlu0 1
          %1864 = vperm.xlu0 %1863, %v1798
          %v1865 = vpop.permute.xlu0 %1864
          %1868 = vset.pattern.permute.xlu0 1
          %1869 = vperm.xlu0 %1868, %v1799
          %v1870 = vpop.permute.xlu0 %1869
          %1873 = vset.pattern.permute.xlu0 1
          %1874 = vperm.xlu0 %1873, %v1800
          %v1875 = vpop.permute.xlu0 %1874
          %1878 = vset.pattern.permute.xlu0 1
          %1879 = vperm.xlu0 %1878, %v1801
          %v1880 = vpop.permute.xlu0 %1879
          %1883 = vset.pattern.permute.xlu0 1
          %1884 = vperm.xlu0 %1883, %v1802
          %v1885 = vpop.permute.xlu0 %1884
          %1888 = vset.pattern.permute.xlu0 1
          %1889 = vperm.xlu0 %1888, %v1803
          %v1890 = vpop.permute.xlu0 %1889
          %1893 = vset.pattern.permute.xlu0 1
          %1894 = vperm.xlu0 %1893, %v1804
          %v1895 = vpop.permute.xlu0 %1894
          %1898 = vset.pattern.permute.xlu0 1
          %1899 = vperm.xlu0 %1898, %v1805
          %v1900 = vpop.permute.xlu0 %1899
          %1903 = vset.pattern.permute.xlu0 1
          %1904 = vperm.xlu0 %1903, %v1806
          %v1905 = vpop.permute.xlu0 %1904
          %1908 = vset.pattern.permute.xlu0 1
          %1909 = vperm.xlu0 %1908, %v1807
          %v1910 = vpop.permute.xlu0 %1909
          %1913 = vset.pattern.permute.xlu0 1
          %1914 = vperm.xlu0 %1913, %v1808
          %v1915 = vpop.permute.xlu0 %1914
          %1918 = vset.pattern.permute.xlu0 1
          %1919 = vperm.xlu0 %1918, %v1809
          %v1920 = vpop.permute.xlu0 %1919
          %1923 = vset.pattern.permute.xlu0 1
          %1924 = vperm.xlu0 %1923, %v1810
          %v1925 = vpop.permute.xlu0 %1924
          %1928 = vset.pattern.permute.xlu0 1
          %1929 = vperm.xlu0 %1928, %v1811
          %v1930 = vpop.permute.xlu0 %1929
          %1933 = vset.pattern.permute.xlu0 1
          %1934 = vperm.xlu0 %1933, %v1812
          %v1935 = vpop.permute.xlu0 %1934
          %1938 = vset.pattern.permute.xlu0 1
          %1939 = vperm.xlu0 %1938, %v1813
          %v1940 = vpop.permute.xlu0 %1939
          %v1942 = vsub.f32 %v1718, %v1865
          %v1943 = vsub.f32 %v1719, %v1865
          %v1944 = vsub.f32 %v1720, %v1870
          %v1945 = vsub.f32 %v1721, %v1870
          %v1946 = vsub.f32 %v1722, %v1875
          %v1947 = vsub.f32 %v1723, %v1875
          %v1948 = vsub.f32 %v1724, %v1880
          %v1949 = vsub.f32 %v1725, %v1880
          %v1950 = vsub.f32 %v1726, %v1885
          %v1951 = vsub.f32 %v1727, %v1885
          %v1952 = vsub.f32 %v1728, %v1890
          %v1953 = vsub.f32 %v1729, %v1890
          %v1954 = vsub.f32 %v1730, %v1895
          %v1955 = vsub.f32 %v1731, %v1895
          %v1956 = vsub.f32 %v1732, %v1900
          %v1957 = vsub.f32 %v1733, %v1900
          %v1958 = vsub.f32 %v1734, %v1905
          %v1959 = vsub.f32 %v1735, %v1905
          %v1960 = vsub.f32 %v1736, %v1910
          %v1961 = vsub.f32 %v1737, %v1910
          %v1962 = vsub.f32 %v1738, %v1915
          %v1963 = vsub.f32 %v1739, %v1915
          %v1964 = vsub.f32 %v1740, %v1920
          %v1965 = vsub.f32 %v1741, %v1920
          %v1966 = vsub.f32 %v1742, %v1925
          %v1967 = vsub.f32 %v1743, %v1925
          %v1968 = vsub.f32 %v1744, %v1930
          %v1969 = vsub.f32 %v1745, %v1930
          %v1970 = vsub.f32 %v1746, %v1935
          %v1971 = vsub.f32 %v1747, %v1935
          %v1972 = vsub.f32 %v1748, %v1940
          %v1973 = vsub.f32 %v1749, %v1940
          %v1974 = vmul.f32 %v1942, 1.442695
          %v1975 = vpow.pop %v1974
          %v1976 = vmul.f32 %v1943, 1.442695
          %v1977 = vpow.pop %v1976
          %v1978 = vmul.f32 %v1944, 1.442695
          %v1979 = vpow.pop %v1978
          %v1980 = vmul.f32 %v1945, 1.442695
          %v1981 = vpow.pop %v1980
          %v1982 = vmul.f32 %v1946, 1.442695
          %v1983 = vpow.pop %v1982
          %v1984 = vmul.f32 %v1947, 1.442695
          %v1985 = vpow.pop %v1984
          %v1986 = vmul.f32 %v1948, 1.442695
          %v1987 = vpow.pop %v1986
          %v1988 = vmul.f32 %v1949, 1.442695
          %v1989 = vpow.pop %v1988
          %v1990 = vmul.f32 %v1950, 1.442695
          %v1991 = vpow.pop %v1990
          %v1992 = vmul.f32 %v1951, 1.442695
          %v1993 = vpow.pop %v1992
          %v1994 = vmul.f32 %v1952, 1.442695
          %v1995 = vpow.pop %v1994
          %v1996 = vmul.f32 %v1953, 1.442695
          %v1997 = vpow.pop %v1996
          %v1998 = vmul.f32 %v1954, 1.442695
          %v1999 = vpow.pop %v1998
          %v2000 = vmul.f32 %v1955, 1.442695
          %v2001 = vpow.pop %v2000
          %v2002 = vmul.f32 %v1956, 1.442695
          %v2003 = vpow.pop %v2002
          %v2004 = vmul.f32 %v1957, 1.442695
          %v2005 = vpow.pop %v2004
          %v2006 = vmul.f32 %v1958, 1.442695
          %v2007 = vpow.pop %v2006
          %v2008 = vmul.f32 %v1959, 1.442695
          %v2009 = vpow.pop %v2008
          %v2010 = vmul.f32 %v1960, 1.442695
          %v2011 = vpow.pop %v2010
          %v2012 = vmul.f32 %v1961, 1.442695
          %v2013 = vpow.pop %v2012
          %v2014 = vmul.f32 %v1962, 1.442695
          %v2015 = vpow.pop %v2014
          %v2016 = vmul.f32 %v1963, 1.442695
          %v2017 = vpow.pop %v2016
          %v2018 = vmul.f32 %v1964, 1.442695
          %v2019 = vpow.pop %v2018
          %v2020 = vmul.f32 %v1965, 1.442695
          %v2021 = vpow.pop %v2020
          %v2022 = vmul.f32 %v1966, 1.442695
          %v2023 = vpow.pop %v2022
          %v2024 = vmul.f32 %v1967, 1.442695
          %v2025 = vpow.pop %v2024
          %v2026 = vmul.f32 %v1968, 1.442695
          %v2027 = vpow.pop %v2026
          %v2028 = vmul.f32 %v1969, 1.442695
          %v2029 = vpow.pop %v2028
          %v2030 = vmul.f32 %v1970, 1.442695
          %v2031 = vpow.pop %v2030
          %v2032 = vmul.f32 %v1971, 1.442695
          %v2033 = vpow.pop %v2032
          %v2034 = vmul.f32 %v1972, 1.442695
          %v2035 = vpow.pop %v2034
          %v2036 = vmul.f32 %v1973, 1.442695
          %v2037 = vpow.pop %v2036
          %v2038 = vmul.f32 %v1975, %v628
          %v2039 = vmul.f32 %v1977, %v629
          %v2040 = vmul.f32 %v1979, %v630
          %v2041 = vmul.f32 %v1981, %v631
          %v2042 = vmul.f32 %v1983, %v632
          %v2043 = vmul.f32 %v1985, %v633
          %v2044 = vmul.f32 %v1987, %v634
          %v2045 = vmul.f32 %v1989, %v635
          %v2046 = vmul.f32 %v1991, %v636
          %v2047 = vmul.f32 %v1993, %v637
          %v2048 = vmul.f32 %v1995, %v638
          %v2049 = vmul.f32 %v1997, %v639
          %v2050 = vmul.f32 %v1999, %v640
          %v2051 = vmul.f32 %v2001, %v641
          %v2052 = vmul.f32 %v2003, %v642
          %v2053 = vmul.f32 %v2005, %v643
          %v2054 = vmul.f32 %v2007, %v644
          %v2055 = vmul.f32 %v2009, %v645
          %v2056 = vmul.f32 %v2011, %v646
          %v2057 = vmul.f32 %v2013, %v647
          %v2058 = vmul.f32 %v2015, %v648
          %v2059 = vmul.f32 %v2017, %v649
          %v2060 = vmul.f32 %v2019, %v650
          %v2061 = vmul.f32 %v2021, %v651
          %v2062 = vmul.f32 %v2023, %v652
          %v2063 = vmul.f32 %v2025, %v653
          %v2064 = vmul.f32 %v2027, %v654
          %v2065 = vmul.f32 %v2029, %v655
          %v2066 = vmul.f32 %v2031, %v656
          %v2067 = vmul.f32 %v2033, %v657
          %v2068 = vmul.f32 %v2035, %v658
          %v2069 = vmul.f32 %v2037, %v659
          %v2070 = vmul.f32 %v1831, %v725
          %v2071 = vmul.f32 %v1833, %v726
          %v2072 = vmul.f32 %v1835, %v727
          %v2073 = vmul.f32 %v1837, %v728
          %v2074 = vmul.f32 %v1839, %v729
          %v2075 = vmul.f32 %v1841, %v730
          %v2076 = vmul.f32 %v1843, %v731
          %v2077 = vmul.f32 %v1845, %v732
          %v2078 = vmul.f32 %v1847, %v733
          %v2079 = vmul.f32 %v1849, %v734
          %v2080 = vmul.f32 %v1851, %v735
          %v2081 = vmul.f32 %v1853, %v736
          %v2082 = vmul.f32 %v1855, %v737
          %v2083 = vmul.f32 %v1857, %v738
          %v2084 = vmul.f32 %v1859, %v739
          %v2085 = vmul.f32 %v1861, %v740
          %v2086 = vadd.f32 %v2038, %v2039
          %2087 = vadd.xlane.f32.xlu0 %v2086
          %v2088 = vpop.xlane.xlu0 %2087
          %v2089 = vadd.f32 %v2040, %v2041
          %2090 = vadd.xlane.f32.xlu0 %v2089
          %v2091 = vpop.xlane.xlu0 %2090
          %v2092 = vadd.f32 %v2042, %v2043
          %2093 = vadd.xlane.f32.xlu0 %v2092
          %v2094 = vpop.xlane.xlu0 %2093
          %v2095 = vadd.f32 %v2044, %v2045
          %2096 = vadd.xlane.f32.xlu0 %v2095
          %v2097 = vpop.xlane.xlu0 %2096
          %v2098 = vadd.f32 %v2046, %v2047
          %2099 = vadd.xlane.f32.xlu0 %v2098
          %v2100 = vpop.xlane.xlu0 %2099
          %v2101 = vadd.f32 %v2048, %v2049
          %2102 = vadd.xlane.f32.xlu0 %v2101
          %v2103 = vpop.xlane.xlu0 %2102
          %v2104 = vadd.f32 %v2050, %v2051
          %2105 = vadd.xlane.f32.xlu0 %v2104
          %v2106 = vpop.xlane.xlu0 %2105
          %v2107 = vadd.f32 %v2052, %v2053
          %2108 = vadd.xlane.f32.xlu0 %v2107
          %v2109 = vpop.xlane.xlu0 %2108
          %v2110 = vadd.f32 %v2054, %v2055
          %2111 = vadd.xlane.f32.xlu0 %v2110
          %v2112 = vpop.xlane.xlu0 %2111
          %v2113 = vadd.f32 %v2056, %v2057
          %2114 = vadd.xlane.f32.xlu0 %v2113
          %v2115 = vpop.xlane.xlu0 %2114
          %v2116 = vadd.f32 %v2058, %v2059
          %2117 = vadd.xlane.f32.xlu0 %v2116
          %v2118 = vpop.xlane.xlu0 %2117
          %v2119 = vadd.f32 %v2060, %v2061
          %2120 = vadd.xlane.f32.xlu0 %v2119
          %v2121 = vpop.xlane.xlu0 %2120
          %v2122 = vadd.f32 %v2062, %v2063
          %2123 = vadd.xlane.f32.xlu0 %v2122
          %v2124 = vpop.xlane.xlu0 %2123
          %v2125 = vadd.f32 %v2064, %v2065
          %2126 = vadd.xlane.f32.xlu0 %v2125
          %v2127 = vpop.xlane.xlu0 %2126
          %v2128 = vadd.f32 %v2066, %v2067
          %2129 = vadd.xlane.f32.xlu0 %v2128
          %v2130 = vpop.xlane.xlu0 %2129
          %v2131 = vadd.f32 %v2068, %v2069
          %2132 = vadd.xlane.f32.xlu0 %v2131
          %v2133 = vpop.xlane.xlu0 %2132
          %v2134 = vadd.f32 %v2070, %v2088
          %v2135 = vadd.f32 %v2071, %v2091
          %v2136 = vadd.f32 %v2072, %v2094
          %v2137 = vadd.f32 %v2073, %v2097
          %v2138 = vadd.f32 %v2074, %v2100
          %v2139 = vadd.f32 %v2075, %v2103
          %v2140 = vadd.f32 %v2076, %v2106
          %v2141 = vadd.f32 %v2077, %v2109
          %v2142 = vadd.f32 %v2078, %v2112
          %v2143 = vadd.f32 %v2079, %v2115
          %v2144 = vadd.f32 %v2080, %v2118
          %v2145 = vadd.f32 %v2081, %v2121
          %v2146 = vadd.f32 %v2082, %v2124
          %v2147 = vadd.f32 %v2083, %v2127
          %v2148 = vadd.f32 %v2084, %v2130
          %v2149 = vadd.f32 %v2085, %v2133
          %2151 = vset.pattern.permute.xlu0 1
          %2152 = vperm.xlu0 %2151, %v1831
          %v2153 = vpop.permute.xlu0 %2152
          %2156 = vset.pattern.permute.xlu0 1
          %2157 = vperm.xlu0 %2156, %v1833
          %v2158 = vpop.permute.xlu0 %2157
          %2161 = vset.pattern.permute.xlu0 1
          %2162 = vperm.xlu0 %2161, %v1835
          %v2163 = vpop.permute.xlu0 %2162
          %2166 = vset.pattern.permute.xlu0 1
          %2167 = vperm.xlu0 %2166, %v1837
          %v2168 = vpop.permute.xlu0 %2167
          %2171 = vset.pattern.permute.xlu0 1
          %2172 = vperm.xlu0 %2171, %v1839
          %v2173 = vpop.permute.xlu0 %2172
          %2176 = vset.pattern.permute.xlu0 1
          %2177 = vperm.xlu0 %2176, %v1841
          %v2178 = vpop.permute.xlu0 %2177
          %2181 = vset.pattern.permute.xlu0 1
          %2182 = vperm.xlu0 %2181, %v1843
          %v2183 = vpop.permute.xlu0 %2182
          %2186 = vset.pattern.permute.xlu0 1
          %2187 = vperm.xlu0 %2186, %v1845
          %v2188 = vpop.permute.xlu0 %2187
          %2191 = vset.pattern.permute.xlu0 1
          %2192 = vperm.xlu0 %2191, %v1847
          %v2193 = vpop.permute.xlu0 %2192
          %2196 = vset.pattern.permute.xlu0 1
          %2197 = vperm.xlu0 %2196, %v1849
          %v2198 = vpop.permute.xlu0 %2197
          %2201 = vset.pattern.permute.xlu0 1
          %2202 = vperm.xlu0 %2201, %v1851
          %v2203 = vpop.permute.xlu0 %2202
          %2206 = vset.pattern.permute.xlu0 1
          %2207 = vperm.xlu0 %2206, %v1853
          %v2208 = vpop.permute.xlu0 %2207
          %2211 = vset.pattern.permute.xlu0 1
          %2212 = vperm.xlu0 %2211, %v1855
          %v2213 = vpop.permute.xlu0 %2212
          %2216 = vset.pattern.permute.xlu0 1
          %2217 = vperm.xlu0 %2216, %v1857
          %v2218 = vpop.permute.xlu0 %2217
          %2221 = vset.pattern.permute.xlu0 1
          %2222 = vperm.xlu0 %2221, %v1859
          %v2223 = vpop.permute.xlu0 %2222
          %2226 = vset.pattern.permute.xlu0 1
          %2227 = vperm.xlu0 %2226, %v1861
          %v2228 = vpop.permute.xlu0 %2227
          %v2230 = vpack.c.bf16 %v2040, %v2038
          %v2231 = vpack.c.bf16 %v2041, %v2039
          %v2232 = vpack.c.bf16 %v2044, %v2042
          %v2233 = vpack.c.bf16 %v2045, %v2043
          %v2234 = vpack.c.bf16 %v2048, %v2046
          %v2235 = vpack.c.bf16 %v2049, %v2047
          %v2236 = vpack.c.bf16 %v2052, %v2050
          %v2237 = vpack.c.bf16 %v2053, %v2051
          %v2238 = vpack.c.bf16 %v2056, %v2054
          %v2239 = vpack.c.bf16 %v2057, %v2055
          %v2240 = vpack.c.bf16 %v2060, %v2058
          %v2241 = vpack.c.bf16 %v2061, %v2059
          %v2242 = vpack.c.bf16 %v2064, %v2062
          %v2243 = vpack.c.bf16 %v2065, %v2063
          %v2244 = vpack.c.bf16 %v2068, %v2066
          %v2245 = vpack.c.bf16 %v2069, %v2067
          %vm2246 = vcmp.ge.s32.totalorder %v742, 8
          %vm2247 = vcmp.lt.s32.totalorder %v742, 16
          %vm2248 = vmand %vm2246, %vm2247
          %v2249 = vsel %vm2248, 1, 0
          %v2250 = vcvt.s32.f32 %v2249
          %v2251 = vpack.c.bf16 %v2250, %v2250
          %v2253 = vunpack.c.l.b16 %v2251
          %v2254 = vpack.c.b16 %v2253, %v2253
          %v2256 = vmul.bf16 %v660, %v2254
          %v2257 = vmul.bf16 %v661, %v2254
          %v2258 = vmul.bf16 %v662, %v2254
          %v2259 = vmul.bf16 %v663, %v2254
          %v2260 = vmul.bf16 %v664, %v2254
          %v2261 = vmul.bf16 %v665, %v2254
          %v2262 = vmul.bf16 %v666, %v2254
          %v2263 = vmul.bf16 %v667, %v2254
          %v2264 = vmul.bf16 %v668, %v2254
          %v2265 = vmul.bf16 %v669, %v2254
          %v2266 = vmul.bf16 %v670, %v2254
          %v2267 = vmul.bf16 %v671, %v2254
          %v2268 = vmul.bf16 %v672, %v2254
          %v2269 = vmul.bf16 %v673, %v2254
          %v2270 = vmul.bf16 %v674, %v2254
          %v2271 = vmul.bf16 %v675, %v2254
          %v2272 = vmul.bf16 %v676, %v2254
          %v2273 = vmul.bf16 %v677, %v2254
          %v2274 = vmul.bf16 %v678, %v2254
          %v2275 = vmul.bf16 %v679, %v2254
          %v2276 = vmul.bf16 %v680, %v2254
          %v2277 = vmul.bf16 %v681, %v2254
          %v2278 = vmul.bf16 %v682, %v2254
          %v2279 = vmul.bf16 %v683, %v2254
          %v2280 = vmul.bf16 %v684, %v2254
          %v2281 = vmul.bf16 %v685, %v2254
          %v2282 = vmul.bf16 %v686, %v2254
          %v2283 = vmul.bf16 %v687, %v2254
          %v2284 = vmul.bf16 %v688, %v2254
          %v2285 = vmul.bf16 %v689, %v2254
          %v2286 = vmul.bf16 %v690, %v2254
          %v2287 = vmul.bf16 %v691, %v2254
          %vm2288 = vcmask 7168
          %v2289 = vsel %vm2288, %v1050, %v1798
          %v2290 = vsel %vm2288, %v1051, %v1799
          %v2291 = vsel %vm2288, %v1052, %v1800
          %v2292 = vsel %vm2288, %v1053, %v1801
          %v2293 = vsel %vm2288, %v1054, %v1802
          %v2294 = vsel %vm2288, %v1055, %v1803
          %v2295 = vsel %vm2288, %v1056, %v1804
          %v2296 = vsel %vm2288, %v1057, %v1805
          %v2297 = vsel %vm2288, %v1058, %v1806
          %v2298 = vsel %vm2288, %v1059, %v1807
          %v2299 = vsel %vm2288, %v1060, %v1808
          %v2300 = vsel %vm2288, %v1061, %v1809
          %v2301 = vsel %vm2288, %v1062, %v1810
          %v2302 = vsel %vm2288, %v1063, %v1811
          %v2303 = vsel %vm2288, %v1064, %v1812
          %v2304 = vsel %vm2288, %v1065, %v1813
          %vm2305 = vcmask 15360
          %2306 = vst.msk [vmem:[#allocation2] sm:$0xff] %vm2305, %v2289
          %2307 = vst.msk [vmem:[#allocation2 + $0x8] sm:$0xff] %vm2305, %v2290
          %2308 = vst.msk [vmem:[#allocation2 + $0x10] sm:$0xff] %vm2305, %v2291
          %2309 = vst.msk [vmem:[#allocation2 + $0x18] sm:$0xff] %vm2305, %v2292
          %2310 = vst.msk [vmem:[#allocation2 + $0x20] sm:$0xff] %vm2305, %v2293
          %2311 = vst.msk [vmem:[#allocation2 + $0x28] sm:$0xff] %vm2305, %v2294
          %2312 = vst.msk [vmem:[#allocation2 + $0x30] sm:$0xff] %vm2305, %v2295
          %2313 = vst.msk [vmem:[#allocation2 + $0x38] sm:$0xff] %vm2305, %v2296
          %2314 = vst.msk [vmem:[#allocation2 + $0x40] sm:$0xff] %vm2305, %v2297
          %2315 = vst.msk [vmem:[#allocation2 + $0x48] sm:$0xff] %vm2305, %v2298
          %2316 = vst.msk [vmem:[#allocation2 + $0x50] sm:$0xff] %vm2305, %v2299
          %2317 = vst.msk [vmem:[#allocation2 + $0x58] sm:$0xff] %vm2305, %v2300
          %2318 = vst.msk [vmem:[#allocation2 + $0x60] sm:$0xff] %vm2305, %v2301
          %2319 = vst.msk [vmem:[#allocation2 + $0x68] sm:$0xff] %vm2305, %v2302
          %2320 = vst.msk [vmem:[#allocation2 + $0x70] sm:$0xff] %vm2305, %v2303
          %2321 = vst.msk [vmem:[#allocation2 + $0x78] sm:$0xff] %vm2305, %v2304
          %v2322 = vsel %vm2288, %v1386, %v2134
          %v2323 = vsel %vm2288, %v1387, %v2135
          %v2324 = vsel %vm2288, %v1388, %v2136
          %v2325 = vsel %vm2288, %v1389, %v2137
          %v2326 = vsel %vm2288, %v1390, %v2138
          %v2327 = vsel %vm2288, %v1391, %v2139
          %v2328 = vsel %vm2288, %v1392, %v2140
          %v2329 = vsel %vm2288, %v1393, %v2141
          %v2330 = vsel %vm2288, %v1394, %v2142
          %v2331 = vsel %vm2288, %v1395, %v2143
          %v2332 = vsel %vm2288, %v1396, %v2144
          %v2333 = vsel %vm2288, %v1397, %v2145
          %v2334 = vsel %vm2288, %v1398, %v2146
          %v2335 = vsel %vm2288, %v1399, %v2147
          %v2336 = vsel %vm2288, %v1400, %v2148
          %v2337 = vsel %vm2288, %v1401, %v2149
          %2338 = vst.msk [vmem:[#allocation3] sm:$0xff] %vm2305, %v2322
          %2339 = vst.msk [vmem:[#allocation3 + $0x8] sm:$0xff] %vm2305, %v2323
          %2340 = vst.msk [vmem:[#allocation3 + $0x10] sm:$0xff] %vm2305, %v2324
          %2341 = vst.msk [vmem:[#allocation3 + $0x18] sm:$0xff] %vm2305, %v2325
          %2342 = vst.msk [vmem:[#allocation3 + $0x20] sm:$0xff] %vm2305, %v2326
          %2343 = vst.msk [vmem:[#allocation3 + $0x28] sm:$0xff] %vm2305, %v2327
          %2344 = vst.msk [vmem:[#allocation3 + $0x30] sm:$0xff] %vm2305, %v2328
          %2345 = vst.msk [vmem:[#allocation3 + $0x38] sm:$0xff] %vm2305, %v2329
          %2346 = vst.msk [vmem:[#allocation3 + $0x40] sm:$0xff] %vm2305, %v2330
          %2347 = vst.msk [vmem:[#allocation3 + $0x48] sm:$0xff] %vm2305, %v2331
          %2348 = vst.msk [vmem:[#allocation3 + $0x50] sm:$0xff] %vm2305, %v2332
          %2349 = vst.msk [vmem:[#allocation3 + $0x58] sm:$0xff] %vm2305, %v2333
          %2350 = vst.msk [vmem:[#allocation3 + $0x60] sm:$0xff] %vm2305, %v2334
          %2351 = vst.msk [vmem:[#allocation3 + $0x68] sm:$0xff] %vm2305, %v2335
          %2352 = vst.msk [vmem:[#allocation3 + $0x70] sm:$0xff] %vm2305, %v2336
          %2353 = vst.msk [vmem:[#allocation3 + $0x78] sm:$0xff] %vm2305, %v2337
          %vm2354 = vcmask 64512
          %v2355 = vsel %vm2354, %v1405, %v2153
          %v2356 = vsel %vm2354, %v1410, %v2158
          %v2357 = vsel %vm2354, %v1415, %v2163
          %v2358 = vsel %vm2354, %v1420, %v2168
          %v2359 = vsel %vm2354, %v1425, %v2173
          %v2360 = vsel %vm2354, %v1430, %v2178
          %v2361 = vsel %vm2354, %v1435, %v2183
          %v2362 = vsel %vm2354, %v1440, %v2188
          %v2363 = vsel %vm2354, %v1445, %v2193
          %v2364 = vsel %vm2354, %v1450, %v2198
          %v2365 = vsel %vm2354, %v1455, %v2203
          %v2366 = vsel %vm2354, %v1460, %v2208
          %v2367 = vsel %vm2354, %v1465, %v2213
          %v2368 = vsel %vm2354, %v1470, %v2218
          %v2369 = vsel %vm2354, %v1475, %v2223
          %v2370 = vsel %vm2354, %v1480, %v2228
          %vm2371 = vcmask 130048
          %v2372 = vsel %vm2371, %v2355, 1.0
          %v2373 = vsel %vm2371, %v2356, 1.0
          %v2374 = vsel %vm2371, %v2357, 1.0
          %v2375 = vsel %vm2371, %v2358, 1.0
          %v2376 = vsel %vm2371, %v2359, 1.0
          %v2377 = vsel %vm2371, %v2360, 1.0
          %v2378 = vsel %vm2371, %v2361, 1.0
          %v2379 = vsel %vm2371, %v2362, 1.0
          %v2380 = vsel %vm2371, %v2363, 1.0
          %v2381 = vsel %vm2371, %v2364, 1.0
          %v2382 = vsel %vm2371, %v2365, 1.0
          %v2383 = vsel %vm2371, %v2366, 1.0
          %v2384 = vsel %vm2371, %v2367, 1.0
          %v2385 = vsel %vm2371, %v2368, 1.0
          %v2386 = vsel %vm2371, %v2369, 1.0
          %v2387 = vsel %vm2371, %v2370, 1.0
          %v2420 = vunpack.c.l.b16 %v1508
          %v2421 = vunpack.c.l.b16 %v1509
          %v2422 = vunpack.c.l.b16 %v1510
          %v2423 = vunpack.c.l.b16 %v1511
          %v2424 = vunpack.c.l.b16 %v1512
          %v2425 = vunpack.c.l.b16 %v1513
          %v2426 = vunpack.c.l.b16 %v1514
          %v2427 = vunpack.c.l.b16 %v1515
          %v2428 = vunpack.c.l.b16 %v1516
          %v2429 = vunpack.c.l.b16 %v1517
          %v2430 = vunpack.c.l.b16 %v1518
          %v2431 = vunpack.c.l.b16 %v1519
          %v2432 = vunpack.c.l.b16 %v1520
          %v2433 = vunpack.c.l.b16 %v1521
          %v2434 = vunpack.c.l.b16 %v1522
          %v2435 = vunpack.c.l.b16 %v1523
          %v2436 = vunpack.c.l.b16 %v1524
          %v2437 = vunpack.c.l.b16 %v1525
          %v2438 = vunpack.c.l.b16 %v1526
          %v2439 = vunpack.c.l.b16 %v1527
          %v2440 = vunpack.c.l.b16 %v1528
          %v2441 = vunpack.c.l.b16 %v1529
          %v2442 = vunpack.c.l.b16 %v1530
          %v2443 = vunpack.c.l.b16 %v1531
          %v2444 = vunpack.c.l.b16 %v1532
          %v2445 = vunpack.c.l.b16 %v1533
          %v2446 = vunpack.c.l.b16 %v1534
          %v2447 = vunpack.c.l.b16 %v1535
          %v2448 = vunpack.c.l.b16 %v1536
          %v2449 = vunpack.c.l.b16 %v1537
          %v2450 = vunpack.c.l.b16 %v1538
          %v2451 = vunpack.c.l.b16 %v1539
          %v2452 = vpack.c.b16 %v2421, %v2420
          %v2453 = vpack.c.b16 %v2423, %v2422
          %v2454 = vpack.c.b16 %v2425, %v2424
          %v2455 = vpack.c.b16 %v2427, %v2426
          %v2456 = vpack.c.b16 %v2429, %v2428
          %v2457 = vpack.c.b16 %v2431, %v2430
          %v2458 = vpack.c.b16 %v2433, %v2432
          %v2459 = vpack.c.b16 %v2435, %v2434
          %v2460 = vpack.c.b16 %v2437, %v2436
          %v2461 = vpack.c.b16 %v2439, %v2438
          %v2462 = vpack.c.b16 %v2441, %v2440
          %v2463 = vpack.c.b16 %v2443, %v2442
          %v2464 = vpack.c.b16 %v2445, %v2444
          %v2465 = vpack.c.b16 %v2447, %v2446
          %v2466 = vpack.c.b16 %v2449, %v2448
          %v2467 = vpack.c.b16 %v2451, %v2450
          %v2516 = vunpack.c.l.b16 %v2256
          %v2517 = vunpack.c.l.b16 %v2257
          %v2518 = vunpack.c.l.b16 %v2258
          %v2519 = vunpack.c.l.b16 %v2259
          %v2520 = vunpack.c.l.b16 %v2260
          %v2521 = vunpack.c.l.b16 %v2261
          %v2522 = vunpack.c.l.b16 %v2262
          %v2523 = vunpack.c.l.b16 %v2263
          %v2524 = vunpack.c.l.b16 %v2264
          %v2525 = vunpack.c.l.b16 %v2265
          %v2526 = vunpack.c.l.b16 %v2266
          %v2527 = vunpack.c.l.b16 %v2267
          %v2528 = vunpack.c.l.b16 %v2268
          %v2529 = vunpack.c.l.b16 %v2269
          %v2530 = vunpack.c.l.b16 %v2270
          %v2531 = vunpack.c.l.b16 %v2271
          %v2532 = vunpack.c.l.b16 %v2272
          %v2533 = vunpack.c.l.b16 %v2273
          %v2534 = vunpack.c.l.b16 %v2274
          %v2535 = vunpack.c.l.b16 %v2275
          %v2536 = vunpack.c.l.b16 %v2276
          %v2537 = vunpack.c.l.b16 %v2277
          %v2538 = vunpack.c.l.b16 %v2278
          %v2539 = vunpack.c.l.b16 %v2279
          %v2540 = vunpack.c.l.b16 %v2280
          %v2541 = vunpack.c.l.b16 %v2281
          %v2542 = vunpack.c.l.b16 %v2282
          %v2543 = vunpack.c.l.b16 %v2283
          %v2544 = vunpack.c.l.b16 %v2284
          %v2545 = vunpack.c.l.b16 %v2285
          %v2546 = vunpack.c.l.b16 %v2286
          %v2547 = vunpack.c.l.b16 %v2287
          %v2548 = vpack.c.b16 %v2517, %v2516
          %v2549 = vpack.c.b16 %v2519, %v2518
          %v2550 = vpack.c.b16 %v2521, %v2520
          %v2551 = vpack.c.b16 %v2523, %v2522
          %v2552 = vpack.c.b16 %v2525, %v2524
          %v2553 = vpack.c.b16 %v2527, %v2526
          %v2554 = vpack.c.b16 %v2529, %v2528
          %v2555 = vpack.c.b16 %v2531, %v2530
          %v2556 = vpack.c.b16 %v2533, %v2532
          %v2557 = vpack.c.b16 %v2535, %v2534
          %v2558 = vpack.c.b16 %v2537, %v2536
          %v2559 = vpack.c.b16 %v2539, %v2538
          %v2560 = vpack.c.b16 %v2541, %v2540
          %v2561 = vpack.c.b16 %v2543, %v2542
          %v2562 = vpack.c.b16 %v2545, %v2544
          %v2563 = vpack.c.b16 %v2547, %v2546
          %v2580 = vld [vmem:[#allocation4] sm:$0xff]
          %v2581 = vld [vmem:[#allocation4 + $0x8] sm:$0xff]
          %v2582 = vld [vmem:[#allocation4 + $0x10] sm:$0xff]
          %v2583 = vld [vmem:[#allocation4 + $0x18] sm:$0xff]
          %v2584 = vld [vmem:[#allocation4 + $0x20] sm:$0xff]
          %v2585 = vld [vmem:[#allocation4 + $0x28] sm:$0xff]
          %v2586 = vld [vmem:[#allocation4 + $0x30] sm:$0xff]
          %v2587 = vld [vmem:[#allocation4 + $0x38] sm:$0xff]
          %v2588 = vld [vmem:[#allocation4 + $0x40] sm:$0xff]
          %v2589 = vld [vmem:[#allocation4 + $0x48] sm:$0xff]
          %v2590 = vld [vmem:[#allocation4 + $0x50] sm:$0xff]
          %v2591 = vld [vmem:[#allocation4 + $0x58] sm:$0xff]
          %v2592 = vld [vmem:[#allocation4 + $0x60] sm:$0xff]
          %v2593 = vld [vmem:[#allocation4 + $0x68] sm:$0xff]
          %v2594 = vld [vmem:[#allocation4 + $0x70] sm:$0xff]
          %v2595 = vld [vmem:[#allocation4 + $0x78] sm:$0xff]
          %v2596 = vmul.f32 %v2372, %v2580
          %v2597 = vmul.f32 %v2373, %v2581
          %v2598 = vmul.f32 %v2374, %v2582
          %v2599 = vmul.f32 %v2375, %v2583
          %v2600 = vmul.f32 %v2376, %v2584
          %v2601 = vmul.f32 %v2377, %v2585
          %v2602 = vmul.f32 %v2378, %v2586
          %v2603 = vmul.f32 %v2379, %v2587
          %v2604 = vmul.f32 %v2380, %v2588
          %v2605 = vmul.f32 %v2381, %v2589
          %v2606 = vmul.f32 %v2382, %v2590
          %v2607 = vmul.f32 %v2383, %v2591
          %v2608 = vmul.f32 %v2384, %v2592
          %v2609 = vmul.f32 %v2385, %v2593
          %v2610 = vmul.f32 %v2386, %v2594
          %v2611 = vmul.f32 %v2387, %v2595
          %2612 = vmatprep.subr.bf16.mxu0 0
          %2613 = vmatpush1.bf16.msra.mxu0 %v2452
          %2614 = vmatprep.subr.bf16.mxu0 0
          %2615 = vmatpush1.bf16.msra.mxu0 %v2453
          %2616 = vmatprep.subr.bf16.mxu0 0
          %2617 = vmatpush1.bf16.msra.mxu0 %v2454
          %2618 = vmatprep.subr.bf16.mxu0 0
          %2619 = vmatpush1.bf16.msra.mxu0 %v2455
          %2620 = vmatprep.subr.bf16.mxu0 0
          %2621 = vmatpush1.bf16.msra.mxu0 %v2456
          %2622 = vmatprep.subr.bf16.mxu0 0
          %2623 = vmatpush1.bf16.msra.mxu0 %v2457
          %2624 = vmatprep.subr.bf16.mxu0 0
          %2625 = vmatpush1.bf16.msra.mxu0 %v2458
          %2626 = vmatprep.subr.bf16.mxu0 0
          %2627 = vmatpush1.bf16.msra.mxu0 %v2459
          %2628 = vmatprep.subr.bf16.mxu0 0
          %2629 = vmatpush1.bf16.msra.mxu0 %v2460
          %2630 = vmatprep.subr.bf16.mxu0 0
          %2631 = vmatpush1.bf16.msra.mxu0 %v2461
          %2632 = vmatprep.subr.bf16.mxu0 0
          %2633 = vmatpush1.bf16.msra.mxu0 %v2462
          %2634 = vmatprep.subr.bf16.mxu0 0
          %2635 = vmatpush1.bf16.msra.mxu0 %v2463
          %2636 = vmatprep.subr.bf16.mxu0 0
          %2637 = vmatpush1.bf16.msra.mxu0 %v2464
          %2638 = vmatprep.subr.bf16.mxu0 0
          %2639 = vmatpush1.bf16.msra.mxu0 %v2465
          %2640 = vmatprep.subr.bf16.mxu0 0
          %2641 = vmatpush1.bf16.msra.mxu0 %v2466
          %2642 = vmatprep.subr.bf16.mxu0 0
          %2643 = vmatpush1.bf16.msra.mxu0 %v2467
          %2644 = vmatprep.mubr.bf16.mxu0 %v1483
          %2645 = vmatmul.mubr.bf16.gmra.mrb[0].mxu0 %v1482
          %v2646 = vpop.f32.mrb[0].mxu0
          %v2647 = vadd.f32 0.0, %v2646
          %v2648 = vpop.f32.mrb[0].mxu0
          %v2649 = vpop.f32.mrb[0].mxu0
          %v2650 = vadd.f32 0.0, %v2649
          %v2651 = vpop.f32.mrb[0].mxu0
          %2652 = vmatprep.mubr.bf16.mxu0 %v1485
          %2653 = vmatmul.mubr.bf16.gmra.mrb[0].mxu0 %v1484
          %v2654 = vpop.f32.mrb[0].mxu0
          %v2655 = vadd.f32 0.0, %v2654
          %v2656 = vpop.f32.mrb[0].mxu0
          %v2657 = vpop.f32.mrb[0].mxu0
          %v2658 = vadd.f32 0.0, %v2657
          %v2659 = vpop.f32.mrb[0].mxu0
          %2660 = vmatprep.mubr.bf16.mxu0 %v1487
          %2661 = vmatmul.mubr.bf16.gmra.mrb[0].mxu0 %v1486
          %v2662 = vpop.f32.mrb[0].mxu0
          %v2663 = vadd.f32 0.0, %v2662
          %v2664 = vpop.f32.mrb[0].mxu0
          %v2665 = vpop.f32.mrb[0].mxu0
          %v2666 = vadd.f32 0.0, %v2665
          %v2667 = vpop.f32.mrb[0].mxu0
          %2668 = vmatprep.mubr.bf16.mxu0 %v1489
          %2669 = vmatmul.mubr.bf16.gmra.mrb[0].mxu0 %v1488
          %v2670 = vpop.f32.mrb[0].mxu0
          %v2671 = vadd.f32 0.0, %v2670
          %v2672 = vpop.f32.mrb[0].mxu0
          %v2673 = vpop.f32.mrb[0].mxu0
          %v2674 = vadd.f32 0.0, %v2673
          %v2675 = vpop.f32.mrb[0].mxu0
          %2676 = vmatprep.mubr.bf16.mxu0 %v1491
          %2677 = vmatmul.mubr.bf16.gmra.mrb[0].mxu0 %v1490
          %v2678 = vpop.f32.mrb[0].mxu0
          %v2679 = vadd.f32 0.0, %v2678
          %v2680 = vpop.f32.mrb[0].mxu0
          %v2681 = vpop.f32.mrb[0].mxu0
          %v2682 = vadd.f32 0.0, %v2681
          %v2683 = vpop.f32.mrb[0].mxu0
          %2684 = vmatprep.mubr.bf16.mxu0 %v1493
          %2685 = vmatmul.mubr.bf16.gmra.mrb[0].mxu0 %v1492
          %v2686 = vpop.f32.mrb[0].mxu0
          %v2687 = vadd.f32 0.0, %v2686
          %v2688 = vpop.f32.mrb[0].mxu0
          %v2689 = vpop.f32.mrb[0].mxu0
          %v2690 = vadd.f32 0.0, %v2689
          %v2691 = vpop.f32.mrb[0].mxu0
          %2692 = vmatprep.mubr.bf16.mxu0 %v1495
          %2693 = vmatmul.mubr.bf16.gmra.mrb[0].mxu0 %v1494
          %v2694 = vpop.f32.mrb[0].mxu0
          %v2695 = vadd.f32 0.0, %v2694
          %v2696 = vpop.f32.mrb[0].mxu0
          %v2697 = vpop.f32.mrb[0].mxu0
          %v2698 = vadd.f32 0.0, %v2697
          %v2699 = vpop.f32.mrb[0].mxu0
          %2700 = vmatprep.mubr.bf16.mxu0 %v1497
          %2701 = vmatmul.mubr.bf16.gmra.mrb[0].mxu0 %v1496
          %v2702 = vpop.f32.mrb[0].mxu0
          %v2703 = vadd.f32 0.0, %v2702
          %v2704 = vpop.f32.mrb[0].mxu0
          %v2705 = vpop.f32.mrb[0].mxu0
          %v2706 = vadd.f32 0.0, %v2705
          %v2707 = vpop.f32.mrb[0].mxu0
          %2708 = vdwg.mxu0
          %2709 = vmatprep.subr.bf16.mxu0 0
          %2710 = vmatpush1.bf16.msra.mxu0 %v2548
          %2711 = vmatprep.subr.bf16.mxu0 0
          %2712 = vmatpush1.bf16.msra.mxu0 %v2549
          %2713 = vmatprep.subr.bf16.mxu0 0
          %2714 = vmatpush1.bf16.msra.mxu0 %v2550
          %2715 = vmatprep.subr.bf16.mxu0 0
          %2716 = vmatpush1.bf16.msra.mxu0 %v2551
          %2717 = vmatprep.subr.bf16.mxu0 0
          %2718 = vmatpush1.bf16.msra.mxu0 %v2552
          %2719 = vmatprep.subr.bf16.mxu0 0
          %2720 = vmatpush1.bf16.msra.mxu0 %v2553
          %2721 = vmatprep.subr.bf16.mxu0 0
          %2722 = vmatpush1.bf16.msra.mxu0 %v2554
          %2723 = vmatprep.subr.bf16.mxu0 0
          %2724 = vmatpush1.bf16.msra.mxu0 %v2555
          %2725 = vmatprep.subr.bf16.mxu0 0
          %2726 = vmatpush1.bf16.msra.mxu0 %v2556
          %2727 = vmatprep.subr.bf16.mxu0 0
          %2728 = vmatpush1.bf16.msra.mxu0 %v2557
          %2729 = vmatprep.subr.bf16.mxu0 0
          %2730 = vmatpush1.bf16.msra.mxu0 %v2558
          %2731 = vmatprep.subr.bf16.mxu0 0
          %2732 = vmatpush1.bf16.msra.mxu0 %v2559
          %2733 = vmatprep.subr.bf16.mxu0 0
          %2734 = vmatpush1.bf16.msra.mxu0 %v2560
          %2735 = vmatprep.subr.bf16.mxu0 0
          %2736 = vmatpush1.bf16.msra.mxu0 %v2561
          %2737 = vmatprep.subr.bf16.mxu0 0
          %2738 = vmatpush1.bf16.msra.mxu0 %v2562
          %2739 = vmatprep.subr.bf16.mxu0 0
          %2740 = vmatpush1.bf16.msra.mxu0 %v2563
          %2741 = vmatprep.mubr.bf16.mxu0 %v2231
          %2742 = vmatmul.mubr.bf16.gmra.mrb[0].mxu0 %v2230
          %v2743 = vpop.f32.mrb[0].mxu0
          %v2744 = vadd.f32 %v2647, %v2743
          %v2745 = vpop.f32.mrb[0].mxu0
          %v2746 = vpop.f32.mrb[0].mxu0
          %v2747 = vadd.f32 %v2650, %v2746
          %v2748 = vpop.f32.mrb[0].mxu0
          %2749 = vmatprep.mubr.bf16.mxu0 %v2233
          %2750 = vmatmul.mubr.bf16.gmra.mrb[0].mxu0 %v2232
          %v2751 = vpop.f32.mrb[0].mxu0
          %v2752 = vadd.f32 %v2655, %v2751
          %v2753 = vpop.f32.mrb[0].mxu0
          %v2754 = vpop.f32.mrb[0].mxu0
          %v2755 = vadd.f32 %v2658, %v2754
          %v2756 = vpop.f32.mrb[0].mxu0
          %2757 = vmatprep.mubr.bf16.mxu0 %v2235
          %2758 = vmatmul.mubr.bf16.gmra.mrb[0].mxu0 %v2234
          %v2759 = vpop.f32.mrb[0].mxu0
          %v2760 = vadd.f32 %v2663, %v2759
          %v2761 = vpop.f32.mrb[0].mxu0
          %v2762 = vpop.f32.mrb[0].mxu0
          %v2763 = vadd.f32 %v2666, %v2762
          %v2764 = vpop.f32.mrb[0].mxu0
          %2765 = vmatprep.mubr.bf16.mxu0 %v2237
          %2766 = vmatmul.mubr.bf16.gmra.mrb[0].mxu0 %v2236
          %v2767 = vpop.f32.mrb[0].mxu0
          %v2768 = vadd.f32 %v2671, %v2767
          %v2769 = vpop.f32.mrb[0].mxu0
          %v2770 = vpop.f32.mrb[0].mxu0
          %v2771 = vadd.f32 %v2674, %v2770
          %v2772 = vpop.f32.mrb[0].mxu0
          %2773 = vmatprep.mubr.bf16.mxu0 %v2239
          %2774 = vmatmul.mubr.bf16.gmra.mrb[0].mxu0 %v2238
          %v2775 = vpop.f32.mrb[0].mxu0
          %v2776 = vadd.f32 %v2679, %v2775
          %v2777 = vpop.f32.mrb[0].mxu0
          %v2778 = vpop.f32.mrb[0].mxu0
          %v2779 = vadd.f32 %v2682, %v2778
          %v2780 = vpop.f32.mrb[0].mxu0
          %2781 = vmatprep.mubr.bf16.mxu0 %v2241
          %2782 = vmatmul.mubr.bf16.gmra.mrb[0].mxu0 %v2240
          %v2783 = vpop.f32.mrb[0].mxu0
          %v2784 = vadd.f32 %v2687, %v2783
          %v2785 = vpop.f32.mrb[0].mxu0
          %v2786 = vpop.f32.mrb[0].mxu0
          %v2787 = vadd.f32 %v2690, %v2786
          %v2788 = vpop.f32.mrb[0].mxu0
          %2789 = vmatprep.mubr.bf16.mxu0 %v2243
          %2790 = vmatmul.mubr.bf16.gmra.mrb[0].mxu0 %v2242
          %v2791 = vpop.f32.mrb[0].mxu0
          %v2792 = vadd.f32 %v2695, %v2791
          %v2793 = vpop.f32.mrb[0].mxu0
          %v2794 = vpop.f32.mrb[0].mxu0
          %v2795 = vadd.f32 %v2698, %v2794
          %v2796 = vpop.f32.mrb[0].mxu0
          %2797 = vmatprep.mubr.bf16.mxu0 %v2245
          %2798 = vmatmul.mubr.bf16.gmra.mrb[0].mxu0 %v2244
          %v2799 = vpop.f32.mrb[0].mxu0
          %v2800 = vadd.f32 %v2703, %v2799
          %v2801 = vpop.f32.mrb[0].mxu0
          %v2802 = vpop.f32.mrb[0].mxu0
          %v2803 = vadd.f32 %v2706, %v2802
          %v2804 = vpop.f32.mrb[0].mxu0
          %2805 = vdwg.mxu0
          %v2806 = vadd.f32 %v2596, %v2744
          %v2807 = vadd.f32 %v2597, %v2747
          %v2808 = vadd.f32 %v2598, %v2752
          %v2809 = vadd.f32 %v2599, %v2755
          %v2810 = vadd.f32 %v2600, %v2760
          %v2811 = vadd.f32 %v2601, %v2763
          %v2812 = vadd.f32 %v2602, %v2768
          %v2813 = vadd.f32 %v2603, %v2771
          %v2814 = vadd.f32 %v2604, %v2776
          %v2815 = vadd.f32 %v2605, %v2779
          %v2816 = vadd.f32 %v2606, %v2784
          %v2817 = vadd.f32 %v2607, %v2787
          %v2818 = vadd.f32 %v2608, %v2792
          %v2819 = vadd.f32 %v2609, %v2795
          %v2820 = vadd.f32 %v2610, %v2800
          %v2821 = vadd.f32 %v2611, %v2803
          %2822 = vst [vmem:[#allocation4] sm:$0xff] %v2806
          %2823 = vst [vmem:[#allocation4 + $0x8] sm:$0xff] %v2807
          %2824 = vst [vmem:[#allocation4 + $0x10] sm:$0xff] %v2808
          %2825 = vst [vmem:[#allocation4 + $0x18] sm:$0xff] %v2809
          %2826 = vst [vmem:[#allocation4 + $0x20] sm:$0xff] %v2810
          %2827 = vst [vmem:[#allocation4 + $0x28] sm:$0xff] %v2811
          %2828 = vst [vmem:[#allocation4 + $0x30] sm:$0xff] %v2812
          %2829 = vst [vmem:[#allocation4 + $0x38] sm:$0xff] %v2813
          %2830 = vst [vmem:[#allocation4 + $0x40] sm:$0xff] %v2814
          %2831 = vst [vmem:[#allocation4 + $0x48] sm:$0xff] %v2815
          %2832 = vst [vmem:[#allocation4 + $0x50] sm:$0xff] %v2816
          %2833 = vst [vmem:[#allocation4 + $0x58] sm:$0xff] %v2817
          %2834 = vst [vmem:[#allocation4 + $0x60] sm:$0xff] %v2818
          %2835 = vst [vmem:[#allocation4 + $0x68] sm:$0xff] %v2819
          %2836 = vst [vmem:[#allocation4 + $0x70] sm:$0xff] %v2820
          %2837 = vst [vmem:[#allocation4 + $0x78] sm:$0xff] %v2821
        $region79: #{tpu_custom_call.1} parent=58 // pred_fallthru
          _
        %p2838 = scmp.eq.s32.totalorder %s41, 1
        // Predicated region
        $region80: #{tpu_custom_call.1} parent=58 // pred_check
          %p2839 = pneg %p2838
        $region81: #{tpu_custom_call.1} parent=58 // pred_check_branch
          %2841 = sbr.rel (%p2839) target = $region83
        $region82: #{tpu_custom_call.1} parent=58 // pred_region
          %v2842 = vld [vmem:[#allocation3] sm:$0xff]
          %v2843 = vld [vmem:[#allocation3 + $0x8] sm:$0xff]
          %v2844 = vld [vmem:[#allocation3 + $0x10] sm:$0xff]
          %v2845 = vld [vmem:[#allocation3 + $0x18] sm:$0xff]
          %v2846 = vld [vmem:[#allocation3 + $0x20] sm:$0xff]
          %v2847 = vld [vmem:[#allocation3 + $0x28] sm:$0xff]
          %v2848 = vld [vmem:[#allocation3 + $0x30] sm:$0xff]
          %v2849 = vld [vmem:[#allocation3 + $0x38] sm:$0xff]
          %v2850 = vld [vmem:[#allocation3 + $0x40] sm:$0xff]
          %v2851 = vld [vmem:[#allocation3 + $0x48] sm:$0xff]
          %v2852 = vld [vmem:[#allocation3 + $0x50] sm:$0xff]
          %v2853 = vld [vmem:[#allocation3 + $0x58] sm:$0xff]
          %v2854 = vld [vmem:[#allocation3 + $0x60] sm:$0xff]
          %v2855 = vld [vmem:[#allocation3 + $0x68] sm:$0xff]
          %v2856 = vld [vmem:[#allocation3 + $0x70] sm:$0xff]
          %v2857 = vld [vmem:[#allocation3 + $0x78] sm:$0xff]
          %v2858 = vmax.f32 %v2842, 1e-20
          %v2859 = vmax.f32 %v2843, 1e-20
          %v2860 = vmax.f32 %v2844, 1e-20
          %v2861 = vmax.f32 %v2845, 1e-20
          %v2862 = vmax.f32 %v2846, 1e-20
          %v2863 = vmax.f32 %v2847, 1e-20
          %v2864 = vmax.f32 %v2848, 1e-20
          %v2865 = vmax.f32 %v2849, 1e-20
          %v2866 = vmax.f32 %v2850, 1e-20
          %v2867 = vmax.f32 %v2851, 1e-20
          %v2868 = vmax.f32 %v2852, 1e-20
          %v2869 = vmax.f32 %v2853, 1e-20
          %v2870 = vmax.f32 %v2854, 1e-20
          %v2871 = vmax.f32 %v2855, 1e-20
          %v2872 = vmax.f32 %v2856, 1e-20
          %v2873 = vmax.f32 %v2857, 1e-20
          %v2874 = vrcp.pop %v2858
          %v2875 = vrcp.pop %v2859
          %v2876 = vrcp.pop %v2860
          %v2877 = vrcp.pop %v2861
          %v2878 = vrcp.pop %v2862
          %v2879 = vrcp.pop %v2863
          %v2880 = vrcp.pop %v2864
          %v2881 = vrcp.pop %v2865
          %v2882 = vrcp.pop %v2866
          %v2883 = vrcp.pop %v2867
          %v2884 = vrcp.pop %v2868
          %v2885 = vrcp.pop %v2869
          %v2886 = vrcp.pop %v2870
          %v2887 = vrcp.pop %v2871
          %v2888 = vrcp.pop %v2872
          %v2889 = vrcp.pop %v2873
          %2891 = vset.pattern.permute.xlu0 0
          %2892 = vperm.xlu0 %2891, %v2874
          %v2893 = vpop.permute.xlu0 %2892
          %2896 = vset.pattern.permute.xlu0 0
          %2897 = vperm.xlu0 %2896, %v2875
          %v2898 = vpop.permute.xlu0 %2897
          %2901 = vset.pattern.permute.xlu0 0
          %2902 = vperm.xlu0 %2901, %v2876
          %v2903 = vpop.permute.xlu0 %2902
          %2906 = vset.pattern.permute.xlu0 0
          %2907 = vperm.xlu0 %2906, %v2877
          %v2908 = vpop.permute.xlu0 %2907
          %2911 = vset.pattern.permute.xlu0 0
          %2912 = vperm.xlu0 %2911, %v2878
          %v2913 = vpop.permute.xlu0 %2912
          %2916 = vset.pattern.permute.xlu0 0
          %2917 = vperm.xlu0 %2916, %v2879
          %v2918 = vpop.permute.xlu0 %2917
          %2921 = vset.pattern.permute.xlu0 0
          %2922 = vperm.xlu0 %2921, %v2880
          %v2923 = vpop.permute.xlu0 %2922
          %2926 = vset.pattern.permute.xlu0 0
          %2927 = vperm.xlu0 %2926, %v2881
          %v2928 = vpop.permute.xlu0 %2927
          %2931 = vset.pattern.permute.xlu0 0
          %2932 = vperm.xlu0 %2931, %v2882
          %v2933 = vpop.permute.xlu0 %2932
          %2936 = vset.pattern.permute.xlu0 0
          %2937 = vperm.xlu0 %2936, %v2883
          %v2938 = vpop.permute.xlu0 %2937
          %2941 = vset.pattern.permute.xlu0 0
          %2942 = vperm.xlu0 %2941, %v2884
          %v2943 = vpop.permute.xlu0 %2942
          %2946 = vset.pattern.permute.xlu0 0
          %2947 = vperm.xlu0 %2946, %v2885
          %v2948 = vpop.permute.xlu0 %2947
          %2951 = vset.pattern.permute.xlu0 0
          %2952 = vperm.xlu0 %2951, %v2886
          %v2953 = vpop.permute.xlu0 %2952
          %2956 = vset.pattern.permute.xlu0 0
          %2957 = vperm.xlu0 %2956, %v2887
          %v2958 = vpop.permute.xlu0 %2957
          %2961 = vset.pattern.permute.xlu0 0
          %2962 = vperm.xlu0 %2961, %v2888
          %v2963 = vpop.permute.xlu0 %2962
          %2966 = vset.pattern.permute.xlu0 0
          %2967 = vperm.xlu0 %2966, %v2889
          %v2968 = vpop.permute.xlu0 %2967
          %2970 = vset.pattern.permute.xlu0 1
          %2971 = vperm.xlu0 %2970, %v2874
          %v2972 = vpop.permute.xlu0 %2971
          %2974 = vset.pattern.permute.xlu0 1
          %2975 = vperm.xlu0 %2974, %v2875
          %v2976 = vpop.permute.xlu0 %2975
          %2978 = vset.pattern.permute.xlu0 1
          %2979 = vperm.xlu0 %2978, %v2876
          %v2980 = vpop.permute.xlu0 %2979
          %2982 = vset.pattern.permute.xlu0 1
          %2983 = vperm.xlu0 %2982, %v2877
          %v2984 = vpop.permute.xlu0 %2983
          %2986 = vset.pattern.permute.xlu0 1
          %2987 = vperm.xlu0 %2986, %v2878
          %v2988 = vpop.permute.xlu0 %2987
          %2990 = vset.pattern.permute.xlu0 1
          %2991 = vperm.xlu0 %2990, %v2879
          %v2992 = vpop.permute.xlu0 %2991
          %2994 = vset.pattern.permute.xlu0 1
          %2995 = vperm.xlu0 %2994, %v2880
          %v2996 = vpop.permute.xlu0 %2995
          %2998 = vset.pattern.permute.xlu0 1
          %2999 = vperm.xlu0 %2998, %v2881
          %v3000 = vpop.permute.xlu0 %2999
          %3002 = vset.pattern.permute.xlu0 1
          %3003 = vperm.xlu0 %3002, %v2882
          %v3004 = vpop.permute.xlu0 %3003
          %3006 = vset.pattern.permute.xlu0 1
          %3007 = vperm.xlu0 %3006, %v2883
          %v3008 = vpop.permute.xlu0 %3007
          %3010 = vset.pattern.permute.xlu0 1
          %3011 = vperm.xlu0 %3010, %v2884
          %v3012 = vpop.permute.xlu0 %3011
          %3014 = vset.pattern.permute.xlu0 1
          %3015 = vperm.xlu0 %3014, %v2885
          %v3016 = vpop.permute.xlu0 %3015
          %3018 = vset.pattern.permute.xlu0 1
          %3019 = vperm.xlu0 %3018, %v2886
          %v3020 = vpop.permute.xlu0 %3019
          %3022 = vset.pattern.permute.xlu0 1
          %3023 = vperm.xlu0 %3022, %v2887
          %v3024 = vpop.permute.xlu0 %3023
          %3026 = vset.pattern.permute.xlu0 1
          %3027 = vperm.xlu0 %3026, %v2888
          %v3028 = vpop.permute.xlu0 %3027
          %3030 = vset.pattern.permute.xlu0 1
          %3031 = vperm.xlu0 %3030, %v2889
          %v3032 = vpop.permute.xlu0 %3031
          %vm3034 = vcmask 64512
          %v3035 = vsel %vm3034, %v2893, %v2972
          %v3036 = vsel %vm3034, %v2898, %v2976
          %v3037 = vsel %vm3034, %v2903, %v2980
          %v3038 = vsel %vm3034, %v2908, %v2984
          %v3039 = vsel %vm3034, %v2913, %v2988
          %v3040 = vsel %vm3034, %v2918, %v2992
          %v3041 = vsel %vm3034, %v2923, %v2996
          %v3042 = vsel %vm3034, %v2928, %v3000
          %v3043 = vsel %vm3034, %v2933, %v3004
          %v3044 = vsel %vm3034, %v2938, %v3008
          %v3045 = vsel %vm3034, %v2943, %v3012
          %v3046 = vsel %vm3034, %v2948, %v3016
          %v3047 = vsel %vm3034, %v2953, %v3020
          %v3048 = vsel %vm3034, %v2958, %v3024
          %v3049 = vsel %vm3034, %v2963, %v3028
          %v3050 = vsel %vm3034, %v2968, %v3032
          %vm3051 = vcmask 130048
          %v3052 = vsel %vm3051, %v3035, 0.0
          %v3053 = vsel %vm3051, %v3036, 0.0
          %v3054 = vsel %vm3051, %v3037, 0.0
          %v3055 = vsel %vm3051, %v3038, 0.0
          %v3056 = vsel %vm3051, %v3039, 0.0
          %v3057 = vsel %vm3051, %v3040, 0.0
          %v3058 = vsel %vm3051, %v3041, 0.0
          %v3059 = vsel %vm3051, %v3042, 0.0
          %v3060 = vsel %vm3051, %v3043, 0.0
          %v3061 = vsel %vm3051, %v3044, 0.0
          %v3062 = vsel %vm3051, %v3045, 0.0
          %v3063 = vsel %vm3051, %v3046, 0.0
          %v3064 = vsel %vm3051, %v3047, 0.0
          %v3065 = vsel %vm3051, %v3048, 0.0
          %v3066 = vsel %vm3051, %v3049, 0.0
          %v3067 = vsel %vm3051, %v3050, 0.0
          %v3068 = vld [vmem:[%s458] sm:$0xff]
          %v3069 = vld [vmem:[%s458 + $0x8] sm:$0xff]
          %v3070 = vld [vmem:[%s458 + $0x10] sm:$0xff]
          %v3071 = vld [vmem:[%s458 + $0x18] sm:$0xff]
          %v3072 = vld [vmem:[%s458 + $0x20] sm:$0xff]
          %v3073 = vld [vmem:[%s458 + $0x28] sm:$0xff]
          %v3074 = vld [vmem:[%s458 + $0x30] sm:$0xff]
          %v3075 = vld [vmem:[%s458 + $0x38] sm:$0xff]
          %v3076 = vld [vmem:[%s458 + $0x40] sm:$0xff]
          %v3077 = vld [vmem:[%s458 + $0x48] sm:$0xff]
          %v3078 = vld [vmem:[%s458 + $0x50] sm:$0xff]
          %v3079 = vld [vmem:[%s458 + $0x58] sm:$0xff]
          %v3080 = vld [vmem:[%s458 + $0x60] sm:$0xff]
          %v3081 = vld [vmem:[%s458 + $0x68] sm:$0xff]
          %v3082 = vld [vmem:[%s458 + $0x70] sm:$0xff]
          %v3083 = vld [vmem:[%s458 + $0x78] sm:$0xff]
          %v3084 = vld [vmem:[#allocation4] sm:$0xff]
          %v3085 = vld [vmem:[#allocation4 + $0x8] sm:$0xff]
          %v3086 = vld [vmem:[#allocation4 + $0x10] sm:$0xff]
          %v3087 = vld [vmem:[#allocation4 + $0x18] sm:$0xff]
          %v3088 = vld [vmem:[#allocation4 + $0x20] sm:$0xff]
          %v3089 = vld [vmem:[#allocation4 + $0x28] sm:$0xff]
          %v3090 = vld [vmem:[#allocation4 + $0x30] sm:$0xff]
          %v3091 = vld [vmem:[#allocation4 + $0x38] sm:$0xff]
          %v3092 = vld [vmem:[#allocation4 + $0x40] sm:$0xff]
          %v3093 = vld [vmem:[#allocation4 + $0x48] sm:$0xff]
          %v3094 = vld [vmem:[#allocation4 + $0x50] sm:$0xff]
          %v3095 = vld [vmem:[#allocation4 + $0x58] sm:$0xff]
          %v3096 = vld [vmem:[#allocation4 + $0x60] sm:$0xff]
          %v3097 = vld [vmem:[#allocation4 + $0x68] sm:$0xff]
          %v3098 = vld [vmem:[#allocation4 + $0x70] sm:$0xff]
          %v3099 = vld [vmem:[#allocation4 + $0x78] sm:$0xff]
          %v3100 = vmul.f32 %v3084, %v3052
          %v3101 = vmul.f32 %v3085, %v3053
          %v3102 = vmul.f32 %v3086, %v3054
          %v3103 = vmul.f32 %v3087, %v3055
          %v3104 = vmul.f32 %v3088, %v3056
          %v3105 = vmul.f32 %v3089, %v3057
          %v3106 = vmul.f32 %v3090, %v3058
          %v3107 = vmul.f32 %v3091, %v3059
          %v3108 = vmul.f32 %v3092, %v3060
          %v3109 = vmul.f32 %v3093, %v3061
          %v3110 = vmul.f32 %v3094, %v3062
          %v3111 = vmul.f32 %v3095, %v3063
          %v3112 = vmul.f32 %v3096, %v3064
          %v3113 = vmul.f32 %v3097, %v3065
          %v3114 = vmul.f32 %v3098, %v3066
          %v3115 = vmul.f32 %v3099, %v3067
          %v3116 = vld [vmem:[%s504] sm:$0x1]
          %v3118 = vlaneseq
          %v3119 = vshrl.u32 %v3118, 7
          %v3120 = vsub.s32 0, %v3119
          %v3121 = vrot.slane %v3116, %v3120
          %v3123 = vadd.f32 %v3100, %v3121
          %v3124 = vadd.f32 %v3101, %v3121
          %v3125 = vadd.f32 %v3102, %v3121
          %v3126 = vadd.f32 %v3103, %v3121
          %v3127 = vadd.f32 %v3104, %v3121
          %v3128 = vadd.f32 %v3105, %v3121
          %v3129 = vadd.f32 %v3106, %v3121
          %v3130 = vadd.f32 %v3107, %v3121
          %v3131 = vadd.f32 %v3108, %v3121
          %v3132 = vadd.f32 %v3109, %v3121
          %v3133 = vadd.f32 %v3110, %v3121
          %v3134 = vadd.f32 %v3111, %v3121
          %v3135 = vadd.f32 %v3112, %v3121
          %v3136 = vadd.f32 %v3113, %v3121
          %v3137 = vadd.f32 %v3114, %v3121
          %v3138 = vadd.f32 %v3115, %v3121
          %v3139 = vadd.f32 %v3068, %v3123
          %v3140 = vadd.f32 %v3069, %v3124
          %v3141 = vadd.f32 %v3070, %v3125
          %v3142 = vadd.f32 %v3071, %v3126
          %v3143 = vadd.f32 %v3072, %v3127
          %v3144 = vadd.f32 %v3073, %v3128
          %v3145 = vadd.f32 %v3074, %v3129
          %v3146 = vadd.f32 %v3075, %v3130
          %v3147 = vadd.f32 %v3076, %v3131
          %v3148 = vadd.f32 %v3077, %v3132
          %v3149 = vadd.f32 %v3078, %v3133
          %v3150 = vadd.f32 %v3079, %v3134
          %v3151 = vadd.f32 %v3080, %v3135
          %v3152 = vadd.f32 %v3081, %v3136
          %v3153 = vadd.f32 %v3082, %v3137
          %v3154 = vadd.f32 %v3083, %v3138
          %3155 = vst [vmem:[%s458] sm:$0xff] %v3139
          %3156 = vst [vmem:[%s458 + $0x8] sm:$0xff] %v3140
          %3157 = vst [vmem:[%s458 + $0x10] sm:$0xff] %v3141
          %3158 = vst [vmem:[%s458 + $0x18] sm:$0xff] %v3142
          %3159 = vst [vmem:[%s458 + $0x20] sm:$0xff] %v3143
          %3160 = vst [vmem:[%s458 + $0x28] sm:$0xff] %v3144
          %3161 = vst [vmem:[%s458 + $0x30] sm:$0xff] %v3145
          %3162 = vst [vmem:[%s458 + $0x38] sm:$0xff] %v3146
          %3163 = vst [vmem:[%s458 + $0x40] sm:$0xff] %v3147
          %3164 = vst [vmem:[%s458 + $0x48] sm:$0xff] %v3148
          %3165 = vst [vmem:[%s458 + $0x50] sm:$0xff] %v3149
          %3166 = vst [vmem:[%s458 + $0x58] sm:$0xff] %v3150
          %3167 = vst [vmem:[%s458 + $0x60] sm:$0xff] %v3151
          %3168 = vst [vmem:[%s458 + $0x68] sm:$0xff] %v3152
          %3169 = vst [vmem:[%s458 + $0x70] sm:$0xff] %v3153
          %3170 = vst [vmem:[%s458 + $0x78] sm:$0xff] %v3154
        $region83: #{tpu_custom_call.1} parent=58 // pred_fallthru
          _
        %s3171 = sand.u32 %s231, 1
        %s3172 = scalar_lea.sflag [#allocation10], %s3171
        %s3173 = sand.u32 %s231, 1
        %s3174 = smul.addr %s3173, 128
        %s3175 = scalar_lea.vmem [#allocation12], %s3174
        // Predicated region
        $region84: #{tpu_custom_call.1} parent=58 // pred_check
          %p3176 = pneg %p241
        $region85: #{tpu_custom_call.1} parent=58 // pred_check_branch
          %3178 = sbr.rel (%p3176) target = $region87
        $region86: #{tpu_custom_call.1} parent=58 // pred_region
          %s3179 = smul.u32 16, %s39
          %s3181 = ssub.s32 2048, 2048
          %3182 = vsyncadd %s3172, %s3181
          %s3183 = smul.addr %s3179, 128
          %s3184 = scalar_lea.hbm %s7, %s3183
          %s3185 = sshll.u32 %s3175, 4
          %s3186 = int_to_ptr.vmem [resolvable:$true] %s3185
          %3191 = dma.vmem_to_hbm [thread:$0]  %s3186, 2048, %s3184, %s3172, 128, 128, 8
        $region87: #{tpu_custom_call.1} parent=58 // pred_fallthru
          _
      $region59: #{tpu_custom_call.1} parent=5 // pred_fallthru
        _
      %p3192 = scmp.le.s32.totalorder 2, %s29
      // Predicated region
      $region88: #{tpu_custom_call.1} parent=5 // pred_check
        %p3193 = pneg %p3192
      $region89: #{tpu_custom_call.1} parent=5 // pred_check_branch
        %3195 = sbr.rel (%p3193) target = $region91
      $region90: #{tpu_custom_call.1} parent=5 // pred_region
        %s3196 = ssub.s32 %s29, 2
        // Predicated region
        $region92: #{tpu_custom_call.1} parent=90 // pred_check
          %p3197 = pneg %p247
        $region93: #{tpu_custom_call.1} parent=90 // pred_check_branch
          %3199 = sbr.rel (%p3197) target = $region95
        $region94: #{tpu_custom_call.1} parent=90 // pred_region
          %s3200 = sand.u32 %s232, 1
          %s3201 = scalar_lea.sflag [#allocation10], %s3200
          %s3202 = sand.u32 %s232, 1
          %s3203 = smul.addr %s3202, 128
          %s3204 = scalar_lea.vmem [#allocation12], %s3203
          %3205 = dma.done %s3201, 2048
        $region95: #{tpu_custom_call.1} parent=90 // pred_fallthru
          _
      $region91: #{tpu_custom_call.1} parent=5 // pred_fallthru
        _
    $region6: #{tpu_custom_call.1} parent=1 // loop_footer
      %s33 = sadd.s32 1, %s29
    $region7: #{tpu_custom_call.1} parent=1 // loop_footer_branch
      %28 = sbr.rel target = $region3
    $region8: #{tpu_custom_call.1} parent=1 // loop_exit
      _
    %3206 = vsyncpa [#allocation9], 1
    %s3207 = scalar_lea.sflag [#allocation9], 1
    %3208 = vsyncpa %s3207, 1
    %3209 = vsyncpa [#allocation10], 1
    %s3210 = scalar_lea.sflag [#allocation10], 1
    %3211 = vsyncpa %s3210, 1

</llo_original>
